<compile_context>
chip_gen: v5e
topology: v5e:2x2
jax: 0.10.0
libtpu: 0.0.40
codegen_flags: <defaults>
</compile_context>

<pallas_src>
import functools

import jax
import jax.numpy as jnp
from jax.experimental import pallas as pl
from jax.experimental.pallas import tpu as pltpu

# Small synthetic dimensions (production module: ACOUSTIC_DIM=154,
# ACOUSTIC_MAX_LEN=600, SOURCE_MAX_LEN=480, VISUAL_DIM=2048, VISUAL_MAX_LEN=96,
# dim_model=768).  dim_model / VISUAL_DIM are kept at 128 so the wide matmuls
# and the final store are lane-dense, like the production sizes.
ACOUSTIC_DIM = 32
ACOUSTIC_MAX_LEN = 24
SOURCE_MAX_LEN = 16
VISUAL_DIM = 128
VISUAL_MAX_LEN = 8
DIM_MODEL = 128

# bf16 is the MXU-native dtype on all of v5e/v6e/v7x (f32 accumulation is kept
# via preferred_element_type); flip to jnp.bfloat16 for ~2x MXU rate once the
# looser numerical tolerance that implies is acceptable.  Parameters are packed
# in this dtype too (halves the parameter DMA bytes in bf16 mode).
COMPUTE_DTYPE = jnp.float32


def _ceil_to(x, q):
    return ((x + q - 1) // q) * q


# ---------------------------------------------------------------------------
# Parameter packing: pre-transpose / pre-split every weight, column-pack narrow
# weights across the lanes, row-stack the full-width 1-row vectors, and return
# ONE (rows, lanes) buffer (COMPUTE_DTYPE) plus name -> (row, col, r, c).
# ---------------------------------------------------------------------------
def pack_params(p):
    d, da = DIM_MODEL, ACOUSTIC_DIM
    dt = COMPUTE_DTYPE
    perm = [0, 2, 1, 3]   # lambda weights reordered to [w1_k, w1_v, w2_k, w2_v]

    e = {}
    e["w_at"] = p["w_at"]                     # (S, LA)  acoustic_context_transform
    e["w_vt"] = p["w_vt"]                     # (S, LV)  visual_context_transform
    # acoustic ContextAwareAttention (dim_model=DA, dim_context=D)
    e["a_ukT"] = p["a_uk"].T                  # (D, DA)
    e["a_uvT"] = p["a_uv"].T                  # (D, DA)
    e["a_wlam"] = p["a_w"].T[:, perm]         # (DA, 4)
    e["a_wqT"] = p["a_in_w"][0:da].T
    e["a_wkT"] = p["a_in_w"][da:2 * da].T
    e["a_wvT"] = p["a_in_w"][2 * da:3 * da].T
    e["a_outT"] = p["a_out_w"].T
    e["a_bq"] = p["a_in_b"][:, 0:da]
    e["a_bk"] = p["a_in_b"][:, da:2 * da]
    e["a_bv"] = p["a_in_b"][:, 2 * da:3 * da]
    e["a_outb"] = p["a_out_b"]
    # visual ContextAwareAttention (dim_model=D, dim_context=DV)
    e["v_ukT"] = p["v_uk"].T                  # (DV, D)
    e["v_uvT"] = p["v_uv"].T                  # (DV, D)
    e["v_wlam"] = p["v_w"].T[:, perm]         # (D, 4)
    e["v_wqT"] = p["v_in_w"][0:d].T
    e["v_wkT"] = p["v_in_w"][d:2 * d].T
    e["v_wvT"] = p["v_in_w"][2 * d:3 * d].T
    e["v_outT"] = p["v_out_w"].T
    # correct_dim + gate weights
    e["cdT"] = p["cd_w"].T                    # (DA, D)
    e["ag_wa"] = p["ag_w"][:, :d].T           # gate half applied to audio_out
    e["ag_wt"] = p["ag_w"][:, d:].T           # gate half applied to text
    e["vg_wa"] = p["vg_w"][:, :d].T
    e["vg_wt"] = p["vg_w"][:, d:].T
    # full-width 1-row vectors: row-stacked into ONE block (no 8-row pad each)
    wide_rows = [
        ("v_bq", p["v_in_b"][:, 0:d]), ("v_bk", p["v_in_b"][:, d:2 * d]),
        ("v_bv", p["v_in_b"][:, 2 * d:3 * d]), ("v_outb", p["v_out_b"]),
        ("cd_b", p["cd_b"]), ("ag_b", p["ag_b"]), ("vg_b", p["vg_b"]),
        ("ln_g", p["ln_g"]), ("ln_b", p["ln_b"]),
    ]

    sub = 8 if dt == jnp.float32 else 16      # sublane quantum (f32 / bf16 packing)
    lane_q = 8                                # column-start quantum
    max_w = max([a.shape[1] for a in e.values()] +
                [a.shape[1] for _, a in wide_rows])
    lanes = max(128, _ceil_to(max_w, 128))    # widens automatically at prod dims

    placements = {}
    bands = []                                # [padded_height, row_start, col_cursor]
    next_row = 0

    def place(r, c):
        nonlocal next_row
        rpad, cpad = _ceil_to(r, sub), _ceil_to(c, lane_q)
        for band in bands:                    # first-fit column packing
            if band[0] == rpad and band[2] + cpad <= lanes:
                row, col = band[1], band[2]
                band[2] += cpad
                return row, col
        bands.append([rpad, next_row, cpad])
        row = next_row
        next_row += rpad
        return row, 0

    for name, arr in e.items():
        r, c = arr.shape
        row, col = place(r, c)
        placements[name] = (row, col, r, c)
    wrow, _ = place(len(wide_rows), lanes)    # one row-stacked block for wide biases
    for i, (name, vec) in enumerate(wide_rows):
        placements[name] = (wrow + i, 0, 1, vec.shape[1])

    buf = jnp.zeros((next_row, lanes), dt)
    for name, arr in list(e.items()) + wide_rows:
        row, col, r, c = placements[name]
        buf = buf.at[row:row + r, col:col + c].set(jnp.asarray(arr, dt))
    return buf, placements


# ---------------------------------------------------------------------------
# Kernel
# ---------------------------------------------------------------------------
def _make_kernel(offsets):
    def kernel(text_ref, ac_ref, vi_ref, p_ref, out_ref):
        bblk, s, d = text_ref.shape
        _, la, da = ac_ref.shape
        _, lv, _ = vi_ref.shape
        m = bblk * s                                  # batch folded into matmul M

        def P(name):
            row, col, r, c = offsets[name]
            blk = p_ref[row:row + r, :]               # full-lane, row-offset load
            if col == 0 and c == p_ref.shape[1]:
                return blk
            return blk[:, col:col + c]                # static lane slice (value level)

        def dotf(a, b):                               # f32 accumulation on the MXU
            return jnp.dot(a.astype(COMPUTE_DTYPE), b.astype(COMPUTE_DTYPE),
                           preferred_element_type=jnp.float32)

        text2 = text_ref[...].astype(COMPUTE_DTYPE).reshape(m, d)   # cast once

        def caa(x2, ctx2, e, pfx):
            # q = k = v = x2 (M, e); context ctx2 (M, c); weights pre-transposed.
            key_ctx = dotf(ctx2, P(pfx + "_ukT"))     # (M, e)
            val_ctx = dotf(ctx2, P(pfx + "_uvT"))     # (M, e)
            wlam = P(pfx + "_wlam")                   # (e, 4): w1_k | w1_v | w2_k | w2_v
            lam_x = dotf(x2, wlam[:, 0:2])            # fused x-side lambda matmul
            lam_k = jax.nn.sigmoid(lam_x[:, 0:1] + dotf(key_ctx, wlam[:, 2:3]))
            lam_v = jax.nn.sigmoid(lam_x[:, 1:2] + dotf(val_ctx, wlam[:, 3:4]))
            x2f = x2.astype(jnp.float32)
            k_cap = x2f + lam_k * (key_ctx - x2f)     # == (1-l)*x + l*ctx, one mul fewer
            v_cap = x2f + lam_v * (val_ctx - x2f)
            # single-head nn.MultiheadAttention (bias=True, batch_first)
            q_p = dotf(x2, P(pfx + "_wqT")) + P(pfx + "_bq")
            k_p = dotf(k_cap, P(pfx + "_wkT")) + P(pfx + "_bk")
            v_p = dotf(v_cap, P(pfx + "_wvT")) + P(pfx + "_bv")
            q3 = q_p.reshape(bblk, s, e).astype(COMPUTE_DTYPE)
            k3 = k_p.reshape(bblk, s, e).astype(COMPUTE_DTYPE)
            v3 = v_p.reshape(bblk, s, e).astype(COMPUTE_DTYPE)
            scores = jnp.einsum("bqe,bke->bqk", q3, k3,
                                preferred_element_type=jnp.float32)
            scores = scores * (1.0 / float(e) ** 0.5)
            scores = scores - jnp.max(scores, axis=-1, keepdims=True)
            probs = jnp.exp(scores)
            probs = probs / jnp.sum(probs, axis=-1, keepdims=True)   # exact softmax
            attn = jnp.einsum("bqk,bke->bqe", probs.astype(COMPUTE_DTYPE), v3,
                              preferred_element_type=jnp.float32)
            return dotf(attn.reshape(m, e), P(pfx + "_outT")) + P(pfx + "_outb")

        # ---- acoustic branch: x = W_at @ acoustic (batched), context = text ----
        ac = ac_ref[...].astype(COMPUTE_DTYPE)                        # (Bb, LA, DA)
        w_at = jnp.broadcast_to(P("w_at").astype(COMPUTE_DTYPE), (bblk, s, la))
        ac_ctx2 = jnp.einsum("bsl,bld->bsd", w_at, ac,
                             preferred_element_type=jnp.float32).reshape(m, da)
        audio_attn = caa(ac_ctx2, text2, da, "a")                     # (M, DA)
        audio_out = dotf(audio_attn, P("cdT")) + P("cd_b")            # (M, D)

        # ---- visual branch: x = text, context = W_vt @ visual (batched) ----
        vi = vi_ref[...].astype(COMPUTE_DTYPE)                        # (Bb, LV, DV)
        w_vt = jnp.broadcast_to(P("w_vt").astype(COMPUTE_DTYPE), (bblk, s, lv))
        vi_ctx2 = jnp.einsum("bsl,bld->bsd", w_vt, vi,
                             preferred_element_type=jnp.float32).reshape(m, d)
        video_out = caa(text2, vi_ctx2, d, "v")                       # (M, D)

        # ---- gating + residual + LayerNorm ----
        weight_a = jax.nn.sigmoid(dotf(audio_out, P("ag_wa")) +
                                  dotf(text2, P("ag_wt")) + P("ag_b"))
        weight_v = jax.nn.sigmoid(dotf(video_out, P("vg_wa")) +
                                  dotf(text2, P("vg_wt")) + P("vg_b"))
        text2f = text2.astype(jnp.float32)
        fused = text2f + weight_a * audio_out + weight_v * video_out
        mu = jnp.mean(fused, axis=-1, keepdims=True)
        var = jnp.mean(jnp.square(fused - mu), axis=-1, keepdims=True)
        normed = (fused - mu) * jax.lax.rsqrt(var + 1e-5)
        result = normed * P("ln_g").astype(jnp.float32) + P("ln_b").astype(jnp.float32)
        out_ref[...] = result.reshape(bblk, s, d).astype(out_ref.dtype)

    return kernel


# ---------------------------------------------------------------------------
# Wrapper
# ---------------------------------------------------------------------------
def maf_tav_pallas(text, acoustic, visual, packed, offsets, *, block_b=None):
    b, s, d = text.shape
    la, da = acoustic.shape[1:]
    lv, dv = visual.shape[1:]
    if block_b is None:
        # Default: a single grid step (block_b = B).  v5e/v6e have one
        # TensorCore, and at these small dims even v7x has too few per-step
        # rows (block_b*S) to amortize the ~0.35us/step overhead of a split.
        # At production dims (S=480, D=768, DV=2048) pass block_b explicitly:
        # ~1 on v7x (64 MiB VMEM), 2-3 on v5e/v6e (128 MiB), keeping >=2
        # parallel steps on v7x so both TCs stay busy.
        block_b = b
    assert b % block_b == 0
    nblk = b // block_b

    kernel = _make_kernel(offsets)
    return pl.pallas_call(
        kernel,
        out_shape=jax.ShapeDtypeStruct((b, s, d), jnp.float32),
        grid=(nblk,),
        in_specs=[
            pl.BlockSpec((block_b, s, d), lambda i: (i, 0, 0)),
            pl.BlockSpec((block_b, la, da), lambda i: (i, 0, 0)),
            pl.BlockSpec((block_b, lv, dv), lambda i: (i, 0, 0)),
            # Single packed parameter buffer; its block index is grid-invariant
            # so it is fetched once and reused across steps.  (With nblk > 1 at
            # production dims this spec can be single-buffered via
            # pipeline_mode=pl.Buffered(1) to save one param-sized VMEM copy.)
            pl.BlockSpec(packed.shape, lambda i: (0, 0)),
        ],
        out_specs=pl.BlockSpec((block_b, s, d), lambda i: (i, 0, 0)),
        compiler_params=pltpu.CompilerParams(
            dimension_semantics=("parallel",),
            vmem_limit_bytes=48 * 1024 * 1024),
    )(text, acoustic, visual, packed)


# ---------------------------------------------------------------------------
# Parameters (PyTorch layout) + pure-JAX reference
# ---------------------------------------------------------------------------
def init_params(key):
    D, DA, DV = DIM_MODEL, ACOUSTIC_DIM, VISUAL_DIM
    S, LA, LV = SOURCE_MAX_LEN, ACOUSTIC_MAX_LEN, VISUAL_MAX_LEN
    keys = iter(jax.random.split(key, 32))

    def w(shape, scale=0.08):
        return scale * jax.random.normal(next(keys), shape, dtype=jnp.float32)

    p = {}
    p["w_at"] = w((S, LA))            # acoustic_context_transform (out, in), no bias
    p["w_vt"] = w((S, LV))            # visual_context_transform
    # acoustic ContextAwareAttention: dim_model=DA, dim_context=D
    p["a_uk"] = w((DA, D))
    p["a_uv"] = w((DA, D))
    p["a_w"] = w((4, DA))             # rows: w1_k, w2_k, w1_v, w2_v
    p["a_in_w"] = w((3 * DA, DA))     # MHA in_proj (q|k|v)
    p["a_in_b"] = w((1, 3 * DA))
    p["a_out_w"] = w((DA, DA))
    p["a_out_b"] = w((1, DA))
    # visual ContextAwareAttention: dim_model=D, dim_context=DV
    p["v_uk"] = w((D, DV))
    p["v_uv"] = w((D, DV))
    p["v_w"] = w((4, D))
    p["v_in_w"] = w((3 * D, D))
    p["v_in_b"] = w((1, 3 * D))
    p["v_out_w"] = w((D, D))
    p["v_out_b"] = w((1, D))
    p["cd_w"] = w((D, DA))            # correct_dim
    p["cd_b"] = w((1, D))
    p["ag_w"] = w((D, 2 * D))         # acoustic_gate
    p["ag_b"] = w((1, D))
    p["vg_w"] = w((D, 2 * D))         # visual_gate
    p["vg_b"] = w((1, D))
    p["ln_g"] = jnp.ones((1, D), jnp.float32)
    p["ln_b"] = jnp.zeros((1, D), jnp.float32)
    return p


def maf_tav_reference(text, acoustic, visual, p):
    """Pure-JAX reference mirroring the PyTorch forward exactly."""
    def caa(x, ctx, uk, uv, w4, in_w, in_b, out_w, out_b):
        e = x.shape[-1]
        key_ctx = ctx @ uk.T
        val_ctx = ctx @ uv.T
        lam_k = jax.nn.sigmoid(jnp.sum(x * w4[0], -1, keepdims=True)
                               + jnp.sum(key_ctx * w4[1], -1, keepdims=True))
        lam_v = jax.nn.sigmoid(jnp.sum(x * w4[2], -1, keepdims=True)
                               + jnp.sum(val_ctx * w4[3], -1, keepdims=True))
        k_cap = (1 - lam_k) * x + lam_k * key_ctx
        v_cap = (1 - lam_v) * x + lam_v * val_ctx
        q = x @ in_w[:e].T + in_b[0, :e]
        k = k_cap @ in_w[e:2 * e].T + in_b[0, e:2 * e]
        v = v_cap @ in_w[2 * e:].T + in_b[0, 2 * e:]
        pr = jax.nn.softmax((q @ k.T) / (float(e) ** 0.5), axis=-1)
        return (pr @ v) @ out_w.T + out_b[0]

    def single(t, ac, vi):
        ac_ctx = p["w_at"] @ ac
        audio = caa(ac_ctx, t, p["a_uk"], p["a_uv"], p["a_w"],
                    p["a_in_w"], p["a_in_b"], p["a_out_w"], p["a_out_b"])
        audio = audio @ p["cd_w"].T + p["cd_b"][0]
        vi_ctx = p["w_vt"] @ vi
        video = caa(t, vi_ctx, p["v_uk"], p["v_uv"], p["v_w"],
                    p["v_in_w"], p["v_in_b"], p["v_out_w"], p["v_out_b"])
        d = t.shape[-1]
        wa = jax.nn.sigmoid(audio @ p["ag_w"][:, :d].T + t @ p["ag_w"][:, d:].T + p["ag_b"][0])
        wv = jax.nn.sigmoid(video @ p["vg_w"][:, :d].T + t @ p["vg_w"][:, d:].T + p["vg_b"][0])
        fused = t + wa * audio + wv * video
        mu = jnp.mean(fused, -1, keepdims=True)
        var = jnp.mean((fused - mu) ** 2, -1, keepdims=True)
        return (fused - mu) * jax.lax.rsqrt(var + 1e-5) * p["ln_g"][0] + p["ln_b"][0]

    return jax.vmap(single)(text, acoustic, visual)


if __name__ == "__main__":
    key = jax.random.PRNGKey(0)
    k1, k2, k3, kp = jax.random.split(key, 4)
    B = 4
    text = jax.random.normal(k1, (B, SOURCE_MAX_LEN, DIM_MODEL), jnp.float32)
    acoustic = jax.random.normal(k2, (B, ACOUSTIC_MAX_LEN, ACOUSTIC_DIM), jnp.float32)
    visual = jax.random.normal(k3, (B, VISUAL_MAX_LEN, VISUAL_DIM), jnp.float32)

    params = init_params(kp)
    packed, offsets = pack_params(params)

    run = jax.jit(functools.partial(maf_tav_pallas, offsets=offsets))
    out = jax.block_until_ready(run(text, acoustic, visual, packed))

    with jax.default_matmul_precision("float32"):
        ref = maf_tav_reference(text, acoustic, visual, params)
    max_diff = float(jnp.max(jnp.abs(out - ref)))
    assert out.shape == (B, SOURCE_MAX_LEN, DIM_MODEL)
    # Exact softmax + f32 compute: remaining difference is only matmul
    # pass-count (MXU f32 multi-pass vs XLA), so this is far tighter than the
    # previous 5e-2 bound while staying robust.
    assert max_diff < 2e-2, f"mismatch vs reference: {max_diff}"
    print("KERNEL_OK")
</pallas_src>

<mosaic_0001>
module attributes {stable_mosaic.version = 11 : i64} {
  func.func @kernel(%arg0: i32, %arg1: memref<4x16x128xf32, #tpu.memory_space<vmem>>, %arg2: memref<4x24x32xf32, #tpu.memory_space<vmem>>, %arg3: memref<4x8x128xf32, #tpu.memory_space<vmem>>, %arg4: memref<1544x128xf32, #tpu.memory_space<vmem>>, %arg5: memref<4x16x128xf32, #tpu.memory_space<vmem>>) attributes {dimension_semantics = [#tpu.dimension_semantics<parallel>], iteration_bounds = array<i64: 1>, scalar_prefetch = 0 : i64, scratch_operands = 0 : i64, tpu.core_type = #tpu.core_type<tc>, window_params = [{transform_indices = @transform_0, window_bounds = array<i64: 4, 16, 128>}, {transform_indices = @transform_1, window_bounds = array<i64: 4, 24, 32>}, {transform_indices = @transform_2, window_bounds = array<i64: 4, 8, 128>}, {pipeline_mode = #tpu.pipeline_mode<synchronous>, transform_indices = @transform_3, window_bounds = array<i64: 1544, 128>}, {transform_indices = @transform_4, window_bounds = array<i64: 4, 16, 128>}]} {
    %c0 = arith.constant 0 : index
    %c0_0 = arith.constant 0 : index
    %c0_1 = arith.constant 0 : index
    %0 = vector.load %arg1[%c0, %c0_0, %c0_1] : memref<4x16x128xf32, #tpu.memory_space<vmem>>, vector<4x16x128xf32>
    %1 = vector.shape_cast %0 : vector<4x16x128xf32> to vector<64x128xf32>
    %c0_2 = arith.constant 0 : index
    %c0_3 = arith.constant 0 : index
    %c0_4 = arith.constant 0 : index
    %2 = vector.load %arg2[%c0_2, %c0_3, %c0_4] : memref<4x24x32xf32, #tpu.memory_space<vmem>>, vector<4x24x32xf32>
    %c0_5 = arith.constant 0 : index
    %c0_6 = arith.constant 0 : index
    %3 = vector.load %arg4[%c0_5, %c0_6] : memref<1544x128xf32, #tpu.memory_space<vmem>>, vector<16x128xf32>
    %4 = vector.extract_strided_slice %3 {offsets = [0, 0], sizes = [16, 24], strides = [1, 1]} : vector<16x128xf32> to vector<16x24xf32>
    %5 = vector.shape_cast %4 : vector<16x24xf32> to vector<1x16x24xf32>
    %6 = vector.broadcast %5 : vector<1x16x24xf32> to vector<4x16x24xf32>
    "tpu.trace_start"() <{level = 10 : i32, message = "bsl,bld->bsd"}> : () -> ()
    %cst = arith.constant dense<0.000000e+00> : vector<4x16x32xf32>
    %7 = tpu.matmul %6, %2, %cst {dimension_numbers = #tpu.dot_dimension_numbers<[2], [1], [1], [2], [0, 0, 0, 1, 1, 2], [0], [0]>} : vector<4x16x24xf32>, vector<4x24x32xf32>, vector<4x16x32xf32> -> vector<4x16x32xf32>
    "tpu.trace_stop"() : () -> ()
    %8 = vector.shape_cast %7 : vector<4x16x32xf32> to vector<64x32xf32>
    %c16 = arith.constant 16 : index
    %c0_7 = arith.constant 0 : index
    %9 = vector.load %arg4[%c16, %c0_7] : memref<1544x128xf32, #tpu.memory_space<vmem>>, vector<128x128xf32>
    %10 = vector.extract_strided_slice %9 {offsets = [0, 0], sizes = [128, 32], strides = [1, 1]} : vector<128x128xf32> to vector<128x32xf32>
    %cst_8 = arith.constant dense<0.000000e+00> : vector<64x32xf32>
    %11 = tpu.matmul %1, %10, %cst_8 {dimension_numbers = #tpu.dot_dimension_numbers<[1], [0], [0], [1], [0, 0, 1, 1], [], []>} : vector<64x128xf32>, vector<128x32xf32>, vector<64x32xf32> -> vector<64x32xf32>
    %c16_9 = arith.constant 16 : index
    %c0_10 = arith.constant 0 : index
    %12 = vector.load %arg4[%c16_9, %c0_10] : memref<1544x128xf32, #tpu.memory_space<vmem>>, vector<128x128xf32>
    %13 = vector.extract_strided_slice %12 {offsets = [0, 32], sizes = [128, 32], strides = [1, 1]} : vector<128x128xf32> to vector<128x32xf32>
    %cst_11 = arith.constant dense<0.000000e+00> : vector<64x32xf32>
    %14 = tpu.matmul %1, %13, %cst_11 {dimension_numbers = #tpu.dot_dimension_numbers<[1], [0], [0], [1], [0, 0, 1, 1], [], []>} : vector<64x128xf32>, vector<128x32xf32>, vector<64x32xf32> -> vector<64x32xf32>
    %c144 = arith.constant 144 : index
    %c0_12 = arith.constant 0 : index
    %15 = vector.load %arg4[%c144, %c0_12] : memref<1544x128xf32, #tpu.memory_space<vmem>>, vector<32x128xf32>
    %16 = vector.extract_strided_slice %15 {offsets = [0, 0], sizes = [32, 4], strides = [1, 1]} : vector<32x128xf32> to vector<32x4xf32>
    %17 = vector.extract_strided_slice %16 {offsets = [0, 0], sizes = [32, 2], strides = [1, 1]} : vector<32x4xf32> to vector<32x2xf32>
    %cst_13 = arith.constant dense<0.000000e+00> : vector<64x2xf32>
    %18 = tpu.matmul %8, %17, %cst_13 {dimension_numbers = #tpu.dot_dimension_numbers<[1], [0], [0], [1], [0, 0, 1, 1], [], []>} : vector<64x32xf32>, vector<32x2xf32>, vector<64x2xf32> -> vector<64x2xf32>
    %19 = vector.extract_strided_slice %18 {offsets = [0, 0], sizes = [64, 1], strides = [1, 1]} : vector<64x2xf32> to vector<64x1xf32>
    %20 = vector.extract_strided_slice %16 {offsets = [0, 2], sizes = [32, 1], strides = [1, 1]} : vector<32x4xf32> to vector<32x1xf32>
    %cst_14 = arith.constant dense<0.000000e+00> : vector<64x1xf32>
    %21 = tpu.matmul %11, %20, %cst_14 {dimension_numbers = #tpu.dot_dimension_numbers<[1], [0], [0], [1], [0, 0, 1, 1], [], []>} : vector<64x32xf32>, vector<32x1xf32>, vector<64x1xf32> -> vector<64x1xf32>
    %22 = arith.addf %19, %21 : vector<64x1xf32>
    %23 = arith.negf %22 : vector<64x1xf32>
    %24 = math.exp %23 : vector<64x1xf32>
    %cst_15 = arith.constant 1.000000e+00 : f32
    %25 = vector.broadcast %cst_15 : f32 to vector<64x1xf32>
    %26 = arith.addf %25, %24 : vector<64x1xf32>
    %27 = arith.divf %25, %26 : vector<64x1xf32>
    %28 = vector.extract_strided_slice %18 {offsets = [0, 1], sizes = [64, 1], strides = [1, 1]} : vector<64x2xf32> to vector<64x1xf32>
    %29 = vector.extract_strided_slice %16 {offsets = [0, 3], sizes = [32, 1], strides = [1, 1]} : vector<32x4xf32> to vector<32x1xf32>
    %cst_16 = arith.constant dense<0.000000e+00> : vector<64x1xf32>
    %30 = tpu.matmul %14, %29, %cst_16 {dimension_numbers = #tpu.dot_dimension_numbers<[1], [0], [0], [1], [0, 0, 1, 1], [], []>} : vector<64x32xf32>, vector<32x1xf32>, vector<64x1xf32> -> vector<64x1xf32>
    %31 = arith.addf %28, %30 : vector<64x1xf32>
    %32 = arith.negf %31 : vector<64x1xf32>
    %33 = math.exp %32 : vector<64x1xf32>
    %cst_17 = arith.constant 1.000000e+00 : f32
    %34 = vector.broadcast %cst_17 : f32 to vector<64x1xf32>
    %35 = arith.addf %34, %33 : vector<64x1xf32>
    %36 = arith.divf %34, %35 : vector<64x1xf32>
    %37 = arith.subf %11, %8 : vector<64x32xf32>
    %38 = vector.broadcast %27 : vector<64x1xf32> to vector<64x32xf32>
    %39 = arith.mulf %38, %37 : vector<64x32xf32>
    %40 = arith.addf %8, %39 : vector<64x32xf32>
    %41 = arith.subf %14, %8 : vector<64x32xf32>
    %42 = vector.broadcast %36 : vector<64x1xf32> to vector<64x32xf32>
    %43 = arith.mulf %42, %41 : vector<64x32xf32>
    %44 = arith.addf %8, %43 : vector<64x32xf32>
    %c144_18 = arith.constant 144 : index
    %c0_19 = arith.constant 0 : index
    %45 = vector.load %arg4[%c144_18, %c0_19] : memref<1544x128xf32, #tpu.memory_space<vmem>>, vector<32x128xf32>
    %46 = vector.extract_strided_slice %45 {offsets = [0, 8], sizes = [32, 32], strides = [1, 1]} : vector<32x128xf32> to vector<32x32xf32>
    %cst_20 = arith.constant dense<0.000000e+00> : vector<64x32xf32>
    %47 = tpu.matmul %8, %46, %cst_20 {dimension_numbers = #tpu.dot_dimension_numbers<[1], [0], [0], [1], [0, 0, 1, 1], [], []>} : vector<64x32xf32>, vector<32x32xf32>, vector<64x32xf32> -> vector<64x32xf32>
    %c208 = arith.constant 208 : index
    %c0_21 = arith.constant 0 : index
    %48 = vector.load %arg4[%c208, %c0_21] : memref<1544x128xf32, #tpu.memory_space<vmem>>, vector<1x128xf32>
    %49 = vector.extract_strided_slice %48 {offsets = [0, 0], sizes = [1, 32], strides = [1, 1]} : vector<1x128xf32> to vector<1x32xf32>
    %50 = vector.broadcast %49 : vector<1x32xf32> to vector<64x32xf32>
    %51 = arith.addf %47, %50 : vector<64x32xf32>
    %c144_22 = arith.constant 144 : index
    %c0_23 = arith.constant 0 : index
    %52 = vector.load %arg4[%c144_22, %c0_23] : memref<1544x128xf32, #tpu.memory_space<vmem>>, vector<32x128xf32>
    %53 = vector.extract_strided_slice %52 {offsets = [0, 40], sizes = [32, 32], strides = [1, 1]} : vector<32x128xf32> to vector<32x32xf32>
    %cst_24 = arith.constant dense<0.000000e+00> : vector<64x32xf32>
    %54 = tpu.matmul %40, %53, %cst_24 {dimension_numbers = #tpu.dot_dimension_numbers<[1], [0], [0], [1], [0, 0, 1, 1], [], []>} : vector<64x32xf32>, vector<32x32xf32>, vector<64x32xf32> -> vector<64x32xf32>
    %c208_25 = arith.constant 208 : index
    %c0_26 = arith.constant 0 : index
    %55 = vector.load %arg4[%c208_25, %c0_26] : memref<1544x128xf32, #tpu.memory_space<vmem>>, vector<1x128xf32>
    %56 = vector.extract_strided_slice %55 {offsets = [0, 32], sizes = [1, 32], strides = [1, 1]} : vector<1x128xf32> to vector<1x32xf32>
    %57 = vector.broadcast %56 : vector<1x32xf32> to vector<64x32xf32>
    %58 = arith.addf %54, %57 : vector<64x32xf32>
    %c144_27 = arith.constant 144 : index
    %c0_28 = arith.constant 0 : index
    %59 = vector.load %arg4[%c144_27, %c0_28] : memref<1544x128xf32, #tpu.memory_space<vmem>>, vector<32x128xf32>
    %60 = vector.extract_strided_slice %59 {offsets = [0, 72], sizes = [32, 32], strides = [1, 1]} : vector<32x128xf32> to vector<32x32xf32>
    %cst_29 = arith.constant dense<0.000000e+00> : vector<64x32xf32>
    %61 = tpu.matmul %44, %60, %cst_29 {dimension_numbers = #tpu.dot_dimension_numbers<[1], [0], [0], [1], [0, 0, 1, 1], [], []>} : vector<64x32xf32>, vector<32x32xf32>, vector<64x32xf32> -> vector<64x32xf32>
    %c208_30 = arith.constant 208 : index
    %c0_31 = arith.constant 0 : index
    %62 = vector.load %arg4[%c208_30, %c0_31] : memref<1544x128xf32, #tpu.memory_space<vmem>>, vector<1x128xf32>
    %63 = vector.extract_strided_slice %62 {offsets = [0, 64], sizes = [1, 32], strides = [1, 1]} : vector<1x128xf32> to vector<1x32xf32>
    %64 = vector.broadcast %63 : vector<1x32xf32> to vector<64x32xf32>
    %65 = arith.addf %61, %64 : vector<64x32xf32>
    %66 = vector.shape_cast %51 : vector<64x32xf32> to vector<4x16x32xf32>
    %67 = vector.shape_cast %58 : vector<64x32xf32> to vector<4x16x32xf32>
    %68 = vector.shape_cast %65 : vector<64x32xf32> to vector<4x16x32xf32>
    "tpu.trace_start"() <{level = 10 : i32, message = "bqe,bke->bqk"}> : () -> ()
    %cst_32 = arith.constant dense<0.000000e+00> : vector<4x16x16xf32>
    %69 = tpu.matmul %66, %67, %cst_32 {dimension_numbers = #tpu.dot_dimension_numbers<[2], [2], [1], [1], [0, 0, 0, 1, 1, 1], [0], [0]>} : vector<4x16x32xf32>, vector<4x16x32xf32>, vector<4x16x16xf32> -> vector<4x16x16xf32>
    "tpu.trace_stop"() : () -> ()
    %cst_33 = arith.constant 0.176776692 : f32
    %70 = vector.broadcast %cst_33 : f32 to vector<4x16x16xf32>
    %71 = arith.mulf %69, %70 : vector<4x16x16xf32>
    %cst_34 = arith.constant dense<0xFF800000> : vector<4x16xf32>
    %72 = vector.multi_reduction <maximumf>, %71, %cst_34 [2] : vector<4x16x16xf32> to vector<4x16xf32>
    %73 = vector.shape_cast %72 : vector<4x16xf32> to vector<4x16x1xf32>
    %74 = vector.broadcast %73 : vector<4x16x1xf32> to vector<4x16x16xf32>
    %75 = arith.subf %71, %74 : vector<4x16x16xf32>
    %76 = math.exp %75 : vector<4x16x16xf32>
    %cst_35 = arith.constant dense<0.000000e+00> : vector<4x16xf32>
    %77 = vector.multi_reduction <add>, %76, %cst_35 [2] : vector<4x16x16xf32> to vector<4x16xf32>
    %78 = vector.shape_cast %77 : vector<4x16xf32> to vector<4x16x1xf32>
    %79 = vector.broadcast %78 : vector<4x16x1xf32> to vector<4x16x16xf32>
    %80 = arith.divf %76, %79 : vector<4x16x16xf32>
    "tpu.trace_start"() <{level = 10 : i32, message = "bqk,bke->bqe"}> : () -> ()
    %cst_36 = arith.constant dense<0.000000e+00> : vector<4x16x32xf32>
    %81 = tpu.matmul %80, %68, %cst_36 {dimension_numbers = #tpu.dot_dimension_numbers<[2], [1], [1], [2], [0, 0, 0, 1, 1, 2], [0], [0]>} : vector<4x16x16xf32>, vector<4x16x32xf32>, vector<4x16x32xf32> -> vector<4x16x32xf32>
    "tpu.trace_stop"() : () -> ()
    %82 = vector.shape_cast %81 : vector<4x16x32xf32> to vector<64x32xf32>
    %c176 = arith.constant 176 : index
    %c0_37 = arith.constant 0 : index
    %83 = vector.load %arg4[%c176, %c0_37] : memref<1544x128xf32, #tpu.memory_space<vmem>>, vector<32x128xf32>
    %84 = vector.extract_strided_slice %83 {offsets = [0, 0], sizes = [32, 32], strides = [1, 1]} : vector<32x128xf32> to vector<32x32xf32>
    %cst_38 = arith.constant dense<0.000000e+00> : vector<64x32xf32>
    %85 = tpu.matmul %82, %84, %cst_38 {dimension_numbers = #tpu.dot_dimension_numbers<[1], [0], [0], [1], [0, 0, 1, 1], [], []>} : vector<64x32xf32>, vector<32x32xf32>, vector<64x32xf32> -> vector<64x32xf32>
    %c208_39 = arith.constant 208 : index
    %c0_40 = arith.constant 0 : index
    %86 = vector.load %arg4[%c208_39, %c0_40] : memref<1544x128xf32, #tpu.memory_space<vmem>>, vector<1x128xf32>
    %87 = vector.extract_strided_slice %86 {offsets = [0, 96], sizes = [1, 32], strides = [1, 1]} : vector<1x128xf32> to vector<1x32xf32>
    %88 = vector.broadcast %87 : vector<1x32xf32> to vector<64x32xf32>
    %89 = arith.addf %85, %88 : vector<64x32xf32>
    %c984 = arith.constant 984 : index
    %c0_41 = arith.constant 0 : index
    %90 = vector.load %arg4[%c984, %c0_41] : memref<1544x128xf32, #tpu.memory_space<vmem>>, vector<32x128xf32>
    %cst_42 = arith.constant dense<0.000000e+00> : vector<64x128xf32>
    %91 = tpu.matmul %89, %90, %cst_42 {dimension_numbers = #tpu.dot_dimension_numbers<[1], [0], [0], [1], [0, 0, 1, 1], [], []>} : vector<64x32xf32>, vector<32x128xf32>, vector<64x128xf32> -> vector<64x128xf32>
    %c1532 = arith.constant 1532 : index
    %c0_43 = arith.constant 0 : index
    %92 = vector.load %arg4[%c1532, %c0_43] : memref<1544x128xf32, #tpu.memory_space<vmem>>, vector<1x128xf32>
    %93 = vector.broadcast %92 : vector<1x128xf32> to vector<64x128xf32>
    %94 = arith.addf %91, %93 : vector<64x128xf32>
    %c0_44 = arith.constant 0 : index
    %c0_45 = arith.constant 0 : index
    %c0_46 = arith.constant 0 : index
    %95 = vector.load %arg3[%c0_44, %c0_45, %c0_46] : memref<4x8x128xf32, #tpu.memory_space<vmem>>, vector<4x8x128xf32>
    %c0_47 = arith.constant 0 : index
    %c0_48 = arith.constant 0 : index
    %96 = vector.load %arg4[%c0_47, %c0_48] : memref<1544x128xf32, #tpu.memory_space<vmem>>, vector<16x128xf32>
    %97 = vector.extract_strided_slice %96 {offsets = [0, 24], sizes = [16, 8], strides = [1, 1]} : vector<16x128xf32> to vector<16x8xf32>
    %98 = vector.shape_cast %97 : vector<16x8xf32> to vector<1x16x8xf32>
    %99 = vector.broadcast %98 : vector<1x16x8xf32> to vector<4x16x8xf32>
    "tpu.trace_start"() <{level = 10 : i32, message = "bsl,bld->bsd"}> : () -> ()
    %cst_49 = arith.constant dense<0.000000e+00> : vector<4x16x128xf32>
    %100 = tpu.matmul %99, %95, %cst_49 {dimension_numbers = #tpu.dot_dimension_numbers<[2], [1], [1], [2], [0, 0, 0, 1, 1, 2], [0], [0]>} : vector<4x16x8xf32>, vector<4x8x128xf32>, vector<4x16x128xf32> -> vector<4x16x128xf32>
    "tpu.trace_stop"() : () -> ()
    %101 = vector.shape_cast %100 : vector<4x16x128xf32> to vector<64x128xf32>
    %c216 = arith.constant 216 : index
    %c0_50 = arith.constant 0 : index
    %102 = vector.load %arg4[%c216, %c0_50] : memref<1544x128xf32, #tpu.memory_space<vmem>>, vector<128x128xf32>
    %cst_51 = arith.constant dense<0.000000e+00> : vector<64x128xf32>
    %103 = tpu.matmul %101, %102, %cst_51 {dimension_numbers = #tpu.dot_dimension_numbers<[1], [0], [0], [1], [0, 0, 1, 1], [], []>} : vector<64x128xf32>, vector<128x128xf32>, vector<64x128xf32> -> vector<64x128xf32>
    %c344 = arith.constant 344 : index
    %c0_52 = arith.constant 0 : index
    %104 = vector.load %arg4[%c344, %c0_52] : memref<1544x128xf32, #tpu.memory_space<vmem>>, vector<128x128xf32>
    %cst_53 = arith.constant dense<0.000000e+00> : vector<64x128xf32>
    %105 = tpu.matmul %101, %104, %cst_53 {dimension_numbers = #tpu.dot_dimension_numbers<[1], [0], [0], [1], [0, 0, 1, 1], [], []>} : vector<64x128xf32>, vector<128x128xf32>, vector<64x128xf32> -> vector<64x128xf32>
    %c16_54 = arith.constant 16 : index
    %c0_55 = arith.constant 0 : index
    %106 = vector.load %arg4[%c16_54, %c0_55] : memref<1544x128xf32, #tpu.memory_space<vmem>>, vector<128x128xf32>
    %107 = vector.extract_strided_slice %106 {offsets = [0, 64], sizes = [128, 4], strides = [1, 1]} : vector<128x128xf32> to vector<128x4xf32>
    %108 = vector.extract_strided_slice %107 {offsets = [0, 0], sizes = [128, 2], strides = [1, 1]} : vector<128x4xf32> to vector<128x2xf32>
    %cst_56 = arith.constant dense<0.000000e+00> : vector<64x2xf32>
    %109 = tpu.matmul %1, %108, %cst_56 {dimension_numbers = #tpu.dot_dimension_numbers<[1], [0], [0], [1], [0, 0, 1, 1], [], []>} : vector<64x128xf32>, vector<128x2xf32>, vector<64x2xf32> -> vector<64x2xf32>
    %110 = vector.extract_strided_slice %109 {offsets = [0, 0], sizes = [64, 1], strides = [1, 1]} : vector<64x2xf32> to vector<64x1xf32>
    %111 = vector.extract_strided_slice %107 {offsets = [0, 2], sizes = [128, 1], strides = [1, 1]} : vector<128x4xf32> to vector<128x1xf32>
    %cst_57 = arith.constant dense<0.000000e+00> : vector<64x1xf32>
    %112 = tpu.matmul %103, %111, %cst_57 {dimension_numbers = #tpu.dot_dimension_numbers<[1], [0], [0], [1], [0, 0, 1, 1], [], []>} : vector<64x128xf32>, vector<128x1xf32>, vector<64x1xf32> -> vector<64x1xf32>
    %113 = arith.addf %110, %112 : vector<64x1xf32>
    %114 = arith.negf %113 : vector<64x1xf32>
    %115 = math.exp %114 : vector<64x1xf32>
    %cst_58 = arith.constant 1.000000e+00 : f32
    %116 = vector.broadcast %cst_58 : f32 to vector<64x1xf32>
    %117 = arith.addf %116, %115 : vector<64x1xf32>
    %118 = arith.divf %116, %117 : vector<64x1xf32>
    %119 = vector.extract_strided_slice %109 {offsets = [0, 1], sizes = [64, 1], strides = [1, 1]} : vector<64x2xf32> to vector<64x1xf32>
    %120 = vector.extract_strided_slice %107 {offsets = [0, 3], sizes = [128, 1], strides = [1, 1]} : vector<128x4xf32> to vector<128x1xf32>
    %cst_59 = arith.constant dense<0.000000e+00> : vector<64x1xf32>
    %121 = tpu.matmul %105, %120, %cst_59 {dimension_numbers = #tpu.dot_dimension_numbers<[1], [0], [0], [1], [0, 0, 1, 1], [], []>} : vector<64x128xf32>, vector<128x1xf32>, vector<64x1xf32> -> vector<64x1xf32>
    %122 = arith.addf %119, %121 : vector<64x1xf32>
    %123 = arith.negf %122 : vector<64x1xf32>
    %124 = math.exp %123 : vector<64x1xf32>
    %cst_60 = arith.constant 1.000000e+00 : f32
    %125 = vector.broadcast %cst_60 : f32 to vector<64x1xf32>
    %126 = arith.addf %125, %124 : vector<64x1xf32>
    %127 = arith.divf %125, %126 : vector<64x1xf32>
    %128 = arith.subf %103, %1 : vector<64x128xf32>
    %129 = vector.broadcast %118 : vector<64x1xf32> to vector<64x128xf32>
    %130 = arith.mulf %129, %128 : vector<64x128xf32>
    %131 = arith.addf %1, %130 : vector<64x128xf32>
    %132 = arith.subf %105, %1 : vector<64x128xf32>
    %133 = vector.broadcast %127 : vector<64x1xf32> to vector<64x128xf32>
    %134 = arith.mulf %133, %132 : vector<64x128xf32>
    %135 = arith.addf %1, %134 : vector<64x128xf32>
    %c472 = arith.constant 472 : index
    %c0_61 = arith.constant 0 : index
    %136 = vector.load %arg4[%c472, %c0_61] : memref<1544x128xf32, #tpu.memory_space<vmem>>, vector<128x128xf32>
    %cst_62 = arith.constant dense<0.000000e+00> : vector<64x128xf32>
    %137 = tpu.matmul %1, %136, %cst_62 {dimension_numbers = #tpu.dot_dimension_numbers<[1], [0], [0], [1], [0, 0, 1, 1], [], []>} : vector<64x128xf32>, vector<128x128xf32>, vector<64x128xf32> -> vector<64x128xf32>
    %c1528 = arith.constant 1528 : index
    %c0_63 = arith.constant 0 : index
    %138 = vector.load %arg4[%c1528, %c0_63] : memref<1544x128xf32, #tpu.memory_space<vmem>>, vector<1x128xf32>
    %139 = vector.broadcast %138 : vector<1x128xf32> to vector<64x128xf32>
    %140 = arith.addf %137, %139 : vector<64x128xf32>
    %c600 = arith.constant 600 : index
    %c0_64 = arith.constant 0 : index
    %141 = vector.load %arg4[%c600, %c0_64] : memref<1544x128xf32, #tpu.memory_space<vmem>>, vector<128x128xf32>
    %cst_65 = arith.constant dense<0.000000e+00> : vector<64x128xf32>
    %142 = tpu.matmul %131, %141, %cst_65 {dimension_numbers = #tpu.dot_dimension_numbers<[1], [0], [0], [1], [0, 0, 1, 1], [], []>} : vector<64x128xf32>, vector<128x128xf32>, vector<64x128xf32> -> vector<64x128xf32>
    %c1529 = arith.constant 1529 : index
    %c0_66 = arith.constant 0 : index
    %143 = vector.load %arg4[%c1529, %c0_66] : memref<1544x128xf32, #tpu.memory_space<vmem>>, vector<1x128xf32>
    %144 = vector.broadcast %143 : vector<1x128xf32> to vector<64x128xf32>
    %145 = arith.addf %142, %144 : vector<64x128xf32>
    %c728 = arith.constant 728 : index
    %c0_67 = arith.constant 0 : index
    %146 = vector.load %arg4[%c728, %c0_67] : memref<1544x128xf32, #tpu.memory_space<vmem>>, vector<128x128xf32>
    %cst_68 = arith.constant dense<0.000000e+00> : vector<64x128xf32>
    %147 = tpu.matmul %135, %146, %cst_68 {dimension_numbers = #tpu.dot_dimension_numbers<[1], [0], [0], [1], [0, 0, 1, 1], [], []>} : vector<64x128xf32>, vector<128x128xf32>, vector<64x128xf32> -> vector<64x128xf32>
    %c1530 = arith.constant 1530 : index
    %c0_69 = arith.constant 0 : index
    %148 = vector.load %arg4[%c1530, %c0_69] : memref<1544x128xf32, #tpu.memory_space<vmem>>, vector<1x128xf32>
    %149 = vector.broadcast %148 : vector<1x128xf32> to vector<64x128xf32>
    %150 = arith.addf %147, %149 : vector<64x128xf32>
    %151 = vector.shape_cast %140 : vector<64x128xf32> to vector<4x16x128xf32>
    %152 = vector.shape_cast %145 : vector<64x128xf32> to vector<4x16x128xf32>
    %153 = vector.shape_cast %150 : vector<64x128xf32> to vector<4x16x128xf32>
    "tpu.trace_start"() <{level = 10 : i32, message = "bqe,bke->bqk"}> : () -> ()
    %cst_70 = arith.constant dense<0.000000e+00> : vector<4x16x16xf32>
    %154 = tpu.matmul %151, %152, %cst_70 {dimension_numbers = #tpu.dot_dimension_numbers<[2], [2], [1], [1], [0, 0, 0, 1, 1, 1], [0], [0]>} : vector<4x16x128xf32>, vector<4x16x128xf32>, vector<4x16x16xf32> -> vector<4x16x16xf32>
    "tpu.trace_stop"() : () -> ()
    %cst_71 = arith.constant 0.0883883461 : f32
    %155 = vector.broadcast %cst_71 : f32 to vector<4x16x16xf32>
    %156 = arith.mulf %154, %155 : vector<4x16x16xf32>
    %cst_72 = arith.constant dense<0xFF800000> : vector<4x16xf32>
    %157 = vector.multi_reduction <maximumf>, %156, %cst_72 [2] : vector<4x16x16xf32> to vector<4x16xf32>
    %158 = vector.shape_cast %157 : vector<4x16xf32> to vector<4x16x1xf32>
    %159 = vector.broadcast %158 : vector<4x16x1xf32> to vector<4x16x16xf32>
    %160 = arith.subf %156, %159 : vector<4x16x16xf32>
    %161 = math.exp %160 : vector<4x16x16xf32>
    %cst_73 = arith.constant dense<0.000000e+00> : vector<4x16xf32>
    %162 = vector.multi_reduction <add>, %161, %cst_73 [2] : vector<4x16x16xf32> to vector<4x16xf32>
    %163 = vector.shape_cast %162 : vector<4x16xf32> to vector<4x16x1xf32>
    %164 = vector.broadcast %163 : vector<4x16x1xf32> to vector<4x16x16xf32>
    %165 = arith.divf %161, %164 : vector<4x16x16xf32>
    "tpu.trace_start"() <{level = 10 : i32, message = "bqk,bke->bqe"}> : () -> ()
    %cst_74 = arith.constant dense<0.000000e+00> : vector<4x16x128xf32>
    %166 = tpu.matmul %165, %153, %cst_74 {dimension_numbers = #tpu.dot_dimension_numbers<[2], [1], [1], [2], [0, 0, 0, 1, 1, 2], [0], [0]>} : vector<4x16x16xf32>, vector<4x16x128xf32>, vector<4x16x128xf32> -> vector<4x16x128xf32>
    "tpu.trace_stop"() : () -> ()
    %167 = vector.shape_cast %166 : vector<4x16x128xf32> to vector<64x128xf32>
    %c856 = arith.constant 856 : index
    %c0_75 = arith.constant 0 : index
    %168 = vector.load %arg4[%c856, %c0_75] : memref<1544x128xf32, #tpu.memory_space<vmem>>, vector<128x128xf32>
    %cst_76 = arith.constant dense<0.000000e+00> : vector<64x128xf32>
    %169 = tpu.matmul %167, %168, %cst_76 {dimension_numbers = #tpu.dot_dimension_numbers<[1], [0], [0], [1], [0, 0, 1, 1], [], []>} : vector<64x128xf32>, vector<128x128xf32>, vector<64x128xf32> -> vector<64x128xf32>
    %c1531 = arith.constant 1531 : index
    %c0_77 = arith.constant 0 : index
    %170 = vector.load %arg4[%c1531, %c0_77] : memref<1544x128xf32, #tpu.memory_space<vmem>>, vector<1x128xf32>
    %171 = vector.broadcast %170 : vector<1x128xf32> to vector<64x128xf32>
    %172 = arith.addf %169, %171 : vector<64x128xf32>
    %c1016 = arith.constant 1016 : index
    %c0_78 = arith.constant 0 : index
    %173 = vector.load %arg4[%c1016, %c0_78] : memref<1544x128xf32, #tpu.memory_space<vmem>>, vector<128x128xf32>
    %cst_79 = arith.constant dense<0.000000e+00> : vector<64x128xf32>
    %174 = tpu.matmul %94, %173, %cst_79 {dimension_numbers = #tpu.dot_dimension_numbers<[1], [0], [0], [1], [0, 0, 1, 1], [], []>} : vector<64x128xf32>, vector<128x128xf32>, vector<64x128xf32> -> vector<64x128xf32>
    %c1144 = arith.constant 1144 : index
    %c0_80 = arith.constant 0 : index
    %175 = vector.load %arg4[%c1144, %c0_80] : memref<1544x128xf32, #tpu.memory_space<vmem>>, vector<128x128xf32>
    %cst_81 = arith.constant dense<0.000000e+00> : vector<64x128xf32>
    %176 = tpu.matmul %1, %175, %cst_81 {dimension_numbers = #tpu.dot_dimension_numbers<[1], [0], [0], [1], [0, 0, 1, 1], [], []>} : vector<64x128xf32>, vector<128x128xf32>, vector<64x128xf32> -> vector<64x128xf32>
    %177 = arith.addf %174, %176 : vector<64x128xf32>
    %c1533 = arith.constant 1533 : index
    %c0_82 = arith.constant 0 : index
    %178 = vector.load %arg4[%c1533, %c0_82] : memref<1544x128xf32, #tpu.memory_space<vmem>>, vector<1x128xf32>
    %179 = vector.broadcast %178 : vector<1x128xf32> to vector<64x128xf32>
    %180 = arith.addf %177, %179 : vector<64x128xf32>
    %181 = arith.negf %180 : vector<64x128xf32>
    %182 = math.exp %181 : vector<64x128xf32>
    %cst_83 = arith.constant 1.000000e+00 : f32
    %183 = vector.broadcast %cst_83 : f32 to vector<64x128xf32>
    %184 = arith.addf %183, %182 : vector<64x128xf32>
    %185 = arith.divf %183, %184 : vector<64x128xf32>
    %c1272 = arith.constant 1272 : index
    %c0_84 = arith.constant 0 : index
    %186 = vector.load %arg4[%c1272, %c0_84] : memref<1544x128xf32, #tpu.memory_space<vmem>>, vector<128x128xf32>
    %cst_85 = arith.constant dense<0.000000e+00> : vector<64x128xf32>
    %187 = tpu.matmul %172, %186, %cst_85 {dimension_numbers = #tpu.dot_dimension_numbers<[1], [0], [0], [1], [0, 0, 1, 1], [], []>} : vector<64x128xf32>, vector<128x128xf32>, vector<64x128xf32> -> vector<64x128xf32>
    %c1400 = arith.constant 1400 : index
    %c0_86 = arith.constant 0 : index
    %188 = vector.load %arg4[%c1400, %c0_86] : memref<1544x128xf32, #tpu.memory_space<vmem>>, vector<128x128xf32>
    %cst_87 = arith.constant dense<0.000000e+00> : vector<64x128xf32>
    %189 = tpu.matmul %1, %188, %cst_87 {dimension_numbers = #tpu.dot_dimension_numbers<[1], [0], [0], [1], [0, 0, 1, 1], [], []>} : vector<64x128xf32>, vector<128x128xf32>, vector<64x128xf32> -> vector<64x128xf32>
    %190 = arith.addf %187, %189 : vector<64x128xf32>
    %c1534 = arith.constant 1534 : index
    %c0_88 = arith.constant 0 : index
    %191 = vector.load %arg4[%c1534, %c0_88] : memref<1544x128xf32, #tpu.memory_space<vmem>>, vector<1x128xf32>
    %192 = vector.broadcast %191 : vector<1x128xf32> to vector<64x128xf32>
    %193 = arith.addf %190, %192 : vector<64x128xf32>
    %194 = arith.negf %193 : vector<64x128xf32>
    %195 = math.exp %194 : vector<64x128xf32>
    %cst_89 = arith.constant 1.000000e+00 : f32
    %196 = vector.broadcast %cst_89 : f32 to vector<64x128xf32>
    %197 = arith.addf %196, %195 : vector<64x128xf32>
    %198 = arith.divf %196, %197 : vector<64x128xf32>
    %199 = arith.mulf %185, %94 : vector<64x128xf32>
    %200 = arith.addf %1, %199 : vector<64x128xf32>
    %201 = arith.mulf %198, %172 : vector<64x128xf32>
    %202 = arith.addf %200, %201 : vector<64x128xf32>
    %cst_90 = arith.constant dense<0.000000e+00> : vector<64xf32>
    %203 = vector.multi_reduction <add>, %202, %cst_90 [1] : vector<64x128xf32> to vector<64xf32>
    %204 = vector.shape_cast %203 : vector<64xf32> to vector<64x1xf32>
    %cst_91 = arith.constant 1.280000e+02 : f32
    %205 = vector.broadcast %cst_91 : f32 to vector<64x1xf32>
    %206 = arith.divf %204, %205 : vector<64x1xf32>
    %207 = vector.broadcast %206 : vector<64x1xf32> to vector<64x128xf32>
    %208 = arith.subf %202, %207 : vector<64x128xf32>
    %209 = arith.mulf %208, %208 : vector<64x128xf32>
    %cst_92 = arith.constant dense<0.000000e+00> : vector<64xf32>
    %210 = vector.multi_reduction <add>, %209, %cst_92 [1] : vector<64x128xf32> to vector<64xf32>
    %211 = vector.shape_cast %210 : vector<64xf32> to vector<64x1xf32>
    %cst_93 = arith.constant 1.280000e+02 : f32
    %212 = vector.broadcast %cst_93 : f32 to vector<64x1xf32>
    %213 = arith.divf %211, %212 : vector<64x1xf32>
    %214 = vector.broadcast %206 : vector<64x1xf32> to vector<64x128xf32>
    %215 = arith.subf %202, %214 : vector<64x128xf32>
    %cst_94 = arith.constant 9.99999974E-6 : f32
    %216 = vector.broadcast %cst_94 : f32 to vector<64x1xf32>
    %217 = arith.addf %213, %216 : vector<64x1xf32>
    %218 = math.rsqrt %217 : vector<64x1xf32>
    %219 = vector.broadcast %218 : vector<64x1xf32> to vector<64x128xf32>
    %220 = arith.mulf %215, %219 : vector<64x128xf32>
    %c1535 = arith.constant 1535 : index
    %c0_95 = arith.constant 0 : index
    %221 = vector.load %arg4[%c1535, %c0_95] : memref<1544x128xf32, #tpu.memory_space<vmem>>, vector<1x128xf32>
    %222 = vector.broadcast %221 : vector<1x128xf32> to vector<64x128xf32>
    %223 = arith.mulf %220, %222 : vector<64x128xf32>
    %c1536 = arith.constant 1536 : index
    %c0_96 = arith.constant 0 : index
    %224 = vector.load %arg4[%c1536, %c0_96] : memref<1544x128xf32, #tpu.memory_space<vmem>>, vector<1x128xf32>
    %225 = vector.broadcast %224 : vector<1x128xf32> to vector<64x128xf32>
    %226 = arith.addf %223, %225 : vector<64x128xf32>
    %227 = vector.shape_cast %226 : vector<64x128xf32> to vector<4x16x128xf32>
    %c0_97 = arith.constant 0 : index
    %c0_98 = arith.constant 0 : index
    %c0_99 = arith.constant 0 : index
    %228 = vector.load %arg5[%c0_97, %c0_98, %c0_99] : memref<4x16x128xf32, #tpu.memory_space<vmem>>, vector<4x16x128xf32>
    tpu.vector_store %arg5[%c0_97, %c0_98, %c0_99], %227 {strides = array<i32>} : memref<4x16x128xf32, #tpu.memory_space<vmem>>, vector<4x16x128xf32>,
    return
  }
  func.func @transform_0(%arg0: i32) -> (i32, i32, i32) {
    %c0_i32 = arith.constant 0 : i32
    %c0_i32_0 = arith.constant 0 : i32
    %c0_i32_1 = arith.constant 0 : i32
    return %arg0, %c0_i32, %c0_i32_0 : i32, i32, i32
  }
  func.func @transform_1(%arg0: i32) -> (i32, i32, i32) {
    %c0_i32 = arith.constant 0 : i32
    %c0_i32_0 = arith.constant 0 : i32
    %c0_i32_1 = arith.constant 0 : i32
    return %arg0, %c0_i32, %c0_i32_0 : i32, i32, i32
  }
  func.func @transform_2(%arg0: i32) -> (i32, i32, i32) {
    %c0_i32 = arith.constant 0 : i32
    %c0_i32_0 = arith.constant 0 : i32
    %c0_i32_1 = arith.constant 0 : i32
    return %arg0, %c0_i32, %c0_i32_0 : i32, i32, i32
  }
  func.func @transform_3(%arg0: i32) -> (i32, i32) {
    %c0_i32 = arith.constant 0 : i32
    %c0_i32_0 = arith.constant 0 : i32
    %c0_i32_1 = arith.constant 0 : i32
    return %c0_i32, %c0_i32_0 : i32, i32
  }
  func.func @transform_4(%arg0: i32) -> (i32, i32, i32) {
    %c0_i32 = arith.constant 0 : i32
    %c0_i32_0 = arith.constant 0 : i32
    %c0_i32_1 = arith.constant 0 : i32
    return %arg0, %c0_i32, %c0_i32_0 : i32, i32, i32
  }
}

</mosaic_0001>

<llo_original>
// kernel: maf_tav_pallas.1
$region0: #{maf_tav_pallas.1}
  #allocation0 [shape = 'u32[]', space=smem, size = 0x4, offset = 0x4, fixed_abs, tag = 'smem constant byte address 0x4 - core index']
  #allocation1 [shape = 'u32[72,128]{1,0:T(1,128)}', space=vmem, size = 0x9000, scoped, tag = 'internal scratch']
  %s0 = inlined_call_operand.hbm [shape: f32[4,16,128], index: 0, kind: input, shape index: {}]
  %s1 = inlined_call_operand.hbm [shape: f32[4,24,32], index: 1, kind: input, shape index: {}]
  %s2 = inlined_call_operand.hbm [shape: f32[4,8,128], index: 2, kind: input, shape index: {}]
  %s3 = inlined_call_operand.hbm [shape: f32[1544,128], index: 3, kind: input, shape index: {}]
  %s4 = inlined_call_operand.hbm [shape: f32[4,16,128], index: 4, kind: output, shape index: {}]
  %s5 = sld [smem:[#allocation0]]
  $region42: #{maf_tav_pallas.1} parent=0
    _
  %s7 = ssub.s32 1, %s5
  %s8 = scalar_select 0, %s7, %s5
  $region1: #{maf_tav_pallas.1} parent=0
    #allocation2 [shape = 'u8[32768]{0}', space=vmem, size = 0x8000, scoped, tag = 'input window, operand 0, single buffered']
    #allocation3 [shape = 's32[1]{0}', space=sflag, size = 0x4, scoped, tag = 'scoped memory for maf_tav_pallas.1']
    #allocation4 [shape = 's32[1]{0}', space=sflag, size = 0x4, scoped, tag = 'scoped memory for maf_tav_pallas.1']
    #allocation5 [shape = 'u8[49152]{0}', space=vmem, size = 0xc000, scoped, tag = 'input window, operand 1, single buffered']
    #allocation6 [shape = 's32[1]{0}', space=sflag, size = 0x4, scoped, tag = 'scoped memory for maf_tav_pallas.1']
    #allocation7 [shape = 'u8[16384]{0}', space=vmem, size = 0x4000, scoped, tag = 'input window, operand 2, single buffered']
    #allocation8 [shape = 'u8[790528]{0}', space=vmem, size = 0xc1000, scoped, tag = 'input window, operand 3, single buffered']
    #allocation9 [shape = 's32[1]{0}', space=sflag, size = 0x4, scoped, tag = 'scoped memory for maf_tav_pallas.1']
    #allocation10 [shape = 'u8[32768]{0}', space=vmem, size = 0x8000, scoped, tag = 'output window, operand 0, single buffered']
    %9 = vsyncpa [#allocation3], 0
    %10 = vsyncpa [#allocation6], 0
    %11 = vsyncpa [#allocation9], 0
    %12 = vsyncpa [#allocation4], 0
    // Predicated region
    $region2: #{maf_tav_pallas.1} parent=1 // pred_check
      _
    $region3: #{maf_tav_pallas.1} parent=1 // pred_check_branch
      %14 = sbr.rel (0) target = $region5
    $region4: #{maf_tav_pallas.1} parent=1 // pred_region
      %16 = vsyncadd [#allocation3], 0
      %s17 = sshll.u32 %s0, 4
      %s18 = int_to_ptr.hbm [resolvable:$true] %s17
      %s19 = sshll.u32 [#allocation2], 4
      %s20 = int_to_ptr.vmem [resolvable:$true] %s19
      %25 = dma.hbm_to_vmem [thread:$0]  %s18, 1024, %s20, [#allocation3], 128, 128, 8
    $region5: #{maf_tav_pallas.1} parent=1 // pred_fallthru
      _
    // Predicated region
    $region6: #{maf_tav_pallas.1} parent=1 // pred_check
      _
    $region7: #{maf_tav_pallas.1} parent=1 // pred_check_branch
      %27 = sbr.rel (0) target = $region9
    $region8: #{maf_tav_pallas.1} parent=1 // pred_region
      %29 = vsyncadd [#allocation6], 0
      %s30 = sshll.u32 %s1, 4
      %s31 = int_to_ptr.hbm [resolvable:$true] %s30
      %s32 = sshll.u32 [#allocation5], 4
      %s33 = int_to_ptr.vmem [resolvable:$true] %s32
      %38 = dma.hbm_to_vmem [thread:$0]  %s31, 1536, %s33, [#allocation6], 128, 128, 8
    $region9: #{maf_tav_pallas.1} parent=1 // pred_fallthru
      _
    // Predicated region
    $region10: #{maf_tav_pallas.1} parent=1 // pred_check
      _
    $region11: #{maf_tav_pallas.1} parent=1 // pred_check_branch
      %40 = sbr.rel (0) target = $region13
    $region12: #{maf_tav_pallas.1} parent=1 // pred_region
      %42 = vsyncadd [#allocation6], 0
      %s43 = sshll.u32 %s2, 4
      %s44 = int_to_ptr.hbm [resolvable:$true] %s43
      %s45 = sshll.u32 [#allocation7], 4
      %s46 = int_to_ptr.vmem [resolvable:$true] %s45
      %51 = dma.hbm_to_vmem [thread:$0]  %s44, 512, %s46, [#allocation6], 128, 128, 8
    $region13: #{maf_tav_pallas.1} parent=1 // pred_fallthru
      _
    // Predicated region
    $region14: #{maf_tav_pallas.1} parent=1 // pred_check
      _
    $region15: #{maf_tav_pallas.1} parent=1 // pred_check_branch
      %53 = sbr.rel (0) target = $region17
    $region16: #{maf_tav_pallas.1} parent=1 // pred_region
      %55 = vsyncadd [#allocation9], 0
      %s56 = sshll.u32 %s3, 4
      %s57 = int_to_ptr.hbm [resolvable:$true] %s56
      %s58 = sshll.u32 [#allocation8], 4
      %s59 = int_to_ptr.vmem [resolvable:$true] %s58
      %64 = dma.hbm_to_vmem [thread:$0]  %s57, 24704, %s59, [#allocation9], 128, 128, 8
    $region17: #{maf_tav_pallas.1} parent=1 // pred_fallthru
      _
    // Predicated region
    $region18: #{maf_tav_pallas.1} parent=1 // pred_check
      _
    $region19: #{maf_tav_pallas.1} parent=1 // pred_check_branch
      %66 = sbr.rel (0) target = $region21
    $region20: #{maf_tav_pallas.1} parent=1 // pred_region
      %68 = dma.done [#allocation3], 1024
    $region21: #{maf_tav_pallas.1} parent=1 // pred_fallthru
      _
    // Predicated region
    $region22: #{maf_tav_pallas.1} parent=1 // pred_check
      _
    $region23: #{maf_tav_pallas.1} parent=1 // pred_check_branch
      %70 = sbr.rel (0) target = $region25
    $region24: #{maf_tav_pallas.1} parent=1 // pred_region
      %72 = dma.done [#allocation6], 1536
    $region25: #{maf_tav_pallas.1} parent=1 // pred_fallthru
      _
    // Predicated region
    $region26: #{maf_tav_pallas.1} parent=1 // pred_check
      _
    $region27: #{maf_tav_pallas.1} parent=1 // pred_check_branch
      %74 = sbr.rel (0) target = $region29
    $region28: #{maf_tav_pallas.1} parent=1 // pred_region
      %76 = dma.done [#allocation6], 512
    $region29: #{maf_tav_pallas.1} parent=1 // pred_fallthru
      _
    // Predicated region
    $region30: #{maf_tav_pallas.1} parent=1 // pred_check
      _
    $region31: #{maf_tav_pallas.1} parent=1 // pred_check_branch
      %78 = sbr.rel (0) target = $region33
    $region32: #{maf_tav_pallas.1} parent=1 // pred_region
      %80 = dma.done [#allocation9], 24704
    $region33: #{maf_tav_pallas.1} parent=1 // pred_fallthru
      _
    %v81 = vld [vmem:[#allocation2] sm:$0xff]
    %v82 = vld [vmem:[#allocation2 + $0x8] sm:$0xff]
    %v83 = vld [vmem:[#allocation2 + $0x10] sm:$0xff]
    %v84 = vld [vmem:[#allocation2 + $0x18] sm:$0xff]
    %v85 = vld [vmem:[#allocation2 + $0x20] sm:$0xff]
    %v86 = vld [vmem:[#allocation2 + $0x28] sm:$0xff]
    %v87 = vld [vmem:[#allocation2 + $0x30] sm:$0xff]
    %v88 = vld [vmem:[#allocation2 + $0x38] sm:$0xff]
    %v89 = vld [vmem:[#allocation5] sm:$0xff]
    %v90 = vld [vmem:[#allocation5 + $0x8] sm:$0xff]
    %v91 = vld [vmem:[#allocation5 + $0x10] sm:$0xff]
    %v92 = vld [vmem:[#allocation5 + $0x18] sm:$0xff]
    %v93 = vld [vmem:[#allocation5 + $0x20] sm:$0xff]
    %v94 = vld [vmem:[#allocation5 + $0x28] sm:$0xff]
    %v95 = vld [vmem:[#allocation5 + $0x30] sm:$0xff]
    %v96 = vld [vmem:[#allocation5 + $0x38] sm:$0xff]
    %v97 = vld [vmem:[#allocation5 + $0x40] sm:$0xff]
    %v98 = vld [vmem:[#allocation5 + $0x48] sm:$0xff]
    %v99 = vld [vmem:[#allocation5 + $0x50] sm:$0xff]
    %v100 = vld [vmem:[#allocation5 + $0x58] sm:$0xff]
    %v101 = vld [vmem:[#allocation8] sm:$0xff]
    %v102 = vld [vmem:[#allocation8 + $0x8] sm:$0xff]
    %vm103 = vcmask 195584
    %v105 = vsel %vm103, %v101, 0
    %v108 = vsel %vm103, %v102, 0
    %110 = vmatpush.msra.mxu0 0.0
    %111 = vmatpush.msra.mxu0 0.0
    %112 = vmatpush.msra.mxu0 0.0
    %113 = vmatpush.msra.mxu0 0.0
    %114 = vmatpush.msra.mxu0 0.0
    %115 = vmatpush.msra.mxu0 0.0
    %116 = vmatpush.msra.mxu0 0.0
    %117 = vmatpush.msra.mxu0 0.0
    %118 = vmatpush.msra.mxu0 0.0
    %119 = vmatpush.msra.mxu0 0.0
    %120 = vmatpush.msra.mxu0 0.0
    %121 = vmatpush.msra.mxu0 0.0
    %122 = vmatpush.msra.mxu0 0.0
    %123 = vmatpush.msra.mxu0 %v91
    %124 = vmatpush.msra.mxu0 %v90
    %125 = vmatpush.msra.mxu0 %v89
    %126 = vmatmul.f32.gmra.mxu0 %v105
    %v127 = vpop.f32.mrf.mxu0
    %v128 = vadd.f32 0.0, %v127
    %129 = vmatmul.f32.gmra.mxu0 %v108
    %v130 = vpop.f32.mrf.mxu0
    %v131 = vadd.f32 0.0, %v130
    %132 = vdwg.mxu0
    %133 = vmatpush.msra.mxu0 0.0
    %134 = vmatpush.msra.mxu0 0.0
    %135 = vmatpush.msra.mxu0 0.0
    %136 = vmatpush.msra.mxu0 0.0
    %137 = vmatpush.msra.mxu0 0.0
    %138 = vmatpush.msra.mxu0 0.0
    %139 = vmatpush.msra.mxu0 0.0
    %140 = vmatpush.msra.mxu0 0.0
    %141 = vmatpush.msra.mxu0 0.0
    %142 = vmatpush.msra.mxu0 0.0
    %143 = vmatpush.msra.mxu0 0.0
    %144 = vmatpush.msra.mxu0 0.0
    %145 = vmatpush.msra.mxu0 0.0
    %146 = vmatpush.msra.mxu0 %v94
    %147 = vmatpush.msra.mxu0 %v93
    %148 = vmatpush.msra.mxu0 %v92
    %149 = vmatmul.f32.gmra.mxu0 %v105
    %v150 = vpop.f32.mrf.mxu0
    %v151 = vadd.f32 0.0, %v150
    %152 = vmatmul.f32.gmra.mxu0 %v108
    %v153 = vpop.f32.mrf.mxu0
    %v154 = vadd.f32 0.0, %v153
    %155 = vdwg.mxu0
    %156 = vmatpush.msra.mxu0 0.0
    %157 = vmatpush.msra.mxu0 0.0
    %158 = vmatpush.msra.mxu0 0.0
    %159 = vmatpush.msra.mxu0 0.0
    %160 = vmatpush.msra.mxu0 0.0
    %161 = vmatpush.msra.mxu0 0.0
    %162 = vmatpush.msra.mxu0 0.0
    %163 = vmatpush.msra.mxu0 0.0
    %164 = vmatpush.msra.mxu0 0.0
    %165 = vmatpush.msra.mxu0 0.0
    %166 = vmatpush.msra.mxu0 0.0
    %167 = vmatpush.msra.mxu0 0.0
    %168 = vmatpush.msra.mxu0 0.0
    %169 = vmatpush.msra.mxu0 %v97
    %170 = vmatpush.msra.mxu0 %v96
    %171 = vmatpush.msra.mxu0 %v95
    %172 = vmatmul.f32.gmra.mxu0 %v105
    %v173 = vpop.f32.mrf.mxu0
    %v174 = vadd.f32 0.0, %v173
    %175 = vmatmul.f32.gmra.mxu0 %v108
    %v176 = vpop.f32.mrf.mxu0
    %v177 = vadd.f32 0.0, %v176
    %178 = vdwg.mxu0
    %179 = vmatpush.msra.mxu0 0.0
    %180 = vmatpush.msra.mxu0 0.0
    %181 = vmatpush.msra.mxu0 0.0
    %182 = vmatpush.msra.mxu0 0.0
    %183 = vmatpush.msra.mxu0 0.0
    %184 = vmatpush.msra.mxu0 0.0
    %185 = vmatpush.msra.mxu0 0.0
    %186 = vmatpush.msra.mxu0 0.0
    %187 = vmatpush.msra.mxu0 0.0
    %188 = vmatpush.msra.mxu0 0.0
    %189 = vmatpush.msra.mxu0 0.0
    %190 = vmatpush.msra.mxu0 0.0
    %191 = vmatpush.msra.mxu0 0.0
    %192 = vmatpush.msra.mxu0 %v100
    %193 = vmatpush.msra.mxu0 %v99
    %194 = vmatpush.msra.mxu0 %v98
    %195 = vmatmul.f32.gmra.mxu0 %v105
    %v196 = vpop.f32.mrf.mxu0
    %v197 = vadd.f32 0.0, %v196
    %198 = vmatmul.f32.gmra.mxu0 %v108
    %v199 = vpop.f32.mrf.mxu0
    %v200 = vadd.f32 0.0, %v199
    %201 = vdwg.mxu0
    %v202 = vld [vmem:[#allocation8 + $0x10] sm:$0xff]
    %v203 = vld [vmem:[#allocation8 + $0x18] sm:$0xff]
    %v204 = vld [vmem:[#allocation8 + $0x20] sm:$0xff]
    %v205 = vld [vmem:[#allocation8 + $0x28] sm:$0xff]
    %v206 = vld [vmem:[#allocation8 + $0x30] sm:$0xff]
    %v207 = vld [vmem:[#allocation8 + $0x38] sm:$0xff]
    %v208 = vld [vmem:[#allocation8 + $0x40] sm:$0xff]
    %v209 = vld [vmem:[#allocation8 + $0x48] sm:$0xff]
    %v210 = vld [vmem:[#allocation8 + $0x50] sm:$0xff]
    %v211 = vld [vmem:[#allocation8 + $0x58] sm:$0xff]
    %v212 = vld [vmem:[#allocation8 + $0x60] sm:$0xff]
    %v213 = vld [vmem:[#allocation8 + $0x68] sm:$0xff]
    %v214 = vld [vmem:[#allocation8 + $0x70] sm:$0xff]
    %v215 = vld [vmem:[#allocation8 + $0x78] sm:$0xff]
    %v216 = vld [vmem:[#allocation8 + $0x80] sm:$0xff]
    %v217 = vld [vmem:[#allocation8 + $0x88] sm:$0xff]
    %218 = vmatpush.msra.mxu0 %v217
    %219 = vmatpush.msra.mxu0 %v216
    %220 = vmatpush.msra.mxu0 %v215
    %221 = vmatpush.msra.mxu0 %v214
    %222 = vmatpush.msra.mxu0 %v213
    %223 = vmatpush.msra.mxu0 %v212
    %224 = vmatpush.msra.mxu0 %v211
    %225 = vmatpush.msra.mxu0 %v210
    %226 = vmatpush.msra.mxu0 %v209
    %227 = vmatpush.msra.mxu0 %v208
    %228 = vmatpush.msra.mxu0 %v207
    %229 = vmatpush.msra.mxu0 %v206
    %230 = vmatpush.msra.mxu0 %v205
    %231 = vmatpush.msra.mxu0 %v204
    %232 = vmatpush.msra.mxu0 %v203
    %233 = vmatpush.msra.mxu0 %v202
    %234 = vmatmul.f32.gmra.mxu0 %v81
    %v235 = vpop.f32.mrf.mxu0
    %v236 = vadd.f32 0.0, %v235
    %237 = vmatmul.f32.gmra.mxu0 %v82
    %v238 = vpop.f32.mrf.mxu0
    %v239 = vadd.f32 0.0, %v238
    %240 = vmatmul.f32.gmra.mxu0 %v83
    %v241 = vpop.f32.mrf.mxu0
    %v242 = vadd.f32 0.0, %v241
    %243 = vmatmul.f32.gmra.mxu0 %v84
    %v244 = vpop.f32.mrf.mxu0
    %v245 = vadd.f32 0.0, %v244
    %246 = vmatmul.f32.gmra.mxu0 %v85
    %v247 = vpop.f32.mrf.mxu0
    %v248 = vadd.f32 0.0, %v247
    %249 = vmatmul.f32.gmra.mxu0 %v86
    %v250 = vpop.f32.mrf.mxu0
    %v251 = vadd.f32 0.0, %v250
    %252 = vmatmul.f32.gmra.mxu0 %v87
    %v253 = vpop.f32.mrf.mxu0
    %v254 = vadd.f32 0.0, %v253
    %255 = vmatmul.f32.gmra.mxu0 %v88
    %v256 = vpop.f32.mrf.mxu0
    %v257 = vadd.f32 0.0, %v256
    %258 = vdwg.mxu0
    %275 = vrot.lane.b32.xlu0 %v202, 96
    %v276 = vpop.permute.xlu0 %275
    %277 = vrot.lane.b32.xlu0 %v203, 96
    %v278 = vpop.permute.xlu0 %277
    %279 = vrot.lane.b32.xlu0 %v204, 96
    %v280 = vpop.permute.xlu0 %279
    %281 = vrot.lane.b32.xlu0 %v205, 96
    %v282 = vpop.permute.xlu0 %281
    %283 = vrot.lane.b32.xlu0 %v206, 96
    %v284 = vpop.permute.xlu0 %283
    %285 = vrot.lane.b32.xlu0 %v207, 96
    %v286 = vpop.permute.xlu0 %285
    %287 = vrot.lane.b32.xlu0 %v208, 96
    %v288 = vpop.permute.xlu0 %287
    %289 = vrot.lane.b32.xlu0 %v209, 96
    %v290 = vpop.permute.xlu0 %289
    %291 = vrot.lane.b32.xlu0 %v210, 96
    %v292 = vpop.permute.xlu0 %291
    %293 = vrot.lane.b32.xlu0 %v211, 96
    %v294 = vpop.permute.xlu0 %293
    %295 = vrot.lane.b32.xlu0 %v212, 96
    %v296 = vpop.permute.xlu0 %295
    %297 = vrot.lane.b32.xlu0 %v213, 96
    %v298 = vpop.permute.xlu0 %297
    %299 = vrot.lane.b32.xlu0 %v214, 96
    %v300 = vpop.permute.xlu0 %299
    %301 = vrot.lane.b32.xlu0 %v215, 96
    %v302 = vpop.permute.xlu0 %301
    %303 = vrot.lane.b32.xlu0 %v216, 96
    %v304 = vpop.permute.xlu0 %303
    %305 = vrot.lane.b32.xlu0 %v217, 96
    %v306 = vpop.permute.xlu0 %305
    %323 = vmatpush.msra.mxu0 %v306
    %324 = vmatpush.msra.mxu0 %v304
    %325 = vmatpush.msra.mxu0 %v302
    %326 = vmatpush.msra.mxu0 %v300
    %327 = vmatpush.msra.mxu0 %v298
    %328 = vmatpush.msra.mxu0 %v296
    %329 = vmatpush.msra.mxu0 %v294
    %330 = vmatpush.msra.mxu0 %v292
    %331 = vmatpush.msra.mxu0 %v290
    %332 = vmatpush.msra.mxu0 %v288
    %333 = vmatpush.msra.mxu0 %v286
    %334 = vmatpush.msra.mxu0 %v284
    %335 = vmatpush.msra.mxu0 %v282
    %336 = vmatpush.msra.mxu0 %v280
    %337 = vmatpush.msra.mxu0 %v278
    %338 = vmatpush.msra.mxu0 %v276
    %339 = vmatmul.f32.gmra.mxu0 %v81
    %v340 = vpop.f32.mrf.mxu0
    %v341 = vadd.f32 0.0, %v340
    %342 = vmatmul.f32.gmra.mxu0 %v82
    %v343 = vpop.f32.mrf.mxu0
    %v344 = vadd.f32 0.0, %v343
    %345 = vmatmul.f32.gmra.mxu0 %v83
    %v346 = vpop.f32.mrf.mxu0
    %v347 = vadd.f32 0.0, %v346
    %348 = vmatmul.f32.gmra.mxu0 %v84
    %v349 = vpop.f32.mrf.mxu0
    %v350 = vadd.f32 0.0, %v349
    %351 = vmatmul.f32.gmra.mxu0 %v85
    %v352 = vpop.f32.mrf.mxu0
    %v353 = vadd.f32 0.0, %v352
    %354 = vmatmul.f32.gmra.mxu0 %v86
    %v355 = vpop.f32.mrf.mxu0
    %v356 = vadd.f32 0.0, %v355
    %357 = vmatmul.f32.gmra.mxu0 %v87
    %v358 = vpop.f32.mrf.mxu0
    %v359 = vadd.f32 0.0, %v358
    %360 = vmatmul.f32.gmra.mxu0 %v88
    %v361 = vpop.f32.mrf.mxu0
    %v362 = vadd.f32 0.0, %v361
    %363 = vdwg.mxu0
    %v364 = vld [vmem:[#allocation8 + $0x90] sm:$0xff]
    %v365 = vld [vmem:[#allocation8 + $0x98] sm:$0xff]
    %v366 = vld [vmem:[#allocation8 + $0xa0] sm:$0xff]
    %v367 = vld [vmem:[#allocation8 + $0xa8] sm:$0xff]
    %vm368 = vcmask 261120
    %v370 = vsel %vm368, %v128, 0
    %v373 = vsel %vm368, %v131, 0
    %v376 = vsel %vm368, %v151, 0
    %v379 = vsel %vm368, %v154, 0
    %v382 = vsel %vm368, %v174, 0
    %v385 = vsel %vm368, %v177, 0
    %v388 = vsel %vm368, %v197, 0
    %v391 = vsel %vm368, %v200, 0
    %393 = vmatpush.msra.mxu0 0.0
    %394 = vmatpush.msra.mxu0 0.0
    %395 = vmatpush.msra.mxu0 0.0
    %396 = vmatpush.msra.mxu0 0.0
    %397 = vmatpush.msra.mxu0 0.0
    %398 = vmatpush.msra.mxu0 0.0
    %399 = vmatpush.msra.mxu0 0.0
    %400 = vmatpush.msra.mxu0 0.0
    %401 = vmatpush.msra.mxu0 0.0
    %402 = vmatpush.msra.mxu0 0.0
    %403 = vmatpush.msra.mxu0 0.0
    %404 = vmatpush.msra.mxu0 0.0
    %405 = vmatpush.msra.mxu0 %v367
    %406 = vmatpush.msra.mxu0 %v366
    %407 = vmatpush.msra.mxu0 %v365
    %408 = vmatpush.msra.mxu0 %v364
    %409 = vmatmul.f32.gmra.mxu0 %v370
    %v410 = vpop.f32.mrf.mxu0
    %v411 = vadd.f32 0.0, %v410
    %412 = vmatmul.f32.gmra.mxu0 %v373
    %v413 = vpop.f32.mrf.mxu0
    %v414 = vadd.f32 0.0, %v413
    %415 = vmatmul.f32.gmra.mxu0 %v376
    %v416 = vpop.f32.mrf.mxu0
    %v417 = vadd.f32 0.0, %v416
    %418 = vmatmul.f32.gmra.mxu0 %v379
    %v419 = vpop.f32.mrf.mxu0
    %v420 = vadd.f32 0.0, %v419
    %421 = vmatmul.f32.gmra.mxu0 %v382
    %v422 = vpop.f32.mrf.mxu0
    %v423 = vadd.f32 0.0, %v422
    %424 = vmatmul.f32.gmra.mxu0 %v385
    %v425 = vpop.f32.mrf.mxu0
    %v426 = vadd.f32 0.0, %v425
    %427 = vmatmul.f32.gmra.mxu0 %v388
    %v428 = vpop.f32.mrf.mxu0
    %v429 = vadd.f32 0.0, %v428
    %430 = vmatmul.f32.gmra.mxu0 %v391
    %v431 = vpop.f32.mrf.mxu0
    %v432 = vadd.f32 0.0, %v431
    %433 = vdwg.mxu0
    %438 = vrot.lane.b32.xlu0 %v364, 126
    %v439 = vpop.permute.xlu0 %438
    %440 = vrot.lane.b32.xlu0 %v365, 126
    %v441 = vpop.permute.xlu0 %440
    %442 = vrot.lane.b32.xlu0 %v366, 126
    %v443 = vpop.permute.xlu0 %442
    %444 = vrot.lane.b32.xlu0 %v367, 126
    %v445 = vpop.permute.xlu0 %444
    %v451 = vsel %vm368, %v236, 0
    %v454 = vsel %vm368, %v239, 0
    %v457 = vsel %vm368, %v242, 0
    %v460 = vsel %vm368, %v245, 0
    %v463 = vsel %vm368, %v248, 0
    %v466 = vsel %vm368, %v251, 0
    %v469 = vsel %vm368, %v254, 0
    %v472 = vsel %vm368, %v257, 0
    %474 = vmatpush.msra.mxu0 0.0
    %475 = vmatpush.msra.mxu0 0.0
    %476 = vmatpush.msra.mxu0 0.0
    %477 = vmatpush.msra.mxu0 0.0
    %478 = vmatpush.msra.mxu0 0.0
    %479 = vmatpush.msra.mxu0 0.0
    %480 = vmatpush.msra.mxu0 0.0
    %481 = vmatpush.msra.mxu0 0.0
    %482 = vmatpush.msra.mxu0 0.0
    %483 = vmatpush.msra.mxu0 0.0
    %484 = vmatpush.msra.mxu0 0.0
    %485 = vmatpush.msra.mxu0 0.0
    %486 = vmatpush.msra.mxu0 %v445
    %487 = vmatpush.msra.mxu0 %v443
    %488 = vmatpush.msra.mxu0 %v441
    %489 = vmatpush.msra.mxu0 %v439
    %490 = vmatmul.f32.gmra.mxu0 %v451
    %v491 = vpop.f32.mrf.mxu0
    %v492 = vadd.f32 0.0, %v491
    %493 = vmatmul.f32.gmra.mxu0 %v454
    %v494 = vpop.f32.mrf.mxu0
    %v495 = vadd.f32 0.0, %v494
    %496 = vmatmul.f32.gmra.mxu0 %v457
    %v497 = vpop.f32.mrf.mxu0
    %v498 = vadd.f32 0.0, %v497
    %499 = vmatmul.f32.gmra.mxu0 %v460
    %v500 = vpop.f32.mrf.mxu0
    %v501 = vadd.f32 0.0, %v500
    %502 = vmatmul.f32.gmra.mxu0 %v463
    %v503 = vpop.f32.mrf.mxu0
    %v504 = vadd.f32 0.0, %v503
    %505 = vmatmul.f32.gmra.mxu0 %v466
    %v506 = vpop.f32.mrf.mxu0
    %v507 = vadd.f32 0.0, %v506
    %508 = vmatmul.f32.gmra.mxu0 %v469
    %v509 = vpop.f32.mrf.mxu0
    %v510 = vadd.f32 0.0, %v509
    %511 = vmatmul.f32.gmra.mxu0 %v472
    %v512 = vpop.f32.mrf.mxu0
    %v513 = vadd.f32 0.0, %v512
    %514 = vdwg.mxu0
    %v515 = vadd.f32 %v411, %v492
    %v516 = vadd.f32 %v414, %v495
    %v517 = vadd.f32 %v417, %v498
    %v518 = vadd.f32 %v420, %v501
    %v519 = vadd.f32 %v423, %v504
    %v520 = vadd.f32 %v426, %v507
    %v521 = vadd.f32 %v429, %v510
    %v522 = vadd.f32 %v432, %v513
    %v523 = vxor.u32 %v515, 2147483648
    %v524 = vxor.u32 %v516, 2147483648
    %v525 = vxor.u32 %v517, 2147483648
    %v526 = vxor.u32 %v518, 2147483648
    %v527 = vxor.u32 %v519, 2147483648
    %v528 = vxor.u32 %v520, 2147483648
    %v529 = vxor.u32 %v521, 2147483648
    %v530 = vxor.u32 %v522, 2147483648
    %v531 = vmul.f32 %v523, 1.442695
    %v532 = vpow.pop %v531
    %v533 = vmul.f32 %v524, 1.442695
    %v534 = vpow.pop %v533
    %v535 = vmul.f32 %v525, 1.442695
    %v536 = vpow.pop %v535
    %v537 = vmul.f32 %v526, 1.442695
    %v538 = vpow.pop %v537
    %v539 = vmul.f32 %v527, 1.442695
    %v540 = vpow.pop %v539
    %v541 = vmul.f32 %v528, 1.442695
    %v542 = vpow.pop %v541
    %v543 = vmul.f32 %v529, 1.442695
    %v544 = vpow.pop %v543
    %v545 = vmul.f32 %v530, 1.442695
    %v546 = vpow.pop %v545
    %v547 = vadd.f32 %v532, 1.0
    %v548 = vadd.f32 %v534, 1.0
    %v549 = vadd.f32 %v536, 1.0
    %v550 = vadd.f32 %v538, 1.0
    %v551 = vadd.f32 %v540, 1.0
    %v552 = vadd.f32 %v542, 1.0
    %v553 = vadd.f32 %v544, 1.0
    %v554 = vadd.f32 %v546, 1.0
    %v555 = vrcp.pop %v547
    %v556 = vmul.f32 %v547, %v555
    %v557 = vsub.f32 1.0, %v556
    %v558 = vmul.f32 %v555, %v557
    %v559 = vadd.f32 %v555, %v558
    %vm560 = vweird.f32 %v547
    %vm561 = vweird.f32 %v555
    %vm562 = vmor %vm560, %vm561
    %v563 = vsel %vm562, %v555, %v559
    %v564 = vand.u32 2147483647, %v547
    %vm565 = vcmp.eq.f32.partialorder %v564, 8.507059e+37
    %v566 = vand.u32 %v547, 2147483648
    %v567 = vor.u32 1.1754944e-38, %v566
    %v568 = vsel %vm565, %v567, %v563
    %v569 = vmul.f32 1.0, %v568
    %v570 = vrcp.pop %v548
    %v571 = vmul.f32 %v548, %v570
    %v572 = vsub.f32 1.0, %v571
    %v573 = vmul.f32 %v570, %v572
    %v574 = vadd.f32 %v570, %v573
    %vm575 = vweird.f32 %v548
    %vm576 = vweird.f32 %v570
    %vm577 = vmor %vm575, %vm576
    %v578 = vsel %vm577, %v570, %v574
    %v579 = vand.u32 2147483647, %v548
    %vm580 = vcmp.eq.f32.partialorder %v579, 8.507059e+37
    %v581 = vand.u32 %v548, 2147483648
    %v582 = vor.u32 1.1754944e-38, %v581
    %v583 = vsel %vm580, %v582, %v578
    %v584 = vmul.f32 1.0, %v583
    %v585 = vrcp.pop %v549
    %v586 = vmul.f32 %v549, %v585
    %v587 = vsub.f32 1.0, %v586
    %v588 = vmul.f32 %v585, %v587
    %v589 = vadd.f32 %v585, %v588
    %vm590 = vweird.f32 %v549
    %vm591 = vweird.f32 %v585
    %vm592 = vmor %vm590, %vm591
    %v593 = vsel %vm592, %v585, %v589
    %v594 = vand.u32 2147483647, %v549
    %vm595 = vcmp.eq.f32.partialorder %v594, 8.507059e+37
    %v596 = vand.u32 %v549, 2147483648
    %v597 = vor.u32 1.1754944e-38, %v596
    %v598 = vsel %vm595, %v597, %v593
    %v599 = vmul.f32 1.0, %v598
    %v600 = vrcp.pop %v550
    %v601 = vmul.f32 %v550, %v600
    %v602 = vsub.f32 1.0, %v601
    %v603 = vmul.f32 %v600, %v602
    %v604 = vadd.f32 %v600, %v603
    %vm605 = vweird.f32 %v550
    %vm606 = vweird.f32 %v600
    %vm607 = vmor %vm605, %vm606
    %v608 = vsel %vm607, %v600, %v604
    %v609 = vand.u32 2147483647, %v550
    %vm610 = vcmp.eq.f32.partialorder %v609, 8.507059e+37
    %v611 = vand.u32 %v550, 2147483648
    %v612 = vor.u32 1.1754944e-38, %v611
    %v613 = vsel %vm610, %v612, %v608
    %v614 = vmul.f32 1.0, %v613
    %v615 = vrcp.pop %v551
    %v616 = vmul.f32 %v551, %v615
    %v617 = vsub.f32 1.0, %v616
    %v618 = vmul.f32 %v615, %v617
    %v619 = vadd.f32 %v615, %v618
    %vm620 = vweird.f32 %v551
    %vm621 = vweird.f32 %v615
    %vm622 = vmor %vm620, %vm621
    %v623 = vsel %vm622, %v615, %v619
    %v624 = vand.u32 2147483647, %v551
    %vm625 = vcmp.eq.f32.partialorder %v624, 8.507059e+37
    %v626 = vand.u32 %v551, 2147483648
    %v627 = vor.u32 1.1754944e-38, %v626
    %v628 = vsel %vm625, %v627, %v623
    %v629 = vmul.f32 1.0, %v628
    %v630 = vrcp.pop %v552
    %v631 = vmul.f32 %v552, %v630
    %v632 = vsub.f32 1.0, %v631
    %v633 = vmul.f32 %v630, %v632
    %v634 = vadd.f32 %v630, %v633
    %vm635 = vweird.f32 %v552
    %vm636 = vweird.f32 %v630
    %vm637 = vmor %vm635, %vm636
    %v638 = vsel %vm637, %v630, %v634
    %v639 = vand.u32 2147483647, %v552
    %vm640 = vcmp.eq.f32.partialorder %v639, 8.507059e+37
    %v641 = vand.u32 %v552, 2147483648
    %v642 = vor.u32 1.1754944e-38, %v641
    %v643 = vsel %vm640, %v642, %v638
    %v644 = vmul.f32 1.0, %v643
    %v645 = vrcp.pop %v553
    %v646 = vmul.f32 %v553, %v645
    %v647 = vsub.f32 1.0, %v646
    %v648 = vmul.f32 %v645, %v647
    %v649 = vadd.f32 %v645, %v648
    %vm650 = vweird.f32 %v553
    %vm651 = vweird.f32 %v645
    %vm652 = vmor %vm650, %vm651
    %v653 = vsel %vm652, %v645, %v649
    %v654 = vand.u32 2147483647, %v553
    %vm655 = vcmp.eq.f32.partialorder %v654, 8.507059e+37
    %v656 = vand.u32 %v553, 2147483648
    %v657 = vor.u32 1.1754944e-38, %v656
    %v658 = vsel %vm655, %v657, %v653
    %v659 = vmul.f32 1.0, %v658
    %v660 = vrcp.pop %v554
    %v661 = vmul.f32 %v554, %v660
    %v662 = vsub.f32 1.0, %v661
    %v663 = vmul.f32 %v660, %v662
    %v664 = vadd.f32 %v660, %v663
    %vm665 = vweird.f32 %v554
    %vm666 = vweird.f32 %v660
    %vm667 = vmor %vm665, %vm666
    %v668 = vsel %vm667, %v660, %v664
    %v669 = vand.u32 2147483647, %v554
    %vm670 = vcmp.eq.f32.partialorder %v669, 8.507059e+37
    %v671 = vand.u32 %v554, 2147483648
    %v672 = vor.u32 1.1754944e-38, %v671
    %v673 = vsel %vm670, %v672, %v668
    %v674 = vmul.f32 1.0, %v673
    %675 = vrot.lane.b32.xlu0 %v364, 125
    %v676 = vpop.permute.xlu0 %675
    %677 = vrot.lane.b32.xlu0 %v365, 125
    %v678 = vpop.permute.xlu0 %677
    %679 = vrot.lane.b32.xlu0 %v366, 125
    %v680 = vpop.permute.xlu0 %679
    %681 = vrot.lane.b32.xlu0 %v367, 125
    %v682 = vpop.permute.xlu0 %681
    %v688 = vsel %vm368, %v341, 0
    %v691 = vsel %vm368, %v344, 0
    %v694 = vsel %vm368, %v347, 0
    %v697 = vsel %vm368, %v350, 0
    %v700 = vsel %vm368, %v353, 0
    %v703 = vsel %vm368, %v356, 0
    %v706 = vsel %vm368, %v359, 0
    %v709 = vsel %vm368, %v362, 0
    %711 = vmatpush.msra.mxu0 0.0
    %712 = vmatpush.msra.mxu0 0.0
    %713 = vmatpush.msra.mxu0 0.0
    %714 = vmatpush.msra.mxu0 0.0
    %715 = vmatpush.msra.mxu0 0.0
    %716 = vmatpush.msra.mxu0 0.0
    %717 = vmatpush.msra.mxu0 0.0
    %718 = vmatpush.msra.mxu0 0.0
    %719 = vmatpush.msra.mxu0 0.0
    %720 = vmatpush.msra.mxu0 0.0
    %721 = vmatpush.msra.mxu0 0.0
    %722 = vmatpush.msra.mxu0 0.0
    %723 = vmatpush.msra.mxu0 %v682
    %724 = vmatpush.msra.mxu0 %v680
    %725 = vmatpush.msra.mxu0 %v678
    %726 = vmatpush.msra.mxu0 %v676
    %727 = vmatmul.f32.gmra.mxu0 %v688
    %v728 = vpop.f32.mrf.mxu0
    %v729 = vadd.f32 0.0, %v728
    %730 = vmatmul.f32.gmra.mxu0 %v691
    %v731 = vpop.f32.mrf.mxu0
    %v732 = vadd.f32 0.0, %v731
    %733 = vmatmul.f32.gmra.mxu0 %v694
    %v734 = vpop.f32.mrf.mxu0
    %v735 = vadd.f32 0.0, %v734
    %736 = vmatmul.f32.gmra.mxu0 %v697
    %v737 = vpop.f32.mrf.mxu0
    %v738 = vadd.f32 0.0, %v737
    %739 = vmatmul.f32.gmra.mxu0 %v700
    %v740 = vpop.f32.mrf.mxu0
    %v741 = vadd.f32 0.0, %v740
    %742 = vmatmul.f32.gmra.mxu0 %v703
    %v743 = vpop.f32.mrf.mxu0
    %v744 = vadd.f32 0.0, %v743
    %745 = vmatmul.f32.gmra.mxu0 %v706
    %v746 = vpop.f32.mrf.mxu0
    %v747 = vadd.f32 0.0, %v746
    %748 = vmatmul.f32.gmra.mxu0 %v709
    %v749 = vpop.f32.mrf.mxu0
    %v750 = vadd.f32 0.0, %v749
    %751 = vdwg.mxu0
    %760 = vrot.lane.b32.xlu0 %v729, 1
    %v761 = vpop.permute.xlu0 %760
    %762 = vrot.lane.b32.xlu0 %v732, 1
    %v763 = vpop.permute.xlu0 %762
    %764 = vrot.lane.b32.xlu0 %v735, 1
    %v765 = vpop.permute.xlu0 %764
    %766 = vrot.lane.b32.xlu0 %v738, 1
    %v767 = vpop.permute.xlu0 %766
    %768 = vrot.lane.b32.xlu0 %v741, 1
    %v769 = vpop.permute.xlu0 %768
    %770 = vrot.lane.b32.xlu0 %v744, 1
    %v771 = vpop.permute.xlu0 %770
    %772 = vrot.lane.b32.xlu0 %v747, 1
    %v773 = vpop.permute.xlu0 %772
    %774 = vrot.lane.b32.xlu0 %v750, 1
    %v775 = vpop.permute.xlu0 %774
    %v784 = vadd.f32 %v411, %v761
    %v785 = vadd.f32 %v414, %v763
    %v786 = vadd.f32 %v417, %v765
    %v787 = vadd.f32 %v420, %v767
    %v788 = vadd.f32 %v423, %v769
    %v789 = vadd.f32 %v426, %v771
    %v790 = vadd.f32 %v429, %v773
    %v791 = vadd.f32 %v432, %v775
    %v792 = vxor.u32 %v784, 2147483648
    %v793 = vxor.u32 %v785, 2147483648
    %v794 = vxor.u32 %v786, 2147483648
    %v795 = vxor.u32 %v787, 2147483648
    %v796 = vxor.u32 %v788, 2147483648
    %v797 = vxor.u32 %v789, 2147483648
    %v798 = vxor.u32 %v790, 2147483648
    %v799 = vxor.u32 %v791, 2147483648
    %v800 = vmul.f32 %v792, 1.442695
    %v801 = vpow.pop %v800
    %v802 = vmul.f32 %v793, 1.442695
    %v803 = vpow.pop %v802
    %v804 = vmul.f32 %v794, 1.442695
    %v805 = vpow.pop %v804
    %v806 = vmul.f32 %v795, 1.442695
    %v807 = vpow.pop %v806
    %v808 = vmul.f32 %v796, 1.442695
    %v809 = vpow.pop %v808
    %v810 = vmul.f32 %v797, 1.442695
    %v811 = vpow.pop %v810
    %v812 = vmul.f32 %v798, 1.442695
    %v813 = vpow.pop %v812
    %v814 = vmul.f32 %v799, 1.442695
    %v815 = vpow.pop %v814
    %v816 = vadd.f32 %v801, 1.0
    %v817 = vadd.f32 %v803, 1.0
    %v818 = vadd.f32 %v805, 1.0
    %v819 = vadd.f32 %v807, 1.0
    %v820 = vadd.f32 %v809, 1.0
    %v821 = vadd.f32 %v811, 1.0
    %v822 = vadd.f32 %v813, 1.0
    %v823 = vadd.f32 %v815, 1.0
    %v824 = vrcp.pop %v816
    %v825 = vmul.f32 %v816, %v824
    %v826 = vsub.f32 1.0, %v825
    %v827 = vmul.f32 %v824, %v826
    %v828 = vadd.f32 %v824, %v827
    %vm829 = vweird.f32 %v816
    %vm830 = vweird.f32 %v824
    %vm831 = vmor %vm829, %vm830
    %v832 = vsel %vm831, %v824, %v828
    %v833 = vand.u32 2147483647, %v816
    %vm834 = vcmp.eq.f32.partialorder %v833, 8.507059e+37
    %v835 = vand.u32 %v816, 2147483648
    %v836 = vor.u32 1.1754944e-38, %v835
    %v837 = vsel %vm834, %v836, %v832
    %v838 = vmul.f32 1.0, %v837
    %v839 = vrcp.pop %v817
    %v840 = vmul.f32 %v817, %v839
    %v841 = vsub.f32 1.0, %v840
    %v842 = vmul.f32 %v839, %v841
    %v843 = vadd.f32 %v839, %v842
    %vm844 = vweird.f32 %v817
    %vm845 = vweird.f32 %v839
    %vm846 = vmor %vm844, %vm845
    %v847 = vsel %vm846, %v839, %v843
    %v848 = vand.u32 2147483647, %v817
    %vm849 = vcmp.eq.f32.partialorder %v848, 8.507059e+37
    %v850 = vand.u32 %v817, 2147483648
    %v851 = vor.u32 1.1754944e-38, %v850
    %v852 = vsel %vm849, %v851, %v847
    %v853 = vmul.f32 1.0, %v852
    %v854 = vrcp.pop %v818
    %v855 = vmul.f32 %v818, %v854
    %v856 = vsub.f32 1.0, %v855
    %v857 = vmul.f32 %v854, %v856
    %v858 = vadd.f32 %v854, %v857
    %vm859 = vweird.f32 %v818
    %vm860 = vweird.f32 %v854
    %vm861 = vmor %vm859, %vm860
    %v862 = vsel %vm861, %v854, %v858
    %v863 = vand.u32 2147483647, %v818
    %vm864 = vcmp.eq.f32.partialorder %v863, 8.507059e+37
    %v865 = vand.u32 %v818, 2147483648
    %v866 = vor.u32 1.1754944e-38, %v865
    %v867 = vsel %vm864, %v866, %v862
    %v868 = vmul.f32 1.0, %v867
    %v869 = vrcp.pop %v819
    %v870 = vmul.f32 %v819, %v869
    %v871 = vsub.f32 1.0, %v870
    %v872 = vmul.f32 %v869, %v871
    %v873 = vadd.f32 %v869, %v872
    %vm874 = vweird.f32 %v819
    %vm875 = vweird.f32 %v869
    %vm876 = vmor %vm874, %vm875
    %v877 = vsel %vm876, %v869, %v873
    %v878 = vand.u32 2147483647, %v819
    %vm879 = vcmp.eq.f32.partialorder %v878, 8.507059e+37
    %v880 = vand.u32 %v819, 2147483648
    %v881 = vor.u32 1.1754944e-38, %v880
    %v882 = vsel %vm879, %v881, %v877
    %v883 = vmul.f32 1.0, %v882
    %v884 = vrcp.pop %v820
    %v885 = vmul.f32 %v820, %v884
    %v886 = vsub.f32 1.0, %v885
    %v887 = vmul.f32 %v884, %v886
    %v888 = vadd.f32 %v884, %v887
    %vm889 = vweird.f32 %v820
    %vm890 = vweird.f32 %v884
    %vm891 = vmor %vm889, %vm890
    %v892 = vsel %vm891, %v884, %v888
    %v893 = vand.u32 2147483647, %v820
    %vm894 = vcmp.eq.f32.partialorder %v893, 8.507059e+37
    %v895 = vand.u32 %v820, 2147483648
    %v896 = vor.u32 1.1754944e-38, %v895
    %v897 = vsel %vm894, %v896, %v892
    %v898 = vmul.f32 1.0, %v897
    %v899 = vrcp.pop %v821
    %v900 = vmul.f32 %v821, %v899
    %v901 = vsub.f32 1.0, %v900
    %v902 = vmul.f32 %v899, %v901
    %v903 = vadd.f32 %v899, %v902
    %vm904 = vweird.f32 %v821
    %vm905 = vweird.f32 %v899
    %vm906 = vmor %vm904, %vm905
    %v907 = vsel %vm906, %v899, %v903
    %v908 = vand.u32 2147483647, %v821
    %vm909 = vcmp.eq.f32.partialorder %v908, 8.507059e+37
    %v910 = vand.u32 %v821, 2147483648
    %v911 = vor.u32 1.1754944e-38, %v910
    %v912 = vsel %vm909, %v911, %v907
    %v913 = vmul.f32 1.0, %v912
    %v914 = vrcp.pop %v822
    %v915 = vmul.f32 %v822, %v914
    %v916 = vsub.f32 1.0, %v915
    %v917 = vmul.f32 %v914, %v916
    %v918 = vadd.f32 %v914, %v917
    %vm919 = vweird.f32 %v822
    %vm920 = vweird.f32 %v914
    %vm921 = vmor %vm919, %vm920
    %v922 = vsel %vm921, %v914, %v918
    %v923 = vand.u32 2147483647, %v822
    %vm924 = vcmp.eq.f32.partialorder %v923, 8.507059e+37
    %v925 = vand.u32 %v822, 2147483648
    %v926 = vor.u32 1.1754944e-38, %v925
    %v927 = vsel %vm924, %v926, %v922
    %v928 = vmul.f32 1.0, %v927
    %v929 = vrcp.pop %v823
    %v930 = vmul.f32 %v823, %v929
    %v931 = vsub.f32 1.0, %v930
    %v932 = vmul.f32 %v929, %v931
    %v933 = vadd.f32 %v929, %v932
    %vm934 = vweird.f32 %v823
    %vm935 = vweird.f32 %v929
    %vm936 = vmor %vm934, %vm935
    %v937 = vsel %vm936, %v929, %v933
    %v938 = vand.u32 2147483647, %v823
    %vm939 = vcmp.eq.f32.partialorder %v938, 8.507059e+37
    %v940 = vand.u32 %v823, 2147483648
    %v941 = vor.u32 1.1754944e-38, %v940
    %v942 = vsel %vm939, %v941, %v937
    %v943 = vmul.f32 1.0, %v942
    %v944 = vsub.f32 %v236, %v128
    %v945 = vsub.f32 %v239, %v131
    %v946 = vsub.f32 %v242, %v151
    %v947 = vsub.f32 %v245, %v154
    %v948 = vsub.f32 %v248, %v174
    %v949 = vsub.f32 %v251, %v177
    %v950 = vsub.f32 %v254, %v197
    %v951 = vsub.f32 %v257, %v200
    %953 = vset.pattern.permute.xlu0 0
    %954 = vperm.xlu0 %953, %v569
    %v955 = vpop.permute.xlu0 %954
    %958 = vset.pattern.permute.xlu0 0
    %959 = vperm.xlu0 %958, %v584
    %v960 = vpop.permute.xlu0 %959
    %963 = vset.pattern.permute.xlu0 0
    %964 = vperm.xlu0 %963, %v599
    %v965 = vpop.permute.xlu0 %964
    %968 = vset.pattern.permute.xlu0 0
    %969 = vperm.xlu0 %968, %v614
    %v970 = vpop.permute.xlu0 %969
    %973 = vset.pattern.permute.xlu0 0
    %974 = vperm.xlu0 %973, %v629
    %v975 = vpop.permute.xlu0 %974
    %978 = vset.pattern.permute.xlu0 0
    %979 = vperm.xlu0 %978, %v644
    %v980 = vpop.permute.xlu0 %979
    %983 = vset.pattern.permute.xlu0 0
    %984 = vperm.xlu0 %983, %v659
    %v985 = vpop.permute.xlu0 %984
    %988 = vset.pattern.permute.xlu0 0
    %989 = vperm.xlu0 %988, %v674
    %v990 = vpop.permute.xlu0 %989
    %v992 = vmul.f32 %v955, %v944
    %v993 = vmul.f32 %v960, %v945
    %v994 = vmul.f32 %v965, %v946
    %v995 = vmul.f32 %v970, %v947
    %v996 = vmul.f32 %v975, %v948
    %v997 = vmul.f32 %v980, %v949
    %v998 = vmul.f32 %v985, %v950
    %v999 = vmul.f32 %v990, %v951
    %v1000 = vadd.f32 %v128, %v992
    %v1001 = vadd.f32 %v131, %v993
    %v1002 = vadd.f32 %v151, %v994
    %v1003 = vadd.f32 %v154, %v995
    %v1004 = vadd.f32 %v174, %v996
    %v1005 = vadd.f32 %v177, %v997
    %v1006 = vadd.f32 %v197, %v998
    %v1007 = vadd.f32 %v200, %v999
    %v1008 = vsub.f32 %v341, %v128
    %v1009 = vsub.f32 %v344, %v131
    %v1010 = vsub.f32 %v347, %v151
    %v1011 = vsub.f32 %v350, %v154
    %v1012 = vsub.f32 %v353, %v174
    %v1013 = vsub.f32 %v356, %v177
    %v1014 = vsub.f32 %v359, %v197
    %v1015 = vsub.f32 %v362, %v200
    %1017 = vset.pattern.permute.xlu0 1
    %1018 = vperm.xlu0 %1017, %v838
    %v1019 = vpop.permute.xlu0 %1018
    %1022 = vset.pattern.permute.xlu0 1
    %1023 = vperm.xlu0 %1022, %v853
    %v1024 = vpop.permute.xlu0 %1023
    %1027 = vset.pattern.permute.xlu0 1
    %1028 = vperm.xlu0 %1027, %v868
    %v1029 = vpop.permute.xlu0 %1028
    %1032 = vset.pattern.permute.xlu0 1
    %1033 = vperm.xlu0 %1032, %v883
    %v1034 = vpop.permute.xlu0 %1033
    %1037 = vset.pattern.permute.xlu0 1
    %1038 = vperm.xlu0 %1037, %v898
    %v1039 = vpop.permute.xlu0 %1038
    %1042 = vset.pattern.permute.xlu0 1
    %1043 = vperm.xlu0 %1042, %v913
    %v1044 = vpop.permute.xlu0 %1043
    %1047 = vset.pattern.permute.xlu0 1
    %1048 = vperm.xlu0 %1047, %v928
    %v1049 = vpop.permute.xlu0 %1048
    %1052 = vset.pattern.permute.xlu0 1
    %1053 = vperm.xlu0 %1052, %v943
    %v1054 = vpop.permute.xlu0 %1053
    %v1056 = vmul.f32 %v1019, %v1008
    %v1057 = vmul.f32 %v1024, %v1009
    %v1058 = vmul.f32 %v1029, %v1010
    %v1059 = vmul.f32 %v1034, %v1011
    %v1060 = vmul.f32 %v1039, %v1012
    %v1061 = vmul.f32 %v1044, %v1013
    %v1062 = vmul.f32 %v1049, %v1014
    %v1063 = vmul.f32 %v1054, %v1015
    %v1064 = vadd.f32 %v128, %v1056
    %v1065 = vadd.f32 %v131, %v1057
    %v1066 = vadd.f32 %v151, %v1058
    %v1067 = vadd.f32 %v154, %v1059
    %v1068 = vadd.f32 %v174, %v1060
    %v1069 = vadd.f32 %v177, %v1061
    %v1070 = vadd.f32 %v197, %v1062
    %v1071 = vadd.f32 %v200, %v1063
    %v1072 = vld [vmem:[#allocation8 + $0xd0] sm:$0x1]
    %v1073 = vperm.slane %v1072, 0
    %1074 = vrot.lane.b32.xlu0 %v364, 120
    %v1075 = vpop.permute.xlu0 %1074
    %1076 = vrot.lane.b32.xlu0 %v365, 120
    %v1077 = vpop.permute.xlu0 %1076
    %1078 = vrot.lane.b32.xlu0 %v366, 120
    %v1079 = vpop.permute.xlu0 %1078
    %1080 = vrot.lane.b32.xlu0 %v367, 120
    %v1081 = vpop.permute.xlu0 %1080
    %1086 = vmatpush.msra.mxu0 0.0
    %1087 = vmatpush.msra.mxu0 0.0
    %1088 = vmatpush.msra.mxu0 0.0
    %1089 = vmatpush.msra.mxu0 0.0
    %1090 = vmatpush.msra.mxu0 0.0
    %1091 = vmatpush.msra.mxu0 0.0
    %1092 = vmatpush.msra.mxu0 0.0
    %1093 = vmatpush.msra.mxu0 0.0
    %1094 = vmatpush.msra.mxu0 0.0
    %1095 = vmatpush.msra.mxu0 0.0
    %1096 = vmatpush.msra.mxu0 0.0
    %1097 = vmatpush.msra.mxu0 0.0
    %1098 = vmatpush.msra.mxu0 %v1081
    %1099 = vmatpush.msra.mxu0 %v1079
    %1100 = vmatpush.msra.mxu0 %v1077
    %1101 = vmatpush.msra.mxu0 %v1075
    %1102 = vmatmul.f32.gmra.mxu0 %v370
    %v1103 = vpop.f32.mrf.mxu0
    %v1104 = vadd.f32 %v1073, %v1103
    %1105 = vmatmul.f32.gmra.mxu0 %v373
    %v1106 = vpop.f32.mrf.mxu0
    %v1107 = vadd.f32 %v1073, %v1106
    %1108 = vmatmul.f32.gmra.mxu0 %v376
    %v1109 = vpop.f32.mrf.mxu0
    %v1110 = vadd.f32 %v1073, %v1109
    %1111 = vmatmul.f32.gmra.mxu0 %v379
    %v1112 = vpop.f32.mrf.mxu0
    %v1113 = vadd.f32 %v1073, %v1112
    %1114 = vmatmul.f32.gmra.mxu0 %v382
    %v1115 = vpop.f32.mrf.mxu0
    %v1116 = vadd.f32 %v1073, %v1115
    %1117 = vmatmul.f32.gmra.mxu0 %v385
    %v1118 = vpop.f32.mrf.mxu0
    %v1119 = vadd.f32 %v1073, %v1118
    %1120 = vmatmul.f32.gmra.mxu0 %v388
    %v1121 = vpop.f32.mrf.mxu0
    %v1122 = vadd.f32 %v1073, %v1121
    %1123 = vmatmul.f32.gmra.mxu0 %v391
    %v1124 = vpop.f32.mrf.mxu0
    %v1125 = vadd.f32 %v1073, %v1124
    %1126 = vdwg.mxu0
    %1127 = vrot.lane.b32.xlu0 %v364, 88
    %v1128 = vpop.permute.xlu0 %1127
    %1129 = vrot.lane.b32.xlu0 %v365, 88
    %v1130 = vpop.permute.xlu0 %1129
    %1131 = vrot.lane.b32.xlu0 %v366, 88
    %v1132 = vpop.permute.xlu0 %1131
    %1133 = vrot.lane.b32.xlu0 %v367, 88
    %v1134 = vpop.permute.xlu0 %1133
    %1140 = vrot.lane.b32.xlu0 %v1073, 96
    %v1141 = vpop.permute.xlu0 %1140
    %v1144 = vsel %vm368, %v1000, 0
    %v1147 = vsel %vm368, %v1001, 0
    %v1150 = vsel %vm368, %v1002, 0
    %v1153 = vsel %vm368, %v1003, 0
    %v1156 = vsel %vm368, %v1004, 0
    %v1159 = vsel %vm368, %v1005, 0
    %v1162 = vsel %vm368, %v1006, 0
    %v1165 = vsel %vm368, %v1007, 0
    %1167 = vmatpush.msra.mxu0 0.0
    %1168 = vmatpush.msra.mxu0 0.0
    %1169 = vmatpush.msra.mxu0 0.0
    %1170 = vmatpush.msra.mxu0 0.0
    %1171 = vmatpush.msra.mxu0 0.0
    %1172 = vmatpush.msra.mxu0 0.0
    %1173 = vmatpush.msra.mxu0 0.0
    %1174 = vmatpush.msra.mxu0 0.0
    %1175 = vmatpush.msra.mxu0 0.0
    %1176 = vmatpush.msra.mxu0 0.0
    %1177 = vmatpush.msra.mxu0 0.0
    %1178 = vmatpush.msra.mxu0 0.0
    %1179 = vmatpush.msra.mxu0 %v1134
    %1180 = vmatpush.msra.mxu0 %v1132
    %1181 = vmatpush.msra.mxu0 %v1130
    %1182 = vmatpush.msra.mxu0 %v1128
    %1183 = vmatmul.f32.gmra.mxu0 %v1144
    %v1184 = vpop.f32.mrf.mxu0
    %v1185 = vadd.f32 %v1141, %v1184
    %1186 = vmatmul.f32.gmra.mxu0 %v1147
    %v1187 = vpop.f32.mrf.mxu0
    %v1188 = vadd.f32 %v1141, %v1187
    %1189 = vmatmul.f32.gmra.mxu0 %v1150
    %v1190 = vpop.f32.mrf.mxu0
    %v1191 = vadd.f32 %v1141, %v1190
    %1192 = vmatmul.f32.gmra.mxu0 %v1153
    %v1193 = vpop.f32.mrf.mxu0
    %v1194 = vadd.f32 %v1141, %v1193
    %1195 = vmatmul.f32.gmra.mxu0 %v1156
    %v1196 = vpop.f32.mrf.mxu0
    %v1197 = vadd.f32 %v1141, %v1196
    %1198 = vmatmul.f32.gmra.mxu0 %v1159
    %v1199 = vpop.f32.mrf.mxu0
    %v1200 = vadd.f32 %v1141, %v1199
    %1201 = vmatmul.f32.gmra.mxu0 %v1162
    %v1202 = vpop.f32.mrf.mxu0
    %v1203 = vadd.f32 %v1141, %v1202
    %1204 = vmatmul.f32.gmra.mxu0 %v1165
    %v1205 = vpop.f32.mrf.mxu0
    %v1206 = vadd.f32 %v1141, %v1205
    %1207 = vdwg.mxu0
    %1208 = vrot.lane.b32.xlu0 %v364, 56
    %v1209 = vpop.permute.xlu0 %1208
    %1210 = vrot.lane.b32.xlu0 %v365, 56
    %v1211 = vpop.permute.xlu0 %1210
    %1212 = vrot.lane.b32.xlu0 %v366, 56
    %v1213 = vpop.permute.xlu0 %1212
    %1214 = vrot.lane.b32.xlu0 %v367, 56
    %v1215 = vpop.permute.xlu0 %1214
    %1220 = vrot.lane.b32.xlu0 %v1073, 64
    %v1221 = vpop.permute.xlu0 %1220
    %v1224 = vsel %vm368, %v1064, 0
    %v1227 = vsel %vm368, %v1065, 0
    %v1230 = vsel %vm368, %v1066, 0
    %v1233 = vsel %vm368, %v1067, 0
    %v1236 = vsel %vm368, %v1068, 0
    %v1239 = vsel %vm368, %v1069, 0
    %v1242 = vsel %vm368, %v1070, 0
    %v1245 = vsel %vm368, %v1071, 0
    %1247 = vmatpush.msra.mxu0 0.0
    %1248 = vmatpush.msra.mxu0 0.0
    %1249 = vmatpush.msra.mxu0 0.0
    %1250 = vmatpush.msra.mxu0 0.0
    %1251 = vmatpush.msra.mxu0 0.0
    %1252 = vmatpush.msra.mxu0 0.0
    %1253 = vmatpush.msra.mxu0 0.0
    %1254 = vmatpush.msra.mxu0 0.0
    %1255 = vmatpush.msra.mxu0 0.0
    %1256 = vmatpush.msra.mxu0 0.0
    %1257 = vmatpush.msra.mxu0 0.0
    %1258 = vmatpush.msra.mxu0 0.0
    %1259 = vmatpush.msra.mxu0 %v1215
    %1260 = vmatpush.msra.mxu0 %v1213
    %1261 = vmatpush.msra.mxu0 %v1211
    %1262 = vmatpush.msra.mxu0 %v1209
    %1263 = vmatmul.f32.gmra.mxu0 %v1224
    %v1264 = vpop.f32.mrf.mxu0
    %v1265 = vadd.f32 %v1221, %v1264
    %1266 = vmatmul.f32.gmra.mxu0 %v1227
    %v1267 = vpop.f32.mrf.mxu0
    %v1268 = vadd.f32 %v1221, %v1267
    %1269 = vmatmul.f32.gmra.mxu0 %v1230
    %v1270 = vpop.f32.mrf.mxu0
    %v1271 = vadd.f32 %v1221, %v1270
    %1272 = vmatmul.f32.gmra.mxu0 %v1233
    %v1273 = vpop.f32.mrf.mxu0
    %v1274 = vadd.f32 %v1221, %v1273
    %1275 = vmatmul.f32.gmra.mxu0 %v1236
    %v1276 = vpop.f32.mrf.mxu0
    %v1277 = vadd.f32 %v1221, %v1276
    %1278 = vmatmul.f32.gmra.mxu0 %v1239
    %v1279 = vpop.f32.mrf.mxu0
    %v1280 = vadd.f32 %v1221, %v1279
    %1281 = vmatmul.f32.gmra.mxu0 %v1242
    %v1282 = vpop.f32.mrf.mxu0
    %v1283 = vadd.f32 %v1221, %v1282
    %1284 = vmatmul.f32.gmra.mxu0 %v1245
    %v1285 = vpop.f32.mrf.mxu0
    %v1286 = vadd.f32 %v1221, %v1285
    %1287 = vdwg.mxu0
    %v1289 = vsel %vm368, %v1104, 0
    %v1292 = vsel %vm368, %v1107, 0
    %v1295 = vsel %vm368, %v1185, 0
    %v1298 = vsel %vm368, %v1188, 0
    %1300 = vmatpush.xpose.msra.mxu0 0.0
    %1301 = vmatpush.xpose.msra.mxu0 0.0
    %1302 = vmatpush.xpose.msra.mxu0 0.0
    %1303 = vmatpush.xpose.msra.mxu0 0.0
    %1304 = vmatpush.xpose.msra.mxu0 0.0
    %1305 = vmatpush.xpose.msra.mxu0 0.0
    %1306 = vmatpush.xpose.msra.mxu0 0.0
    %1307 = vmatpush.xpose.msra.mxu0 0.0
    %1308 = vmatpush.xpose.msra.mxu0 0.0
    %1309 = vmatpush.xpose.msra.mxu0 0.0
    %1310 = vmatpush.xpose.msra.mxu0 0.0
    %1311 = vmatpush.xpose.msra.mxu0 0.0
    %1312 = vmatpush.xpose.msra.mxu0 0.0
    %1313 = vmatpush.xpose.msra.mxu0 0.0
    %1314 = vmatpush.xpose.msra.mxu0 %v1298
    %1315 = vmatpush.xpose.msra.mxu0 %v1295
    %1316 = vmatmul.f32.gmra.mxu0 %v1289
    %v1317 = vpop.f32.mrf.mxu0
    %v1318 = vadd.f32 0.0, %v1317
    %1319 = vmatmul.f32.gmra.mxu0 %v1292
    %v1320 = vpop.f32.mrf.mxu0
    %v1321 = vadd.f32 0.0, %v1320
    %1322 = vdwg.mxu0
    %v1324 = vsel %vm368, %v1110, 0
    %v1327 = vsel %vm368, %v1113, 0
    %v1330 = vsel %vm368, %v1191, 0
    %v1333 = vsel %vm368, %v1194, 0
    %1335 = vmatpush.xpose.msra.mxu0 0.0
    %1336 = vmatpush.xpose.msra.mxu0 0.0
    %1337 = vmatpush.xpose.msra.mxu0 0.0
    %1338 = vmatpush.xpose.msra.mxu0 0.0
    %1339 = vmatpush.xpose.msra.mxu0 0.0
    %1340 = vmatpush.xpose.msra.mxu0 0.0
    %1341 = vmatpush.xpose.msra.mxu0 0.0
    %1342 = vmatpush.xpose.msra.mxu0 0.0
    %1343 = vmatpush.xpose.msra.mxu0 0.0
    %1344 = vmatpush.xpose.msra.mxu0 0.0
    %1345 = vmatpush.xpose.msra.mxu0 0.0
    %1346 = vmatpush.xpose.msra.mxu0 0.0
    %1347 = vmatpush.xpose.msra.mxu0 0.0
    %1348 = vmatpush.xpose.msra.mxu0 0.0
    %1349 = vmatpush.xpose.msra.mxu0 %v1333
    %1350 = vmatpush.xpose.msra.mxu0 %v1330
    %1351 = vmatmul.f32.gmra.mxu0 %v1324
    %v1352 = vpop.f32.mrf.mxu0
    %v1353 = vadd.f32 0.0, %v1352
    %1354 = vmatmul.f32.gmra.mxu0 %v1327
    %v1355 = vpop.f32.mrf.mxu0
    %v1356 = vadd.f32 0.0, %v1355
    %1357 = vdwg.mxu0
    %v1359 = vsel %vm368, %v1116, 0
    %v1362 = vsel %vm368, %v1119, 0
    %v1365 = vsel %vm368, %v1197, 0
    %v1368 = vsel %vm368, %v1200, 0
    %1370 = vmatpush.xpose.msra.mxu0 0.0
    %1371 = vmatpush.xpose.msra.mxu0 0.0
    %1372 = vmatpush.xpose.msra.mxu0 0.0
    %1373 = vmatpush.xpose.msra.mxu0 0.0
    %1374 = vmatpush.xpose.msra.mxu0 0.0
    %1375 = vmatpush.xpose.msra.mxu0 0.0
    %1376 = vmatpush.xpose.msra.mxu0 0.0
    %1377 = vmatpush.xpose.msra.mxu0 0.0
    %1378 = vmatpush.xpose.msra.mxu0 0.0
    %1379 = vmatpush.xpose.msra.mxu0 0.0
    %1380 = vmatpush.xpose.msra.mxu0 0.0
    %1381 = vmatpush.xpose.msra.mxu0 0.0
    %1382 = vmatpush.xpose.msra.mxu0 0.0
    %1383 = vmatpush.xpose.msra.mxu0 0.0
    %1384 = vmatpush.xpose.msra.mxu0 %v1368
    %1385 = vmatpush.xpose.msra.mxu0 %v1365
    %1386 = vmatmul.f32.gmra.mxu0 %v1359
    %v1387 = vpop.f32.mrf.mxu0
    %v1388 = vadd.f32 0.0, %v1387
    %1389 = vmatmul.f32.gmra.mxu0 %v1362
    %v1390 = vpop.f32.mrf.mxu0
    %v1391 = vadd.f32 0.0, %v1390
    %1392 = vdwg.mxu0
    %v1394 = vsel %vm368, %v1122, 0
    %v1397 = vsel %vm368, %v1125, 0
    %v1400 = vsel %vm368, %v1203, 0
    %v1403 = vsel %vm368, %v1206, 0
    %1405 = vmatpush.xpose.msra.mxu0 0.0
    %1406 = vmatpush.xpose.msra.mxu0 0.0
    %1407 = vmatpush.xpose.msra.mxu0 0.0
    %1408 = vmatpush.xpose.msra.mxu0 0.0
    %1409 = vmatpush.xpose.msra.mxu0 0.0
    %1410 = vmatpush.xpose.msra.mxu0 0.0
    %1411 = vmatpush.xpose.msra.mxu0 0.0
    %1412 = vmatpush.xpose.msra.mxu0 0.0
    %1413 = vmatpush.xpose.msra.mxu0 0.0
    %1414 = vmatpush.xpose.msra.mxu0 0.0
    %1415 = vmatpush.xpose.msra.mxu0 0.0
    %1416 = vmatpush.xpose.msra.mxu0 0.0
    %1417 = vmatpush.xpose.msra.mxu0 0.0
    %1418 = vmatpush.xpose.msra.mxu0 0.0
    %1419 = vmatpush.xpose.msra.mxu0 %v1403
    %1420 = vmatpush.xpose.msra.mxu0 %v1400
    %1421 = vmatmul.f32.gmra.mxu0 %v1394
    %v1422 = vpop.f32.mrf.mxu0
    %v1423 = vadd.f32 0.0, %v1422
    %1424 = vmatmul.f32.gmra.mxu0 %v1397
    %v1425 = vpop.f32.mrf.mxu0
    %v1426 = vadd.f32 0.0, %v1425
    %1427 = vdwg.mxu0
    %v1428 = vmul.f32 %v1318, 0.17677669
    %v1429 = vmul.f32 %v1321, 0.17677669
    %v1430 = vmul.f32 %v1353, 0.17677669
    %v1431 = vmul.f32 %v1356, 0.17677669
    %v1432 = vmul.f32 %v1388, 0.17677669
    %v1433 = vmul.f32 %v1391, 0.17677669
    %v1434 = vmul.f32 %v1423, 0.17677669
    %v1435 = vmul.f32 %v1426, 0.17677669
    %vm1436 = vcmask 130048
    %v1437 = vsel %vm1436, %v1428, -inf
    %1438 = vmax.xlane.f32.xlu0 %v1437
    %v1439 = vpop.xlane.xlu0 %1438
    %v1440 = vsel %vm1436, %v1429, -inf
    %1441 = vmax.xlane.f32.xlu0 %v1440
    %v1442 = vpop.xlane.xlu0 %1441
    %v1443 = vsel %vm1436, %v1430, -inf
    %1444 = vmax.xlane.f32.xlu0 %v1443
    %v1445 = vpop.xlane.xlu0 %1444
    %v1446 = vsel %vm1436, %v1431, -inf
    %1447 = vmax.xlane.f32.xlu0 %v1446
    %v1448 = vpop.xlane.xlu0 %1447
    %v1449 = vsel %vm1436, %v1432, -inf
    %1450 = vmax.xlane.f32.xlu0 %v1449
    %v1451 = vpop.xlane.xlu0 %1450
    %v1452 = vsel %vm1436, %v1433, -inf
    %1453 = vmax.xlane.f32.xlu0 %v1452
    %v1454 = vpop.xlane.xlu0 %1453
    %v1455 = vsel %vm1436, %v1434, -inf
    %1456 = vmax.xlane.f32.xlu0 %v1455
    %v1457 = vpop.xlane.xlu0 %1456
    %v1458 = vsel %vm1436, %v1435, -inf
    %1459 = vmax.xlane.f32.xlu0 %v1458
    %v1460 = vpop.xlane.xlu0 %1459
    %v1461 = vsub.f32 %v1428, %v1439
    %v1462 = vsub.f32 %v1429, %v1442
    %v1463 = vsub.f32 %v1430, %v1445
    %v1464 = vsub.f32 %v1431, %v1448
    %v1465 = vsub.f32 %v1432, %v1451
    %v1466 = vsub.f32 %v1433, %v1454
    %v1467 = vsub.f32 %v1434, %v1457
    %v1468 = vsub.f32 %v1435, %v1460
    %v1469 = vmul.f32 %v1461, 1.442695
    %v1470 = vpow.pop %v1469
    %v1471 = vmul.f32 %v1462, 1.442695
    %v1472 = vpow.pop %v1471
    %v1473 = vmul.f32 %v1463, 1.442695
    %v1474 = vpow.pop %v1473
    %v1475 = vmul.f32 %v1464, 1.442695
    %v1476 = vpow.pop %v1475
    %v1477 = vmul.f32 %v1465, 1.442695
    %v1478 = vpow.pop %v1477
    %v1479 = vmul.f32 %v1466, 1.442695
    %v1480 = vpow.pop %v1479
    %v1481 = vmul.f32 %v1467, 1.442695
    %v1482 = vpow.pop %v1481
    %v1483 = vmul.f32 %v1468, 1.442695
    %v1484 = vpow.pop %v1483
    %v1485 = vsel %vm1436, %v1470, 0.0
    %1486 = vadd.xlane.f32.xlu0 %v1485
    %v1487 = vpop.xlane.xlu0 %1486
    %v1488 = vsel %vm1436, %v1472, 0.0
    %1489 = vadd.xlane.f32.xlu0 %v1488
    %v1490 = vpop.xlane.xlu0 %1489
    %v1491 = vsel %vm1436, %v1474, 0.0
    %1492 = vadd.xlane.f32.xlu0 %v1491
    %v1493 = vpop.xlane.xlu0 %1492
    %v1494 = vsel %vm1436, %v1476, 0.0
    %1495 = vadd.xlane.f32.xlu0 %v1494
    %v1496 = vpop.xlane.xlu0 %1495
    %v1497 = vsel %vm1436, %v1478, 0.0
    %1498 = vadd.xlane.f32.xlu0 %v1497
    %v1499 = vpop.xlane.xlu0 %1498
    %v1500 = vsel %vm1436, %v1480, 0.0
    %1501 = vadd.xlane.f32.xlu0 %v1500
    %v1502 = vpop.xlane.xlu0 %1501
    %v1503 = vsel %vm1436, %v1482, 0.0
    %1504 = vadd.xlane.f32.xlu0 %v1503
    %v1505 = vpop.xlane.xlu0 %1504
    %v1506 = vsel %vm1436, %v1484, 0.0
    %1507 = vadd.xlane.f32.xlu0 %v1506
    %v1508 = vpop.xlane.xlu0 %1507
    %v1509 = vrcp.pop %v1487
    %v1510 = vmul.f32 %v1487, %v1509
    %v1511 = vsub.f32 1.0, %v1510
    %v1512 = vmul.f32 %v1509, %v1511
    %v1513 = vadd.f32 %v1509, %v1512
    %vm1514 = vweird.f32 %v1487
    %vm1515 = vweird.f32 %v1509
    %vm1516 = vmor %vm1514, %vm1515
    %v1517 = vsel %vm1516, %v1509, %v1513
    %v1518 = vand.u32 2147483647, %v1487
    %vm1519 = vcmp.eq.f32.partialorder %v1518, 8.507059e+37
    %v1520 = vand.u32 %v1487, 2147483648
    %v1521 = vor.u32 1.1754944e-38, %v1520
    %v1522 = vsel %vm1519, %v1521, %v1517
    %v1523 = vmul.f32 %v1470, %v1522
    %v1524 = vrcp.pop %v1490
    %v1525 = vmul.f32 %v1490, %v1524
    %v1526 = vsub.f32 1.0, %v1525
    %v1527 = vmul.f32 %v1524, %v1526
    %v1528 = vadd.f32 %v1524, %v1527
    %vm1529 = vweird.f32 %v1490
    %vm1530 = vweird.f32 %v1524
    %vm1531 = vmor %vm1529, %vm1530
    %v1532 = vsel %vm1531, %v1524, %v1528
    %v1533 = vand.u32 2147483647, %v1490
    %vm1534 = vcmp.eq.f32.partialorder %v1533, 8.507059e+37
    %v1535 = vand.u32 %v1490, 2147483648
    %v1536 = vor.u32 1.1754944e-38, %v1535
    %v1537 = vsel %vm1534, %v1536, %v1532
    %v1538 = vmul.f32 %v1472, %v1537
    %v1539 = vrcp.pop %v1493
    %v1540 = vmul.f32 %v1493, %v1539
    %v1541 = vsub.f32 1.0, %v1540
    %v1542 = vmul.f32 %v1539, %v1541
    %v1543 = vadd.f32 %v1539, %v1542
    %vm1544 = vweird.f32 %v1493
    %vm1545 = vweird.f32 %v1539
    %vm1546 = vmor %vm1544, %vm1545
    %v1547 = vsel %vm1546, %v1539, %v1543
    %v1548 = vand.u32 2147483647, %v1493
    %vm1549 = vcmp.eq.f32.partialorder %v1548, 8.507059e+37
    %v1550 = vand.u32 %v1493, 2147483648
    %v1551 = vor.u32 1.1754944e-38, %v1550
    %v1552 = vsel %vm1549, %v1551, %v1547
    %v1553 = vmul.f32 %v1474, %v1552
    %v1554 = vrcp.pop %v1496
    %v1555 = vmul.f32 %v1496, %v1554
    %v1556 = vsub.f32 1.0, %v1555
    %v1557 = vmul.f32 %v1554, %v1556
    %v1558 = vadd.f32 %v1554, %v1557
    %vm1559 = vweird.f32 %v1496
    %vm1560 = vweird.f32 %v1554
    %vm1561 = vmor %vm1559, %vm1560
    %v1562 = vsel %vm1561, %v1554, %v1558
    %v1563 = vand.u32 2147483647, %v1496
    %vm1564 = vcmp.eq.f32.partialorder %v1563, 8.507059e+37
    %v1565 = vand.u32 %v1496, 2147483648
    %v1566 = vor.u32 1.1754944e-38, %v1565
    %v1567 = vsel %vm1564, %v1566, %v1562
    %v1568 = vmul.f32 %v1476, %v1567
    %v1569 = vrcp.pop %v1499
    %v1570 = vmul.f32 %v1499, %v1569
    %v1571 = vsub.f32 1.0, %v1570
    %v1572 = vmul.f32 %v1569, %v1571
    %v1573 = vadd.f32 %v1569, %v1572
    %vm1574 = vweird.f32 %v1499
    %vm1575 = vweird.f32 %v1569
    %vm1576 = vmor %vm1574, %vm1575
    %v1577 = vsel %vm1576, %v1569, %v1573
    %v1578 = vand.u32 2147483647, %v1499
    %vm1579 = vcmp.eq.f32.partialorder %v1578, 8.507059e+37
    %v1580 = vand.u32 %v1499, 2147483648
    %v1581 = vor.u32 1.1754944e-38, %v1580
    %v1582 = vsel %vm1579, %v1581, %v1577
    %v1583 = vmul.f32 %v1478, %v1582
    %v1584 = vrcp.pop %v1502
    %v1585 = vmul.f32 %v1502, %v1584
    %v1586 = vsub.f32 1.0, %v1585
    %v1587 = vmul.f32 %v1584, %v1586
    %v1588 = vadd.f32 %v1584, %v1587
    %vm1589 = vweird.f32 %v1502
    %vm1590 = vweird.f32 %v1584
    %vm1591 = vmor %vm1589, %vm1590
    %v1592 = vsel %vm1591, %v1584, %v1588
    %v1593 = vand.u32 2147483647, %v1502
    %vm1594 = vcmp.eq.f32.partialorder %v1593, 8.507059e+37
    %v1595 = vand.u32 %v1502, 2147483648
    %v1596 = vor.u32 1.1754944e-38, %v1595
    %v1597 = vsel %vm1594, %v1596, %v1592
    %v1598 = vmul.f32 %v1480, %v1597
    %v1599 = vrcp.pop %v1505
    %v1600 = vmul.f32 %v1505, %v1599
    %v1601 = vsub.f32 1.0, %v1600
    %v1602 = vmul.f32 %v1599, %v1601
    %v1603 = vadd.f32 %v1599, %v1602
    %vm1604 = vweird.f32 %v1505
    %vm1605 = vweird.f32 %v1599
    %vm1606 = vmor %vm1604, %vm1605
    %v1607 = vsel %vm1606, %v1599, %v1603
    %v1608 = vand.u32 2147483647, %v1505
    %vm1609 = vcmp.eq.f32.partialorder %v1608, 8.507059e+37
    %v1610 = vand.u32 %v1505, 2147483648
    %v1611 = vor.u32 1.1754944e-38, %v1610
    %v1612 = vsel %vm1609, %v1611, %v1607
    %v1613 = vmul.f32 %v1482, %v1612
    %v1614 = vrcp.pop %v1508
    %v1615 = vmul.f32 %v1508, %v1614
    %v1616 = vsub.f32 1.0, %v1615
    %v1617 = vmul.f32 %v1614, %v1616
    %v1618 = vadd.f32 %v1614, %v1617
    %vm1619 = vweird.f32 %v1508
    %vm1620 = vweird.f32 %v1614
    %vm1621 = vmor %vm1619, %vm1620
    %v1622 = vsel %vm1621, %v1614, %v1618
    %v1623 = vand.u32 2147483647, %v1508
    %vm1624 = vcmp.eq.f32.partialorder %v1623, 8.507059e+37
    %v1625 = vand.u32 %v1508, 2147483648
    %v1626 = vor.u32 1.1754944e-38, %v1625
    %v1627 = vsel %vm1624, %v1626, %v1622
    %v1628 = vmul.f32 %v1484, %v1627
    %v1630 = vsel %vm1436, %v1523, 0
    %v1633 = vsel %vm1436, %v1538, 0
    %1635 = vmatpush.msra.mxu0 0.0
    %1636 = vmatpush.msra.mxu0 0.0
    %1637 = vmatpush.msra.mxu0 0.0
    %1638 = vmatpush.msra.mxu0 0.0
    %1639 = vmatpush.msra.mxu0 0.0
    %1640 = vmatpush.msra.mxu0 0.0
    %1641 = vmatpush.msra.mxu0 0.0
    %1642 = vmatpush.msra.mxu0 0.0
    %1643 = vmatpush.msra.mxu0 0.0
    %1644 = vmatpush.msra.mxu0 0.0
    %1645 = vmatpush.msra.mxu0 0.0
    %1646 = vmatpush.msra.mxu0 0.0
    %1647 = vmatpush.msra.mxu0 0.0
    %1648 = vmatpush.msra.mxu0 0.0
    %1649 = vmatpush.msra.mxu0 %v1268
    %1650 = vmatpush.msra.mxu0 %v1265
    %1651 = vmatmul.f32.gmra.mxu0 %v1630
    %v1652 = vpop.f32.mrf.mxu0
    %v1653 = vadd.f32 0.0, %v1652
    %1654 = vmatmul.f32.gmra.mxu0 %v1633
    %v1655 = vpop.f32.mrf.mxu0
    %v1656 = vadd.f32 0.0, %v1655
    %1657 = vdwg.mxu0
    %v1659 = vsel %vm1436, %v1553, 0
    %v1662 = vsel %vm1436, %v1568, 0
    %1664 = vmatpush.msra.mxu0 0.0
    %1665 = vmatpush.msra.mxu0 0.0
    %1666 = vmatpush.msra.mxu0 0.0
    %1667 = vmatpush.msra.mxu0 0.0
    %1668 = vmatpush.msra.mxu0 0.0
    %1669 = vmatpush.msra.mxu0 0.0
    %1670 = vmatpush.msra.mxu0 0.0
    %1671 = vmatpush.msra.mxu0 0.0
    %1672 = vmatpush.msra.mxu0 0.0
    %1673 = vmatpush.msra.mxu0 0.0
    %1674 = vmatpush.msra.mxu0 0.0
    %1675 = vmatpush.msra.mxu0 0.0
    %1676 = vmatpush.msra.mxu0 0.0
    %1677 = vmatpush.msra.mxu0 0.0
    %1678 = vmatpush.msra.mxu0 %v1274
    %1679 = vmatpush.msra.mxu0 %v1271
    %1680 = vmatmul.f32.gmra.mxu0 %v1659
    %v1681 = vpop.f32.mrf.mxu0
    %v1682 = vadd.f32 0.0, %v1681
    %1683 = vmatmul.f32.gmra.mxu0 %v1662
    %v1684 = vpop.f32.mrf.mxu0
    %v1685 = vadd.f32 0.0, %v1684
    %1686 = vdwg.mxu0
    %v1688 = vsel %vm1436, %v1583, 0
    %v1691 = vsel %vm1436, %v1598, 0
    %1693 = vmatpush.msra.mxu0 0.0
    %1694 = vmatpush.msra.mxu0 0.0
    %1695 = vmatpush.msra.mxu0 0.0
    %1696 = vmatpush.msra.mxu0 0.0
    %1697 = vmatpush.msra.mxu0 0.0
    %1698 = vmatpush.msra.mxu0 0.0
    %1699 = vmatpush.msra.mxu0 0.0
    %1700 = vmatpush.msra.mxu0 0.0
    %1701 = vmatpush.msra.mxu0 0.0
    %1702 = vmatpush.msra.mxu0 0.0
    %1703 = vmatpush.msra.mxu0 0.0
    %1704 = vmatpush.msra.mxu0 0.0
    %1705 = vmatpush.msra.mxu0 0.0
    %1706 = vmatpush.msra.mxu0 0.0
    %1707 = vmatpush.msra.mxu0 %v1280
    %1708 = vmatpush.msra.mxu0 %v1277
    %1709 = vmatmul.f32.gmra.mxu0 %v1688
    %v1710 = vpop.f32.mrf.mxu0
    %v1711 = vadd.f32 0.0, %v1710
    %1712 = vmatmul.f32.gmra.mxu0 %v1691
    %v1713 = vpop.f32.mrf.mxu0
    %v1714 = vadd.f32 0.0, %v1713
    %1715 = vdwg.mxu0
    %v1717 = vsel %vm1436, %v1613, 0
    %v1720 = vsel %vm1436, %v1628, 0
    %1722 = vmatpush.msra.mxu0 0.0
    %1723 = vmatpush.msra.mxu0 0.0
    %1724 = vmatpush.msra.mxu0 0.0
    %1725 = vmatpush.msra.mxu0 0.0
    %1726 = vmatpush.msra.mxu0 0.0
    %1727 = vmatpush.msra.mxu0 0.0
    %1728 = vmatpush.msra.mxu0 0.0
    %1729 = vmatpush.msra.mxu0 0.0
    %1730 = vmatpush.msra.mxu0 0.0
    %1731 = vmatpush.msra.mxu0 0.0
    %1732 = vmatpush.msra.mxu0 0.0
    %1733 = vmatpush.msra.mxu0 0.0
    %1734 = vmatpush.msra.mxu0 0.0
    %1735 = vmatpush.msra.mxu0 0.0
    %1736 = vmatpush.msra.mxu0 %v1286
    %1737 = vmatpush.msra.mxu0 %v1283
    %1738 = vmatmul.f32.gmra.mxu0 %v1717
    %v1739 = vpop.f32.mrf.mxu0
    %v1740 = vadd.f32 0.0, %v1739
    %1741 = vmatmul.f32.gmra.mxu0 %v1720
    %v1742 = vpop.f32.mrf.mxu0
    %v1743 = vadd.f32 0.0, %v1742
    %1744 = vdwg.mxu0
    %v1745 = vld [vmem:[#allocation8 + $0xb0] sm:$0xff]
    %v1746 = vld [vmem:[#allocation8 + $0xb8] sm:$0xff]
    %v1747 = vld [vmem:[#allocation8 + $0xc0] sm:$0xff]
    %v1748 = vld [vmem:[#allocation8 + $0xc8] sm:$0xff]
    %v1749 = vld [vmem:[#allocation8 + $0xd0] sm:$0x1]
    %v1750 = vperm.slane %v1749, 0
    %1752 = vrot.lane.b32.xlu0 %v1750, 32
    %v1753 = vpop.permute.xlu0 %1752
    %v1756 = vsel %vm368, %v1653, 0
    %v1759 = vsel %vm368, %v1656, 0
    %v1762 = vsel %vm368, %v1682, 0
    %v1765 = vsel %vm368, %v1685, 0
    %v1768 = vsel %vm368, %v1711, 0
    %v1771 = vsel %vm368, %v1714, 0
    %v1774 = vsel %vm368, %v1740, 0
    %v1777 = vsel %vm368, %v1743, 0
    %1779 = vmatpush.msra.mxu0 0.0
    %1780 = vmatpush.msra.mxu0 0.0
    %1781 = vmatpush.msra.mxu0 0.0
    %1782 = vmatpush.msra.mxu0 0.0
    %1783 = vmatpush.msra.mxu0 0.0
    %1784 = vmatpush.msra.mxu0 0.0
    %1785 = vmatpush.msra.mxu0 0.0
    %1786 = vmatpush.msra.mxu0 0.0
    %1787 = vmatpush.msra.mxu0 0.0
    %1788 = vmatpush.msra.mxu0 0.0
    %1789 = vmatpush.msra.mxu0 0.0
    %1790 = vmatpush.msra.mxu0 0.0
    %1791 = vmatpush.msra.mxu0 %v1748
    %1792 = vmatpush.msra.mxu0 %v1747
    %1793 = vmatpush.msra.mxu0 %v1746
    %1794 = vmatpush.msra.mxu0 %v1745
    %1795 = vmatmul.f32.gmra.mxu0 %v1756
    %v1796 = vpop.f32.mrf.mxu0
    %v1797 = vadd.f32 %v1753, %v1796
    %1798 = vmatmul.f32.gmra.mxu0 %v1759
    %v1799 = vpop.f32.mrf.mxu0
    %v1800 = vadd.f32 %v1753, %v1799
    %1801 = vmatmul.f32.gmra.mxu0 %v1762
    %v1802 = vpop.f32.mrf.mxu0
    %v1803 = vadd.f32 %v1753, %v1802
    %1804 = vmatmul.f32.gmra.mxu0 %v1765
    %v1805 = vpop.f32.mrf.mxu0
    %v1806 = vadd.f32 %v1753, %v1805
    %1807 = vmatmul.f32.gmra.mxu0 %v1768
    %v1808 = vpop.f32.mrf.mxu0
    %v1809 = vadd.f32 %v1753, %v1808
    %1810 = vmatmul.f32.gmra.mxu0 %v1771
    %v1811 = vpop.f32.mrf.mxu0
    %v1812 = vadd.f32 %v1753, %v1811
    %1813 = vmatmul.f32.gmra.mxu0 %v1774
    %v1814 = vpop.f32.mrf.mxu0
    %v1815 = vadd.f32 %v1753, %v1814
    %1816 = vmatmul.f32.gmra.mxu0 %v1777
    %v1817 = vpop.f32.mrf.mxu0
    %v1818 = vadd.f32 %v1753, %v1817
    %1819 = vdwg.mxu0
    %v1820 = vld [vmem:[#allocation8 + $0x3d8] sm:$0xff]
    %v1821 = vld [vmem:[#allocation8 + $0x3e0] sm:$0xff]
    %v1822 = vld [vmem:[#allocation8 + $0x3e8] sm:$0xff]
    %v1823 = vld [vmem:[#allocation8 + $0x3f0] sm:$0xff]
    %v1824 = vld [vmem:[#allocation8 + $0x5fc] sm:$0x1]
    %v1825 = vperm.slane %v1824, 0
    %v1827 = vsel %vm368, %v1797, 0
    %v1830 = vsel %vm368, %v1800, 0
    %v1833 = vsel %vm368, %v1803, 0
    %v1836 = vsel %vm368, %v1806, 0
    %v1839 = vsel %vm368, %v1809, 0
    %v1842 = vsel %vm368, %v1812, 0
    %v1845 = vsel %vm368, %v1815, 0
    %v1848 = vsel %vm368, %v1818, 0
    %1850 = vmatpush.msra.mxu0 0.0
    %1851 = vmatpush.msra.mxu0 0.0
    %1852 = vmatpush.msra.mxu0 0.0
    %1853 = vmatpush.msra.mxu0 0.0
    %1854 = vmatpush.msra.mxu0 0.0
    %1855 = vmatpush.msra.mxu0 0.0
    %1856 = vmatpush.msra.mxu0 0.0
    %1857 = vmatpush.msra.mxu0 0.0
    %1858 = vmatpush.msra.mxu0 0.0
    %1859 = vmatpush.msra.mxu0 0.0
    %1860 = vmatpush.msra.mxu0 0.0
    %1861 = vmatpush.msra.mxu0 0.0
    %1862 = vmatpush.msra.mxu0 %v1823
    %1863 = vmatpush.msra.mxu0 %v1822
    %1864 = vmatpush.msra.mxu0 %v1821
    %1865 = vmatpush.msra.mxu0 %v1820
    %1866 = vmatmul.f32.gmra.mxu0 %v1827
    %v1867 = vpop.f32.mrf.mxu0
    %v1868 = vadd.f32 %v1825, %v1867
    %1869 = vmatmul.f32.gmra.mxu0 %v1830
    %v1870 = vpop.f32.mrf.mxu0
    %v1871 = vadd.f32 %v1825, %v1870
    %1872 = vmatmul.f32.gmra.mxu0 %v1833
    %v1873 = vpop.f32.mrf.mxu0
    %v1874 = vadd.f32 %v1825, %v1873
    %1875 = vmatmul.f32.gmra.mxu0 %v1836
    %v1876 = vpop.f32.mrf.mxu0
    %v1877 = vadd.f32 %v1825, %v1876
    %1878 = vmatmul.f32.gmra.mxu0 %v1839
    %v1879 = vpop.f32.mrf.mxu0
    %v1880 = vadd.f32 %v1825, %v1879
    %1881 = vmatmul.f32.gmra.mxu0 %v1842
    %v1882 = vpop.f32.mrf.mxu0
    %v1883 = vadd.f32 %v1825, %v1882
    %1884 = vmatmul.f32.gmra.mxu0 %v1845
    %v1885 = vpop.f32.mrf.mxu0
    %v1886 = vadd.f32 %v1825, %v1885
    %1887 = vmatmul.f32.gmra.mxu0 %v1848
    %v1888 = vpop.f32.mrf.mxu0
    %v1889 = vadd.f32 %v1825, %v1888
    %1890 = vdwg.mxu0
    %v1891 = vld [vmem:[#allocation7] sm:$0xff]
    %v1892 = vld [vmem:[#allocation7 + $0x8] sm:$0xff]
    %v1893 = vld [vmem:[#allocation7 + $0x10] sm:$0xff]
    %v1894 = vld [vmem:[#allocation7 + $0x18] sm:$0xff]
    %v1895 = vld [vmem:[#allocation8] sm:$0xff]
    %v1896 = vld [vmem:[#allocation8 + $0x8] sm:$0xff]
    %1899 = vrot.lane.b32.xlu0 %v1895, 104
    %v1900 = vpop.permute.xlu0 %1899
    %1901 = vrot.lane.b32.xlu0 %v1896, 104
    %v1902 = vpop.permute.xlu0 %1901
    %vm1903 = vcmask 64512
    %v1904 = vsel %vm1903, %v1900, 0
    %v1906 = vsel %vm1903, %v1902, 0
    %1908 = vmatpush.msra.mxu0 0.0
    %1909 = vmatpush.msra.mxu0 0.0
    %1910 = vmatpush.msra.mxu0 0.0
    %1911 = vmatpush.msra.mxu0 0.0
    %1912 = vmatpush.msra.mxu0 0.0
    %1913 = vmatpush.msra.mxu0 0.0
    %1914 = vmatpush.msra.mxu0 0.0
    %1915 = vmatpush.msra.mxu0 0.0
    %1916 = vmatpush.msra.mxu0 0.0
    %1917 = vmatpush.msra.mxu0 0.0
    %1918 = vmatpush.msra.mxu0 0.0
    %1919 = vmatpush.msra.mxu0 0.0
    %1920 = vmatpush.msra.mxu0 0.0
    %1921 = vmatpush.msra.mxu0 0.0
    %1922 = vmatpush.msra.mxu0 0.0
    %1923 = vmatpush.msra.mxu0 %v1891
    %1924 = vmatmul.f32.gmra.mxu0 %v1904
    %v1925 = vpop.f32.mrf.mxu0
    %v1926 = vadd.f32 0.0, %v1925
    %1927 = vmatmul.f32.gmra.mxu0 %v1906
    %v1928 = vpop.f32.mrf.mxu0
    %v1929 = vadd.f32 0.0, %v1928
    %1930 = vdwg.mxu0
    %1931 = vmatpush.msra.mxu0 0.0
    %1932 = vmatpush.msra.mxu0 0.0
    %1933 = vmatpush.msra.mxu0 0.0
    %1934 = vmatpush.msra.mxu0 0.0
    %1935 = vmatpush.msra.mxu0 0.0
    %1936 = vmatpush.msra.mxu0 0.0
    %1937 = vmatpush.msra.mxu0 0.0
    %1938 = vmatpush.msra.mxu0 0.0
    %1939 = vmatpush.msra.mxu0 0.0
    %1940 = vmatpush.msra.mxu0 0.0
    %1941 = vmatpush.msra.mxu0 0.0
    %1942 = vmatpush.msra.mxu0 0.0
    %1943 = vmatpush.msra.mxu0 0.0
    %1944 = vmatpush.msra.mxu0 0.0
    %1945 = vmatpush.msra.mxu0 0.0
    %1946 = vmatpush.msra.mxu0 %v1892
    %1947 = vmatmul.f32.gmra.mxu0 %v1904
    %v1948 = vpop.f32.mrf.mxu0
    %v1949 = vadd.f32 0.0, %v1948
    %1950 = vmatmul.f32.gmra.mxu0 %v1906
    %v1951 = vpop.f32.mrf.mxu0
    %v1952 = vadd.f32 0.0, %v1951
    %1953 = vdwg.mxu0
    %1954 = vmatpush.msra.mxu0 0.0
    %1955 = vmatpush.msra.mxu0 0.0
    %1956 = vmatpush.msra.mxu0 0.0
    %1957 = vmatpush.msra.mxu0 0.0
    %1958 = vmatpush.msra.mxu0 0.0
    %1959 = vmatpush.msra.mxu0 0.0
    %1960 = vmatpush.msra.mxu0 0.0
    %1961 = vmatpush.msra.mxu0 0.0
    %1962 = vmatpush.msra.mxu0 0.0
    %1963 = vmatpush.msra.mxu0 0.0
    %1964 = vmatpush.msra.mxu0 0.0
    %1965 = vmatpush.msra.mxu0 0.0
    %1966 = vmatpush.msra.mxu0 0.0
    %1967 = vmatpush.msra.mxu0 0.0
    %1968 = vmatpush.msra.mxu0 0.0
    %1969 = vmatpush.msra.mxu0 %v1893
    %1970 = vmatmul.f32.gmra.mxu0 %v1904
    %v1971 = vpop.f32.mrf.mxu0
    %v1972 = vadd.f32 0.0, %v1971
    %1973 = vmatmul.f32.gmra.mxu0 %v1906
    %v1974 = vpop.f32.mrf.mxu0
    %v1975 = vadd.f32 0.0, %v1974
    %1976 = vdwg.mxu0
    %1977 = vmatpush.msra.mxu0 0.0
    %1978 = vmatpush.msra.mxu0 0.0
    %1979 = vmatpush.msra.mxu0 0.0
    %1980 = vmatpush.msra.mxu0 0.0
    %1981 = vmatpush.msra.mxu0 0.0
    %1982 = vmatpush.msra.mxu0 0.0
    %1983 = vmatpush.msra.mxu0 0.0
    %1984 = vmatpush.msra.mxu0 0.0
    %1985 = vmatpush.msra.mxu0 0.0
    %1986 = vmatpush.msra.mxu0 0.0
    %1987 = vmatpush.msra.mxu0 0.0
    %1988 = vmatpush.msra.mxu0 0.0
    %1989 = vmatpush.msra.mxu0 0.0
    %1990 = vmatpush.msra.mxu0 0.0
    %1991 = vmatpush.msra.mxu0 0.0
    %1992 = vmatpush.msra.mxu0 %v1894
    %1993 = vmatmul.f32.gmra.mxu0 %v1904
    %v1994 = vpop.f32.mrf.mxu0
    %v1995 = vadd.f32 0.0, %v1994
    %1996 = vmatmul.f32.gmra.mxu0 %v1906
    %v1997 = vpop.f32.mrf.mxu0
    %v1998 = vadd.f32 0.0, %v1997
    %1999 = vdwg.mxu0
    %v2000 = vld [vmem:[#allocation8 + $0xd8] sm:$0xff]
    %v2001 = vld [vmem:[#allocation8 + $0xe0] sm:$0xff]
    %v2002 = vld [vmem:[#allocation8 + $0xe8] sm:$0xff]
    %v2003 = vld [vmem:[#allocation8 + $0xf0] sm:$0xff]
    %v2004 = vld [vmem:[#allocation8 + $0xf8] sm:$0xff]
    %v2005 = vld [vmem:[#allocation8 + $0x100] sm:$0xff]
    %v2006 = vld [vmem:[#allocation8 + $0x108] sm:$0xff]
    %v2007 = vld [vmem:[#allocation8 + $0x110] sm:$0xff]
    %v2008 = vld [vmem:[#allocation8 + $0x118] sm:$0xff]
    %v2009 = vld [vmem:[#allocation8 + $0x120] sm:$0xff]
    %v2010 = vld [vmem:[#allocation8 + $0x128] sm:$0xff]
    %v2011 = vld [vmem:[#allocation8 + $0x130] sm:$0xff]
    %v2012 = vld [vmem:[#allocation8 + $0x138] sm:$0xff]
    %v2013 = vld [vmem:[#allocation8 + $0x140] sm:$0xff]
    %v2014 = vld [vmem:[#allocation8 + $0x148] sm:$0xff]
    %v2015 = vld [vmem:[#allocation8 + $0x150] sm:$0xff]
    %2016 = vmatpush.msra.mxu0 %v2015
    %2017 = vmatpush.msra.mxu0 %v2014
    %2018 = vmatpush.msra.mxu0 %v2013
    %2019 = vmatpush.msra.mxu0 %v2012
    %2020 = vmatpush.msra.mxu0 %v2011
    %2021 = vmatpush.msra.mxu0 %v2010
    %2022 = vmatpush.msra.mxu0 %v2009
    %2023 = vmatpush.msra.mxu0 %v2008
    %2024 = vmatpush.msra.mxu0 %v2007
    %2025 = vmatpush.msra.mxu0 %v2006
    %2026 = vmatpush.msra.mxu0 %v2005
    %2027 = vmatpush.msra.mxu0 %v2004
    %2028 = vmatpush.msra.mxu0 %v2003
    %2029 = vmatpush.msra.mxu0 %v2002
    %2030 = vmatpush.msra.mxu0 %v2001
    %2031 = vmatpush.msra.mxu0 %v2000
    %2032 = vmatmul.f32.gmra.mxu0 %v1926
    %v2033 = vpop.f32.mrf.mxu0
    %v2034 = vadd.f32 0.0, %v2033
    %2035 = vmatmul.f32.gmra.mxu0 %v1929
    %v2036 = vpop.f32.mrf.mxu0
    %v2037 = vadd.f32 0.0, %v2036
    %2038 = vmatmul.f32.gmra.mxu0 %v1949
    %v2039 = vpop.f32.mrf.mxu0
    %v2040 = vadd.f32 0.0, %v2039
    %2041 = vmatmul.f32.gmra.mxu0 %v1952
    %v2042 = vpop.f32.mrf.mxu0
    %v2043 = vadd.f32 0.0, %v2042
    %2044 = vmatmul.f32.gmra.mxu0 %v1972
    %v2045 = vpop.f32.mrf.mxu0
    %v2046 = vadd.f32 0.0, %v2045
    %2047 = vmatmul.f32.gmra.mxu0 %v1975
    %v2048 = vpop.f32.mrf.mxu0
    %v2049 = vadd.f32 0.0, %v2048
    %2050 = vmatmul.f32.gmra.mxu0 %v1995
    %v2051 = vpop.f32.mrf.mxu0
    %v2052 = vadd.f32 0.0, %v2051
    %2053 = vmatmul.f32.gmra.mxu0 %v1998
    %v2054 = vpop.f32.mrf.mxu0
    %v2055 = vadd.f32 0.0, %v2054
    %2056 = vdwg.mxu0
    %v2057 = vld [vmem:[#allocation8 + $0x158] sm:$0xff]
    %v2058 = vld [vmem:[#allocation8 + $0x160] sm:$0xff]
    %v2059 = vld [vmem:[#allocation8 + $0x168] sm:$0xff]
    %v2060 = vld [vmem:[#allocation8 + $0x170] sm:$0xff]
    %v2061 = vld [vmem:[#allocation8 + $0x178] sm:$0xff]
    %v2062 = vld [vmem:[#allocation8 + $0x180] sm:$0xff]
    %v2063 = vld [vmem:[#allocation8 + $0x188] sm:$0xff]
    %v2064 = vld [vmem:[#allocation8 + $0x190] sm:$0xff]
    %v2065 = vld [vmem:[#allocation8 + $0x198] sm:$0xff]
    %v2066 = vld [vmem:[#allocation8 + $0x1a0] sm:$0xff]
    %v2067 = vld [vmem:[#allocation8 + $0x1a8] sm:$0xff]
    %v2068 = vld [vmem:[#allocation8 + $0x1b0] sm:$0xff]
    %v2069 = vld [vmem:[#allocation8 + $0x1b8] sm:$0xff]
    %v2070 = vld [vmem:[#allocation8 + $0x1c0] sm:$0xff]
    %v2071 = vld [vmem:[#allocation8 + $0x1c8] sm:$0xff]
    %v2072 = vld [vmem:[#allocation8 + $0x1d0] sm:$0xff]
    %2073 = vmatpush.msra.mxu0 %v2072
    %2074 = vmatpush.msra.mxu0 %v2071
    %2075 = vmatpush.msra.mxu0 %v2070
    %2076 = vmatpush.msra.mxu0 %v2069
    %2077 = vmatpush.msra.mxu0 %v2068
    %2078 = vmatpush.msra.mxu0 %v2067
    %2079 = vmatpush.msra.mxu0 %v2066
    %2080 = vmatpush.msra.mxu0 %v2065
    %2081 = vmatpush.msra.mxu0 %v2064
    %2082 = vmatpush.msra.mxu0 %v2063
    %2083 = vmatpush.msra.mxu0 %v2062
    %2084 = vmatpush.msra.mxu0 %v2061
    %2085 = vmatpush.msra.mxu0 %v2060
    %2086 = vmatpush.msra.mxu0 %v2059
    %2087 = vmatpush.msra.mxu0 %v2058
    %2088 = vmatpush.msra.mxu0 %v2057
    %2089 = vmatmul.f32.gmra.mxu0 %v1926
    %v2090 = vpop.f32.mrf.mxu0
    %v2091 = vadd.f32 0.0, %v2090
    %2092 = vmatmul.f32.gmra.mxu0 %v1929
    %v2093 = vpop.f32.mrf.mxu0
    %v2094 = vadd.f32 0.0, %v2093
    %2095 = vmatmul.f32.gmra.mxu0 %v1949
    %v2096 = vpop.f32.mrf.mxu0
    %v2097 = vadd.f32 0.0, %v2096
    %2098 = vmatmul.f32.gmra.mxu0 %v1952
    %v2099 = vpop.f32.mrf.mxu0
    %v2100 = vadd.f32 0.0, %v2099
    %2101 = vmatmul.f32.gmra.mxu0 %v1972
    %v2102 = vpop.f32.mrf.mxu0
    %v2103 = vadd.f32 0.0, %v2102
    %2104 = vmatmul.f32.gmra.mxu0 %v1975
    %v2105 = vpop.f32.mrf.mxu0
    %v2106 = vadd.f32 0.0, %v2105
    %2107 = vmatmul.f32.gmra.mxu0 %v1995
    %v2108 = vpop.f32.mrf.mxu0
    %v2109 = vadd.f32 0.0, %v2108
    %2110 = vmatmul.f32.gmra.mxu0 %v1998
    %v2111 = vpop.f32.mrf.mxu0
    %v2112 = vadd.f32 0.0, %v2111
    %2113 = vdwg.mxu0
    %v2114 = vld [vmem:[#allocation8 + $0x10] sm:$0xff]
    %v2115 = vld [vmem:[#allocation8 + $0x18] sm:$0xff]
    %v2116 = vld [vmem:[#allocation8 + $0x20] sm:$0xff]
    %v2117 = vld [vmem:[#allocation8 + $0x28] sm:$0xff]
    %v2118 = vld [vmem:[#allocation8 + $0x30] sm:$0xff]
    %v2119 = vld [vmem:[#allocation8 + $0x38] sm:$0xff]
    %v2120 = vld [vmem:[#allocation8 + $0x40] sm:$0xff]
    %v2121 = vld [vmem:[#allocation8 + $0x48] sm:$0xff]
    %v2122 = vld [vmem:[#allocation8 + $0x50] sm:$0xff]
    %v2123 = vld [vmem:[#allocation8 + $0x58] sm:$0xff]
    %v2124 = vld [vmem:[#allocation8 + $0x60] sm:$0xff]
    %v2125 = vld [vmem:[#allocation8 + $0x68] sm:$0xff]
    %v2126 = vld [vmem:[#allocation8 + $0x70] sm:$0xff]
    %v2127 = vld [vmem:[#allocation8 + $0x78] sm:$0xff]
    %v2128 = vld [vmem:[#allocation8 + $0x80] sm:$0xff]
    %v2129 = vld [vmem:[#allocation8 + $0x88] sm:$0xff]
    %2146 = vrot.lane.b32.xlu0 %v2114, 64
    %v2147 = vpop.permute.xlu0 %2146
    %2148 = vrot.lane.b32.xlu0 %v2115, 64
    %v2149 = vpop.permute.xlu0 %2148
    %2150 = vrot.lane.b32.xlu0 %v2116, 64
    %v2151 = vpop.permute.xlu0 %2150
    %2152 = vrot.lane.b32.xlu0 %v2117, 64
    %v2153 = vpop.permute.xlu0 %2152
    %2154 = vrot.lane.b32.xlu0 %v2118, 64
    %v2155 = vpop.permute.xlu0 %2154
    %2156 = vrot.lane.b32.xlu0 %v2119, 64
    %v2157 = vpop.permute.xlu0 %2156
    %2158 = vrot.lane.b32.xlu0 %v2120, 64
    %v2159 = vpop.permute.xlu0 %2158
    %2160 = vrot.lane.b32.xlu0 %v2121, 64
    %v2161 = vpop.permute.xlu0 %2160
    %2162 = vrot.lane.b32.xlu0 %v2122, 64
    %v2163 = vpop.permute.xlu0 %2162
    %2164 = vrot.lane.b32.xlu0 %v2123, 64
    %v2165 = vpop.permute.xlu0 %2164
    %2166 = vrot.lane.b32.xlu0 %v2124, 64
    %v2167 = vpop.permute.xlu0 %2166
    %2168 = vrot.lane.b32.xlu0 %v2125, 64
    %v2169 = vpop.permute.xlu0 %2168
    %2170 = vrot.lane.b32.xlu0 %v2126, 64
    %v2171 = vpop.permute.xlu0 %2170
    %2172 = vrot.lane.b32.xlu0 %v2127, 64
    %v2173 = vpop.permute.xlu0 %2172
    %2174 = vrot.lane.b32.xlu0 %v2128, 64
    %v2175 = vpop.permute.xlu0 %2174
    %2176 = vrot.lane.b32.xlu0 %v2129, 64
    %v2177 = vpop.permute.xlu0 %2176
    %2194 = vmatpush.msra.mxu0 %v2177
    %2195 = vmatpush.msra.mxu0 %v2175
    %2196 = vmatpush.msra.mxu0 %v2173
    %2197 = vmatpush.msra.mxu0 %v2171
    %2198 = vmatpush.msra.mxu0 %v2169
    %2199 = vmatpush.msra.mxu0 %v2167
    %2200 = vmatpush.msra.mxu0 %v2165
    %2201 = vmatpush.msra.mxu0 %v2163
    %2202 = vmatpush.msra.mxu0 %v2161
    %2203 = vmatpush.msra.mxu0 %v2159
    %2204 = vmatpush.msra.mxu0 %v2157
    %2205 = vmatpush.msra.mxu0 %v2155
    %2206 = vmatpush.msra.mxu0 %v2153
    %2207 = vmatpush.msra.mxu0 %v2151
    %2208 = vmatpush.msra.mxu0 %v2149
    %2209 = vmatpush.msra.mxu0 %v2147
    %2210 = vmatmul.f32.gmra.mxu0 %v81
    %v2211 = vpop.f32.mrf.mxu0
    %v2212 = vadd.f32 0.0, %v2211
    %2213 = vmatmul.f32.gmra.mxu0 %v82
    %v2214 = vpop.f32.mrf.mxu0
    %v2215 = vadd.f32 0.0, %v2214
    %2216 = vmatmul.f32.gmra.mxu0 %v83
    %v2217 = vpop.f32.mrf.mxu0
    %v2218 = vadd.f32 0.0, %v2217
    %2219 = vmatmul.f32.gmra.mxu0 %v84
    %v2220 = vpop.f32.mrf.mxu0
    %v2221 = vadd.f32 0.0, %v2220
    %2222 = vmatmul.f32.gmra.mxu0 %v85
    %v2223 = vpop.f32.mrf.mxu0
    %v2224 = vadd.f32 0.0, %v2223
    %2225 = vmatmul.f32.gmra.mxu0 %v86
    %v2226 = vpop.f32.mrf.mxu0
    %v2227 = vadd.f32 0.0, %v2226
    %2228 = vmatmul.f32.gmra.mxu0 %v87
    %v2229 = vpop.f32.mrf.mxu0
    %v2230 = vadd.f32 0.0, %v2229
    %2231 = vmatmul.f32.gmra.mxu0 %v88
    %v2232 = vpop.f32.mrf.mxu0
    %v2233 = vadd.f32 0.0, %v2232
    %2234 = vdwg.mxu0
    %2235 = vrot.lane.b32.xlu0 %v2114, 62
    %v2236 = vpop.permute.xlu0 %2235
    %2237 = vrot.lane.b32.xlu0 %v2115, 62
    %v2238 = vpop.permute.xlu0 %2237
    %2239 = vrot.lane.b32.xlu0 %v2116, 62
    %v2240 = vpop.permute.xlu0 %2239
    %2241 = vrot.lane.b32.xlu0 %v2117, 62
    %v2242 = vpop.permute.xlu0 %2241
    %2243 = vrot.lane.b32.xlu0 %v2118, 62
    %v2244 = vpop.permute.xlu0 %2243
    %2245 = vrot.lane.b32.xlu0 %v2119, 62
    %v2246 = vpop.permute.xlu0 %2245
    %2247 = vrot.lane.b32.xlu0 %v2120, 62
    %v2248 = vpop.permute.xlu0 %2247
    %2249 = vrot.lane.b32.xlu0 %v2121, 62
    %v2250 = vpop.permute.xlu0 %2249
    %2251 = vrot.lane.b32.xlu0 %v2122, 62
    %v2252 = vpop.permute.xlu0 %2251
    %2253 = vrot.lane.b32.xlu0 %v2123, 62
    %v2254 = vpop.permute.xlu0 %2253
    %2255 = vrot.lane.b32.xlu0 %v2124, 62
    %v2256 = vpop.permute.xlu0 %2255
    %2257 = vrot.lane.b32.xlu0 %v2125, 62
    %v2258 = vpop.permute.xlu0 %2257
    %2259 = vrot.lane.b32.xlu0 %v2126, 62
    %v2260 = vpop.permute.xlu0 %2259
    %2261 = vrot.lane.b32.xlu0 %v2127, 62
    %v2262 = vpop.permute.xlu0 %2261
    %2263 = vrot.lane.b32.xlu0 %v2128, 62
    %v2264 = vpop.permute.xlu0 %2263
    %2265 = vrot.lane.b32.xlu0 %v2129, 62
    %v2266 = vpop.permute.xlu0 %2265
    %2283 = vmatpush.msra.mxu0 %v2266
    %2284 = vmatpush.msra.mxu0 %v2264
    %2285 = vmatpush.msra.mxu0 %v2262
    %2286 = vmatpush.msra.mxu0 %v2260
    %2287 = vmatpush.msra.mxu0 %v2258
    %2288 = vmatpush.msra.mxu0 %v2256
    %2289 = vmatpush.msra.mxu0 %v2254
    %2290 = vmatpush.msra.mxu0 %v2252
    %2291 = vmatpush.msra.mxu0 %v2250
    %2292 = vmatpush.msra.mxu0 %v2248
    %2293 = vmatpush.msra.mxu0 %v2246
    %2294 = vmatpush.msra.mxu0 %v2244
    %2295 = vmatpush.msra.mxu0 %v2242
    %2296 = vmatpush.msra.mxu0 %v2240
    %2297 = vmatpush.msra.mxu0 %v2238
    %2298 = vmatpush.msra.mxu0 %v2236
    %2299 = vmatmul.f32.gmra.mxu0 %v2034
    %v2300 = vpop.f32.mrf.mxu0
    %v2301 = vadd.f32 0.0, %v2300
    %2302 = vmatmul.f32.gmra.mxu0 %v2037
    %v2303 = vpop.f32.mrf.mxu0
    %v2304 = vadd.f32 0.0, %v2303
    %2305 = vmatmul.f32.gmra.mxu0 %v2040
    %v2306 = vpop.f32.mrf.mxu0
    %v2307 = vadd.f32 0.0, %v2306
    %2308 = vmatmul.f32.gmra.mxu0 %v2043
    %v2309 = vpop.f32.mrf.mxu0
    %v2310 = vadd.f32 0.0, %v2309
    %2311 = vmatmul.f32.gmra.mxu0 %v2046
    %v2312 = vpop.f32.mrf.mxu0
    %v2313 = vadd.f32 0.0, %v2312
    %2314 = vmatmul.f32.gmra.mxu0 %v2049
    %v2315 = vpop.f32.mrf.mxu0
    %v2316 = vadd.f32 0.0, %v2315
    %2317 = vmatmul.f32.gmra.mxu0 %v2052
    %v2318 = vpop.f32.mrf.mxu0
    %v2319 = vadd.f32 0.0, %v2318
    %2320 = vmatmul.f32.gmra.mxu0 %v2055
    %v2321 = vpop.f32.mrf.mxu0
    %v2322 = vadd.f32 0.0, %v2321
    %2323 = vdwg.mxu0
    %v2324 = vadd.f32 %v2212, %v2301
    %v2325 = vadd.f32 %v2215, %v2304
    %v2326 = vadd.f32 %v2218, %v2307
    %v2327 = vadd.f32 %v2221, %v2310
    %v2328 = vadd.f32 %v2224, %v2313
    %v2329 = vadd.f32 %v2227, %v2316
    %v2330 = vadd.f32 %v2230, %v2319
    %v2331 = vadd.f32 %v2233, %v2322
    %v2332 = vxor.u32 %v2324, 2147483648
    %v2333 = vxor.u32 %v2325, 2147483648
    %v2334 = vxor.u32 %v2326, 2147483648
    %v2335 = vxor.u32 %v2327, 2147483648
    %v2336 = vxor.u32 %v2328, 2147483648
    %v2337 = vxor.u32 %v2329, 2147483648
    %v2338 = vxor.u32 %v2330, 2147483648
    %v2339 = vxor.u32 %v2331, 2147483648
    %v2340 = vmul.f32 %v2332, 1.442695
    %v2341 = vpow.pop %v2340
    %v2342 = vmul.f32 %v2333, 1.442695
    %v2343 = vpow.pop %v2342
    %v2344 = vmul.f32 %v2334, 1.442695
    %v2345 = vpow.pop %v2344
    %v2346 = vmul.f32 %v2335, 1.442695
    %v2347 = vpow.pop %v2346
    %v2348 = vmul.f32 %v2336, 1.442695
    %v2349 = vpow.pop %v2348
    %v2350 = vmul.f32 %v2337, 1.442695
    %v2351 = vpow.pop %v2350
    %v2352 = vmul.f32 %v2338, 1.442695
    %v2353 = vpow.pop %v2352
    %v2354 = vmul.f32 %v2339, 1.442695
    %v2355 = vpow.pop %v2354
    %v2356 = vadd.f32 %v2341, 1.0
    %v2357 = vadd.f32 %v2343, 1.0
    %v2358 = vadd.f32 %v2345, 1.0
    %v2359 = vadd.f32 %v2347, 1.0
    %v2360 = vadd.f32 %v2349, 1.0
    %v2361 = vadd.f32 %v2351, 1.0
    %v2362 = vadd.f32 %v2353, 1.0
    %v2363 = vadd.f32 %v2355, 1.0
    %v2364 = vrcp.pop %v2356
    %v2365 = vmul.f32 %v2356, %v2364
    %v2366 = vsub.f32 1.0, %v2365
    %v2367 = vmul.f32 %v2364, %v2366
    %v2368 = vadd.f32 %v2364, %v2367
    %vm2369 = vweird.f32 %v2356
    %vm2370 = vweird.f32 %v2364
    %vm2371 = vmor %vm2369, %vm2370
    %v2372 = vsel %vm2371, %v2364, %v2368
    %v2373 = vand.u32 2147483647, %v2356
    %vm2374 = vcmp.eq.f32.partialorder %v2373, 8.507059e+37
    %v2375 = vand.u32 %v2356, 2147483648
    %v2376 = vor.u32 1.1754944e-38, %v2375
    %v2377 = vsel %vm2374, %v2376, %v2372
    %v2378 = vmul.f32 1.0, %v2377
    %v2379 = vrcp.pop %v2357
    %v2380 = vmul.f32 %v2357, %v2379
    %v2381 = vsub.f32 1.0, %v2380
    %v2382 = vmul.f32 %v2379, %v2381
    %v2383 = vadd.f32 %v2379, %v2382
    %vm2384 = vweird.f32 %v2357
    %vm2385 = vweird.f32 %v2379
    %vm2386 = vmor %vm2384, %vm2385
    %v2387 = vsel %vm2386, %v2379, %v2383
    %v2388 = vand.u32 2147483647, %v2357
    %vm2389 = vcmp.eq.f32.partialorder %v2388, 8.507059e+37
    %v2390 = vand.u32 %v2357, 2147483648
    %v2391 = vor.u32 1.1754944e-38, %v2390
    %v2392 = vsel %vm2389, %v2391, %v2387
    %v2393 = vmul.f32 1.0, %v2392
    %v2394 = vrcp.pop %v2358
    %v2395 = vmul.f32 %v2358, %v2394
    %v2396 = vsub.f32 1.0, %v2395
    %v2397 = vmul.f32 %v2394, %v2396
    %v2398 = vadd.f32 %v2394, %v2397
    %vm2399 = vweird.f32 %v2358
    %vm2400 = vweird.f32 %v2394
    %vm2401 = vmor %vm2399, %vm2400
    %v2402 = vsel %vm2401, %v2394, %v2398
    %v2403 = vand.u32 2147483647, %v2358
    %vm2404 = vcmp.eq.f32.partialorder %v2403, 8.507059e+37
    %v2405 = vand.u32 %v2358, 2147483648
    %v2406 = vor.u32 1.1754944e-38, %v2405
    %v2407 = vsel %vm2404, %v2406, %v2402
    %v2408 = vmul.f32 1.0, %v2407
    %v2409 = vrcp.pop %v2359
    %v2410 = vmul.f32 %v2359, %v2409
    %v2411 = vsub.f32 1.0, %v2410
    %v2412 = vmul.f32 %v2409, %v2411
    %v2413 = vadd.f32 %v2409, %v2412
    %vm2414 = vweird.f32 %v2359
    %vm2415 = vweird.f32 %v2409
    %vm2416 = vmor %vm2414, %vm2415
    %v2417 = vsel %vm2416, %v2409, %v2413
    %v2418 = vand.u32 2147483647, %v2359
    %vm2419 = vcmp.eq.f32.partialorder %v2418, 8.507059e+37
    %v2420 = vand.u32 %v2359, 2147483648
    %v2421 = vor.u32 1.1754944e-38, %v2420
    %v2422 = vsel %vm2419, %v2421, %v2417
    %v2423 = vmul.f32 1.0, %v2422
    %v2424 = vrcp.pop %v2360
    %v2425 = vmul.f32 %v2360, %v2424
    %v2426 = vsub.f32 1.0, %v2425
    %v2427 = vmul.f32 %v2424, %v2426
    %v2428 = vadd.f32 %v2424, %v2427
    %vm2429 = vweird.f32 %v2360
    %vm2430 = vweird.f32 %v2424
    %vm2431 = vmor %vm2429, %vm2430
    %v2432 = vsel %vm2431, %v2424, %v2428
    %v2433 = vand.u32 2147483647, %v2360
    %vm2434 = vcmp.eq.f32.partialorder %v2433, 8.507059e+37
    %v2435 = vand.u32 %v2360, 2147483648
    %v2436 = vor.u32 1.1754944e-38, %v2435
    %v2437 = vsel %vm2434, %v2436, %v2432
    %v2438 = vmul.f32 1.0, %v2437
    %v2439 = vrcp.pop %v2361
    %v2440 = vmul.f32 %v2361, %v2439
    %v2441 = vsub.f32 1.0, %v2440
    %v2442 = vmul.f32 %v2439, %v2441
    %v2443 = vadd.f32 %v2439, %v2442
    %vm2444 = vweird.f32 %v2361
    %vm2445 = vweird.f32 %v2439
    %vm2446 = vmor %vm2444, %vm2445
    %v2447 = vsel %vm2446, %v2439, %v2443
    %v2448 = vand.u32 2147483647, %v2361
    %vm2449 = vcmp.eq.f32.partialorder %v2448, 8.507059e+37
    %v2450 = vand.u32 %v2361, 2147483648
    %v2451 = vor.u32 1.1754944e-38, %v2450
    %v2452 = vsel %vm2449, %v2451, %v2447
    %v2453 = vmul.f32 1.0, %v2452
    %v2454 = vrcp.pop %v2362
    %v2455 = vmul.f32 %v2362, %v2454
    %v2456 = vsub.f32 1.0, %v2455
    %v2457 = vmul.f32 %v2454, %v2456
    %v2458 = vadd.f32 %v2454, %v2457
    %vm2459 = vweird.f32 %v2362
    %vm2460 = vweird.f32 %v2454
    %vm2461 = vmor %vm2459, %vm2460
    %v2462 = vsel %vm2461, %v2454, %v2458
    %v2463 = vand.u32 2147483647, %v2362
    %vm2464 = vcmp.eq.f32.partialorder %v2463, 8.507059e+37
    %v2465 = vand.u32 %v2362, 2147483648
    %v2466 = vor.u32 1.1754944e-38, %v2465
    %v2467 = vsel %vm2464, %v2466, %v2462
    %v2468 = vmul.f32 1.0, %v2467
    %v2469 = vrcp.pop %v2363
    %v2470 = vmul.f32 %v2363, %v2469
    %v2471 = vsub.f32 1.0, %v2470
    %v2472 = vmul.f32 %v2469, %v2471
    %v2473 = vadd.f32 %v2469, %v2472
    %vm2474 = vweird.f32 %v2363
    %vm2475 = vweird.f32 %v2469
    %vm2476 = vmor %vm2474, %vm2475
    %v2477 = vsel %vm2476, %v2469, %v2473
    %v2478 = vand.u32 2147483647, %v2363
    %vm2479 = vcmp.eq.f32.partialorder %v2478, 8.507059e+37
    %v2480 = vand.u32 %v2363, 2147483648
    %v2481 = vor.u32 1.1754944e-38, %v2480
    %v2482 = vsel %vm2479, %v2481, %v2477
    %v2483 = vmul.f32 1.0, %v2482
    %2484 = vrot.lane.b32.xlu0 %v2114, 61
    %v2485 = vpop.permute.xlu0 %2484
    %2486 = vrot.lane.b32.xlu0 %v2115, 61
    %v2487 = vpop.permute.xlu0 %2486
    %2488 = vrot.lane.b32.xlu0 %v2116, 61
    %v2489 = vpop.permute.xlu0 %2488
    %2490 = vrot.lane.b32.xlu0 %v2117, 61
    %v2491 = vpop.permute.xlu0 %2490
    %2492 = vrot.lane.b32.xlu0 %v2118, 61
    %v2493 = vpop.permute.xlu0 %2492
    %2494 = vrot.lane.b32.xlu0 %v2119, 61
    %v2495 = vpop.permute.xlu0 %2494
    %2496 = vrot.lane.b32.xlu0 %v2120, 61
    %v2497 = vpop.permute.xlu0 %2496
    %2498 = vrot.lane.b32.xlu0 %v2121, 61
    %v2499 = vpop.permute.xlu0 %2498
    %2500 = vrot.lane.b32.xlu0 %v2122, 61
    %v2501 = vpop.permute.xlu0 %2500
    %2502 = vrot.lane.b32.xlu0 %v2123, 61
    %v2503 = vpop.permute.xlu0 %2502
    %2504 = vrot.lane.b32.xlu0 %v2124, 61
    %v2505 = vpop.permute.xlu0 %2504
    %2506 = vrot.lane.b32.xlu0 %v2125, 61
    %v2507 = vpop.permute.xlu0 %2506
    %2508 = vrot.lane.b32.xlu0 %v2126, 61
    %v2509 = vpop.permute.xlu0 %2508
    %2510 = vrot.lane.b32.xlu0 %v2127, 61
    %v2511 = vpop.permute.xlu0 %2510
    %2512 = vrot.lane.b32.xlu0 %v2128, 61
    %v2513 = vpop.permute.xlu0 %2512
    %2514 = vrot.lane.b32.xlu0 %v2129, 61
    %v2515 = vpop.permute.xlu0 %2514
    %2532 = vmatpush.msra.mxu0 %v2515
    %2533 = vmatpush.msra.mxu0 %v2513
    %2534 = vmatpush.msra.mxu0 %v2511
    %2535 = vmatpush.msra.mxu0 %v2509
    %2536 = vmatpush.msra.mxu0 %v2507
    %2537 = vmatpush.msra.mxu0 %v2505
    %2538 = vmatpush.msra.mxu0 %v2503
    %2539 = vmatpush.msra.mxu0 %v2501
    %2540 = vmatpush.msra.mxu0 %v2499
    %2541 = vmatpush.msra.mxu0 %v2497
    %2542 = vmatpush.msra.mxu0 %v2495
    %2543 = vmatpush.msra.mxu0 %v2493
    %2544 = vmatpush.msra.mxu0 %v2491
    %2545 = vmatpush.msra.mxu0 %v2489
    %2546 = vmatpush.msra.mxu0 %v2487
    %2547 = vmatpush.msra.mxu0 %v2485
    %2548 = vmatmul.f32.gmra.mxu0 %v2091
    %v2549 = vpop.f32.mrf.mxu0
    %v2550 = vadd.f32 0.0, %v2549
    %2551 = vmatmul.f32.gmra.mxu0 %v2094
    %v2552 = vpop.f32.mrf.mxu0
    %v2553 = vadd.f32 0.0, %v2552
    %2554 = vmatmul.f32.gmra.mxu0 %v2097
    %v2555 = vpop.f32.mrf.mxu0
    %v2556 = vadd.f32 0.0, %v2555
    %2557 = vmatmul.f32.gmra.mxu0 %v2100
    %v2558 = vpop.f32.mrf.mxu0
    %v2559 = vadd.f32 0.0, %v2558
    %2560 = vmatmul.f32.gmra.mxu0 %v2103
    %v2561 = vpop.f32.mrf.mxu0
    %v2562 = vadd.f32 0.0, %v2561
    %2563 = vmatmul.f32.gmra.mxu0 %v2106
    %v2564 = vpop.f32.mrf.mxu0
    %v2565 = vadd.f32 0.0, %v2564
    %2566 = vmatmul.f32.gmra.mxu0 %v2109
    %v2567 = vpop.f32.mrf.mxu0
    %v2568 = vadd.f32 0.0, %v2567
    %2569 = vmatmul.f32.gmra.mxu0 %v2112
    %v2570 = vpop.f32.mrf.mxu0
    %v2571 = vadd.f32 0.0, %v2570
    %2572 = vdwg.mxu0
    %2581 = vrot.lane.b32.xlu0 %v2550, 1
    %v2582 = vpop.permute.xlu0 %2581
    %2583 = vrot.lane.b32.xlu0 %v2553, 1
    %v2584 = vpop.permute.xlu0 %2583
    %2585 = vrot.lane.b32.xlu0 %v2556, 1
    %v2586 = vpop.permute.xlu0 %2585
    %2587 = vrot.lane.b32.xlu0 %v2559, 1
    %v2588 = vpop.permute.xlu0 %2587
    %2589 = vrot.lane.b32.xlu0 %v2562, 1
    %v2590 = vpop.permute.xlu0 %2589
    %2591 = vrot.lane.b32.xlu0 %v2565, 1
    %v2592 = vpop.permute.xlu0 %2591
    %2593 = vrot.lane.b32.xlu0 %v2568, 1
    %v2594 = vpop.permute.xlu0 %2593
    %2595 = vrot.lane.b32.xlu0 %v2571, 1
    %v2596 = vpop.permute.xlu0 %2595
    %v2605 = vadd.f32 %v2212, %v2582
    %v2606 = vadd.f32 %v2215, %v2584
    %v2607 = vadd.f32 %v2218, %v2586
    %v2608 = vadd.f32 %v2221, %v2588
    %v2609 = vadd.f32 %v2224, %v2590
    %v2610 = vadd.f32 %v2227, %v2592
    %v2611 = vadd.f32 %v2230, %v2594
    %v2612 = vadd.f32 %v2233, %v2596
    %v2613 = vxor.u32 %v2605, 2147483648
    %v2614 = vxor.u32 %v2606, 2147483648
    %v2615 = vxor.u32 %v2607, 2147483648
    %v2616 = vxor.u32 %v2608, 2147483648
    %v2617 = vxor.u32 %v2609, 2147483648
    %v2618 = vxor.u32 %v2610, 2147483648
    %v2619 = vxor.u32 %v2611, 2147483648
    %v2620 = vxor.u32 %v2612, 2147483648
    %v2621 = vmul.f32 %v2613, 1.442695
    %v2622 = vpow.pop %v2621
    %v2623 = vmul.f32 %v2614, 1.442695
    %v2624 = vpow.pop %v2623
    %v2625 = vmul.f32 %v2615, 1.442695
    %v2626 = vpow.pop %v2625
    %v2627 = vmul.f32 %v2616, 1.442695
    %v2628 = vpow.pop %v2627
    %v2629 = vmul.f32 %v2617, 1.442695
    %v2630 = vpow.pop %v2629
    %v2631 = vmul.f32 %v2618, 1.442695
    %v2632 = vpow.pop %v2631
    %v2633 = vmul.f32 %v2619, 1.442695
    %v2634 = vpow.pop %v2633
    %v2635 = vmul.f32 %v2620, 1.442695
    %v2636 = vpow.pop %v2635
    %v2637 = vadd.f32 %v2622, 1.0
    %v2638 = vadd.f32 %v2624, 1.0
    %v2639 = vadd.f32 %v2626, 1.0
    %v2640 = vadd.f32 %v2628, 1.0
    %v2641 = vadd.f32 %v2630, 1.0
    %v2642 = vadd.f32 %v2632, 1.0
    %v2643 = vadd.f32 %v2634, 1.0
    %v2644 = vadd.f32 %v2636, 1.0
    %v2645 = vrcp.pop %v2637
    %v2646 = vmul.f32 %v2637, %v2645
    %v2647 = vsub.f32 1.0, %v2646
    %v2648 = vmul.f32 %v2645, %v2647
    %v2649 = vadd.f32 %v2645, %v2648
    %vm2650 = vweird.f32 %v2637
    %vm2651 = vweird.f32 %v2645
    %vm2652 = vmor %vm2650, %vm2651
    %v2653 = vsel %vm2652, %v2645, %v2649
    %v2654 = vand.u32 2147483647, %v2637
    %vm2655 = vcmp.eq.f32.partialorder %v2654, 8.507059e+37
    %v2656 = vand.u32 %v2637, 2147483648
    %v2657 = vor.u32 1.1754944e-38, %v2656
    %v2658 = vsel %vm2655, %v2657, %v2653
    %v2659 = vmul.f32 1.0, %v2658
    %v2660 = vrcp.pop %v2638
    %v2661 = vmul.f32 %v2638, %v2660
    %v2662 = vsub.f32 1.0, %v2661
    %v2663 = vmul.f32 %v2660, %v2662
    %v2664 = vadd.f32 %v2660, %v2663
    %vm2665 = vweird.f32 %v2638
    %vm2666 = vweird.f32 %v2660
    %vm2667 = vmor %vm2665, %vm2666
    %v2668 = vsel %vm2667, %v2660, %v2664
    %v2669 = vand.u32 2147483647, %v2638
    %vm2670 = vcmp.eq.f32.partialorder %v2669, 8.507059e+37
    %v2671 = vand.u32 %v2638, 2147483648
    %v2672 = vor.u32 1.1754944e-38, %v2671
    %v2673 = vsel %vm2670, %v2672, %v2668
    %v2674 = vmul.f32 1.0, %v2673
    %v2675 = vrcp.pop %v2639
    %v2676 = vmul.f32 %v2639, %v2675
    %v2677 = vsub.f32 1.0, %v2676
    %v2678 = vmul.f32 %v2675, %v2677
    %v2679 = vadd.f32 %v2675, %v2678
    %vm2680 = vweird.f32 %v2639
    %vm2681 = vweird.f32 %v2675
    %vm2682 = vmor %vm2680, %vm2681
    %v2683 = vsel %vm2682, %v2675, %v2679
    %v2684 = vand.u32 2147483647, %v2639
    %vm2685 = vcmp.eq.f32.partialorder %v2684, 8.507059e+37
    %v2686 = vand.u32 %v2639, 2147483648
    %v2687 = vor.u32 1.1754944e-38, %v2686
    %v2688 = vsel %vm2685, %v2687, %v2683
    %v2689 = vmul.f32 1.0, %v2688
    %v2690 = vrcp.pop %v2640
    %v2691 = vmul.f32 %v2640, %v2690
    %v2692 = vsub.f32 1.0, %v2691
    %v2693 = vmul.f32 %v2690, %v2692
    %v2694 = vadd.f32 %v2690, %v2693
    %vm2695 = vweird.f32 %v2640
    %vm2696 = vweird.f32 %v2690
    %vm2697 = vmor %vm2695, %vm2696
    %v2698 = vsel %vm2697, %v2690, %v2694
    %v2699 = vand.u32 2147483647, %v2640
    %vm2700 = vcmp.eq.f32.partialorder %v2699, 8.507059e+37
    %v2701 = vand.u32 %v2640, 2147483648
    %v2702 = vor.u32 1.1754944e-38, %v2701
    %v2703 = vsel %vm2700, %v2702, %v2698
    %v2704 = vmul.f32 1.0, %v2703
    %v2705 = vrcp.pop %v2641
    %v2706 = vmul.f32 %v2641, %v2705
    %v2707 = vsub.f32 1.0, %v2706
    %v2708 = vmul.f32 %v2705, %v2707
    %v2709 = vadd.f32 %v2705, %v2708
    %vm2710 = vweird.f32 %v2641
    %vm2711 = vweird.f32 %v2705
    %vm2712 = vmor %vm2710, %vm2711
    %v2713 = vsel %vm2712, %v2705, %v2709
    %v2714 = vand.u32 2147483647, %v2641
    %vm2715 = vcmp.eq.f32.partialorder %v2714, 8.507059e+37
    %v2716 = vand.u32 %v2641, 2147483648
    %v2717 = vor.u32 1.1754944e-38, %v2716
    %v2718 = vsel %vm2715, %v2717, %v2713
    %v2719 = vmul.f32 1.0, %v2718
    %v2720 = vrcp.pop %v2642
    %v2721 = vmul.f32 %v2642, %v2720
    %v2722 = vsub.f32 1.0, %v2721
    %v2723 = vmul.f32 %v2720, %v2722
    %v2724 = vadd.f32 %v2720, %v2723
    %vm2725 = vweird.f32 %v2642
    %vm2726 = vweird.f32 %v2720
    %vm2727 = vmor %vm2725, %vm2726
    %v2728 = vsel %vm2727, %v2720, %v2724
    %v2729 = vand.u32 2147483647, %v2642
    %vm2730 = vcmp.eq.f32.partialorder %v2729, 8.507059e+37
    %v2731 = vand.u32 %v2642, 2147483648
    %v2732 = vor.u32 1.1754944e-38, %v2731
    %v2733 = vsel %vm2730, %v2732, %v2728
    %v2734 = vmul.f32 1.0, %v2733
    %v2735 = vrcp.pop %v2643
    %v2736 = vmul.f32 %v2643, %v2735
    %v2737 = vsub.f32 1.0, %v2736
    %v2738 = vmul.f32 %v2735, %v2737
    %v2739 = vadd.f32 %v2735, %v2738
    %vm2740 = vweird.f32 %v2643
    %vm2741 = vweird.f32 %v2735
    %vm2742 = vmor %vm2740, %vm2741
    %v2743 = vsel %vm2742, %v2735, %v2739
    %v2744 = vand.u32 2147483647, %v2643
    %vm2745 = vcmp.eq.f32.partialorder %v2744, 8.507059e+37
    %v2746 = vand.u32 %v2643, 2147483648
    %v2747 = vor.u32 1.1754944e-38, %v2746
    %v2748 = vsel %vm2745, %v2747, %v2743
    %v2749 = vmul.f32 1.0, %v2748
    %v2750 = vrcp.pop %v2644
    %v2751 = vmul.f32 %v2644, %v2750
    %v2752 = vsub.f32 1.0, %v2751
    %v2753 = vmul.f32 %v2750, %v2752
    %v2754 = vadd.f32 %v2750, %v2753
    %vm2755 = vweird.f32 %v2644
    %vm2756 = vweird.f32 %v2750
    %vm2757 = vmor %vm2755, %vm2756
    %v2758 = vsel %vm2757, %v2750, %v2754
    %v2759 = vand.u32 2147483647, %v2644
    %vm2760 = vcmp.eq.f32.partialorder %v2759, 8.507059e+37
    %v2761 = vand.u32 %v2644, 2147483648
    %v2762 = vor.u32 1.1754944e-38, %v2761
    %v2763 = vsel %vm2760, %v2762, %v2758
    %v2764 = vmul.f32 1.0, %v2763
    %v2765 = vsub.f32 %v2034, %v81
    %v2766 = vsub.f32 %v2037, %v82
    %v2767 = vsub.f32 %v2040, %v83
    %v2768 = vsub.f32 %v2043, %v84
    %v2769 = vsub.f32 %v2046, %v85
    %v2770 = vsub.f32 %v2049, %v86
    %v2771 = vsub.f32 %v2052, %v87
    %v2772 = vsub.f32 %v2055, %v88
    %2774 = vset.pattern.permute.xlu0 0
    %2775 = vperm.xlu0 %2774, %v2378
    %v2776 = vpop.permute.xlu0 %2775
    %2779 = vset.pattern.permute.xlu0 0
    %2780 = vperm.xlu0 %2779, %v2393
    %v2781 = vpop.permute.xlu0 %2780
    %2784 = vset.pattern.permute.xlu0 0
    %2785 = vperm.xlu0 %2784, %v2408
    %v2786 = vpop.permute.xlu0 %2785
    %2789 = vset.pattern.permute.xlu0 0
    %2790 = vperm.xlu0 %2789, %v2423
    %v2791 = vpop.permute.xlu0 %2790
    %2794 = vset.pattern.permute.xlu0 0
    %2795 = vperm.xlu0 %2794, %v2438
    %v2796 = vpop.permute.xlu0 %2795
    %2799 = vset.pattern.permute.xlu0 0
    %2800 = vperm.xlu0 %2799, %v2453
    %v2801 = vpop.permute.xlu0 %2800
    %2804 = vset.pattern.permute.xlu0 0
    %2805 = vperm.xlu0 %2804, %v2468
    %v2806 = vpop.permute.xlu0 %2805
    %2809 = vset.pattern.permute.xlu0 0
    %2810 = vperm.xlu0 %2809, %v2483
    %v2811 = vpop.permute.xlu0 %2810
    %v2813 = vmul.f32 %v2776, %v2765
    %v2814 = vmul.f32 %v2781, %v2766
    %v2815 = vmul.f32 %v2786, %v2767
    %v2816 = vmul.f32 %v2791, %v2768
    %v2817 = vmul.f32 %v2796, %v2769
    %v2818 = vmul.f32 %v2801, %v2770
    %v2819 = vmul.f32 %v2806, %v2771
    %v2820 = vmul.f32 %v2811, %v2772
    %v2821 = vadd.f32 %v81, %v2813
    %v2822 = vadd.f32 %v82, %v2814
    %v2823 = vadd.f32 %v83, %v2815
    %v2824 = vadd.f32 %v84, %v2816
    %v2825 = vadd.f32 %v85, %v2817
    %v2826 = vadd.f32 %v86, %v2818
    %v2827 = vadd.f32 %v87, %v2819
    %v2828 = vadd.f32 %v88, %v2820
    %v2829 = vsub.f32 %v2091, %v81
    %v2830 = vsub.f32 %v2094, %v82
    %v2831 = vsub.f32 %v2097, %v83
    %v2832 = vsub.f32 %v2100, %v84
    %v2833 = vsub.f32 %v2103, %v85
    %v2834 = vsub.f32 %v2106, %v86
    %v2835 = vsub.f32 %v2109, %v87
    %v2836 = vsub.f32 %v2112, %v88
    %2838 = vset.pattern.permute.xlu0 1
    %2839 = vperm.xlu0 %2838, %v2659
    %v2840 = vpop.permute.xlu0 %2839
    %2843 = vset.pattern.permute.xlu0 1
    %2844 = vperm.xlu0 %2843, %v2674
    %v2845 = vpop.permute.xlu0 %2844
    %2848 = vset.pattern.permute.xlu0 1
    %2849 = vperm.xlu0 %2848, %v2689
    %v2850 = vpop.permute.xlu0 %2849
    %2853 = vset.pattern.permute.xlu0 1
    %2854 = vperm.xlu0 %2853, %v2704
    %v2855 = vpop.permute.xlu0 %2854
    %2858 = vset.pattern.permute.xlu0 1
    %2859 = vperm.xlu0 %2858, %v2719
    %v2860 = vpop.permute.xlu0 %2859
    %2863 = vset.pattern.permute.xlu0 1
    %2864 = vperm.xlu0 %2863, %v2734
    %v2865 = vpop.permute.xlu0 %2864
    %2868 = vset.pattern.permute.xlu0 1
    %2869 = vperm.xlu0 %2868, %v2749
    %v2870 = vpop.permute.xlu0 %2869
    %2873 = vset.pattern.permute.xlu0 1
    %2874 = vperm.xlu0 %2873, %v2764
    %v2875 = vpop.permute.xlu0 %2874
    %v2877 = vmul.f32 %v2840, %v2829
    %v2878 = vmul.f32 %v2845, %v2830
    %v2879 = vmul.f32 %v2850, %v2831
    %v2880 = vmul.f32 %v2855, %v2832
    %v2881 = vmul.f32 %v2860, %v2833
    %v2882 = vmul.f32 %v2865, %v2834
    %v2883 = vmul.f32 %v2870, %v2835
    %v2884 = vmul.f32 %v2875, %v2836
    %v2885 = vadd.f32 %v81, %v2877
    %v2886 = vadd.f32 %v82, %v2878
    %v2887 = vadd.f32 %v83, %v2879
    %v2888 = vadd.f32 %v84, %v2880
    %v2889 = vadd.f32 %v85, %v2881
    %v2890 = vadd.f32 %v86, %v2882
    %v2891 = vadd.f32 %v87, %v2883
    %v2892 = vadd.f32 %v88, %v2884
    %v2893 = vld [vmem:[#allocation8 + $0x1d8] sm:$0xff]
    %v2894 = vld [vmem:[#allocation8 + $0x1e0] sm:$0xff]
    %v2895 = vld [vmem:[#allocation8 + $0x1e8] sm:$0xff]
    %v2896 = vld [vmem:[#allocation8 + $0x1f0] sm:$0xff]
    %v2897 = vld [vmem:[#allocation8 + $0x1f8] sm:$0xff]
    %v2898 = vld [vmem:[#allocation8 + $0x200] sm:$0xff]
    %v2899 = vld [vmem:[#allocation8 + $0x208] sm:$0xff]
    %v2900 = vld [vmem:[#allocation8 + $0x210] sm:$0xff]
    %v2901 = vld [vmem:[#allocation8 + $0x218] sm:$0xff]
    %v2902 = vld [vmem:[#allocation8 + $0x220] sm:$0xff]
    %v2903 = vld [vmem:[#allocation8 + $0x228] sm:$0xff]
    %v2904 = vld [vmem:[#allocation8 + $0x230] sm:$0xff]
    %v2905 = vld [vmem:[#allocation8 + $0x238] sm:$0xff]
    %v2906 = vld [vmem:[#allocation8 + $0x240] sm:$0xff]
    %v2907 = vld [vmem:[#allocation8 + $0x248] sm:$0xff]
    %v2908 = vld [vmem:[#allocation8 + $0x250] sm:$0xff]
    %v2909 = vld [vmem:[#allocation8 + $0x5f8] sm:$0x1]
    %v2910 = vperm.slane %v2909, 0
    %2911 = vmatpush.msra.mxu0 %v2908
    %2912 = vmatpush.msra.mxu0 %v2907
    %2913 = vmatpush.msra.mxu0 %v2906
    %2914 = vmatpush.msra.mxu0 %v2905
    %2915 = vmatpush.msra.mxu0 %v2904
    %2916 = vmatpush.msra.mxu0 %v2903
    %2917 = vmatpush.msra.mxu0 %v2902
    %2918 = vmatpush.msra.mxu0 %v2901
    %2919 = vmatpush.msra.mxu0 %v2900
    %2920 = vmatpush.msra.mxu0 %v2899
    %2921 = vmatpush.msra.mxu0 %v2898
    %2922 = vmatpush.msra.mxu0 %v2897
    %2923 = vmatpush.msra.mxu0 %v2896
    %2924 = vmatpush.msra.mxu0 %v2895
    %2925 = vmatpush.msra.mxu0 %v2894
    %2926 = vmatpush.msra.mxu0 %v2893
    %2927 = vmatmul.f32.gmra.mxu0 %v81
    %v2928 = vpop.f32.mrf.mxu0
    %v2929 = vadd.f32 %v2910, %v2928
    %2930 = vmatmul.f32.gmra.mxu0 %v82
    %v2931 = vpop.f32.mrf.mxu0
    %v2932 = vadd.f32 %v2910, %v2931
    %2933 = vmatmul.f32.gmra.mxu0 %v83
    %v2934 = vpop.f32.mrf.mxu0
    %v2935 = vadd.f32 %v2910, %v2934
    %2936 = vmatmul.f32.gmra.mxu0 %v84
    %v2937 = vpop.f32.mrf.mxu0
    %v2938 = vadd.f32 %v2910, %v2937
    %2939 = vmatmul.f32.gmra.mxu0 %v85
    %v2940 = vpop.f32.mrf.mxu0
    %v2941 = vadd.f32 %v2910, %v2940
    %2942 = vmatmul.f32.gmra.mxu0 %v86
    %v2943 = vpop.f32.mrf.mxu0
    %v2944 = vadd.f32 %v2910, %v2943
    %2945 = vmatmul.f32.gmra.mxu0 %v87
    %v2946 = vpop.f32.mrf.mxu0
    %v2947 = vadd.f32 %v2910, %v2946
    %2948 = vmatmul.f32.gmra.mxu0 %v88
    %v2949 = vpop.f32.mrf.mxu0
    %v2950 = vadd.f32 %v2910, %v2949
    %2951 = vdwg.mxu0
    %v2952 = vld [vmem:[#allocation8 + $0x258] sm:$0xff]
    %v2953 = vld [vmem:[#allocation8 + $0x260] sm:$0xff]
    %v2954 = vld [vmem:[#allocation8 + $0x268] sm:$0xff]
    %v2955 = vld [vmem:[#allocation8 + $0x270] sm:$0xff]
    %v2956 = vld [vmem:[#allocation8 + $0x278] sm:$0xff]
    %v2957 = vld [vmem:[#allocation8 + $0x280] sm:$0xff]
    %v2958 = vld [vmem:[#allocation8 + $0x288] sm:$0xff]
    %v2959 = vld [vmem:[#allocation8 + $0x290] sm:$0xff]
    %v2960 = vld [vmem:[#allocation8 + $0x298] sm:$0xff]
    %v2961 = vld [vmem:[#allocation8 + $0x2a0] sm:$0xff]
    %v2962 = vld [vmem:[#allocation8 + $0x2a8] sm:$0xff]
    %v2963 = vld [vmem:[#allocation8 + $0x2b0] sm:$0xff]
    %v2964 = vld [vmem:[#allocation8 + $0x2b8] sm:$0xff]
    %v2965 = vld [vmem:[#allocation8 + $0x2c0] sm:$0xff]
    %v2966 = vld [vmem:[#allocation8 + $0x2c8] sm:$0xff]
    %v2967 = vld [vmem:[#allocation8 + $0x2d0] sm:$0xff]
    %v2968 = vld [vmem:[#allocation8 + $0x5f9] sm:$0x1]
    %v2969 = vperm.slane %v2968, 0
    %2970 = vmatpush.msra.mxu0 %v2967
    %2971 = vmatpush.msra.mxu0 %v2966
    %2972 = vmatpush.msra.mxu0 %v2965
    %2973 = vmatpush.msra.mxu0 %v2964
    %2974 = vmatpush.msra.mxu0 %v2963
    %2975 = vmatpush.msra.mxu0 %v2962
    %2976 = vmatpush.msra.mxu0 %v2961
    %2977 = vmatpush.msra.mxu0 %v2960
    %2978 = vmatpush.msra.mxu0 %v2959
    %2979 = vmatpush.msra.mxu0 %v2958
    %2980 = vmatpush.msra.mxu0 %v2957
    %2981 = vmatpush.msra.mxu0 %v2956
    %2982 = vmatpush.msra.mxu0 %v2955
    %2983 = vmatpush.msra.mxu0 %v2954
    %2984 = vmatpush.msra.mxu0 %v2953
    %2985 = vmatpush.msra.mxu0 %v2952
    %2986 = vmatmul.f32.gmra.mxu0 %v2821
    %v2987 = vpop.f32.mrf.mxu0
    %v2988 = vadd.f32 %v2969, %v2987
    %2989 = vmatmul.f32.gmra.mxu0 %v2822
    %v2990 = vpop.f32.mrf.mxu0
    %v2991 = vadd.f32 %v2969, %v2990
    %2992 = vmatmul.f32.gmra.mxu0 %v2823
    %v2993 = vpop.f32.mrf.mxu0
    %v2994 = vadd.f32 %v2969, %v2993
    %2995 = vmatmul.f32.gmra.mxu0 %v2824
    %v2996 = vpop.f32.mrf.mxu0
    %v2997 = vadd.f32 %v2969, %v2996
    %2998 = vmatmul.f32.gmra.mxu0 %v2825
    %v2999 = vpop.f32.mrf.mxu0
    %v3000 = vadd.f32 %v2969, %v2999
    %3001 = vmatmul.f32.gmra.mxu0 %v2826
    %v3002 = vpop.f32.mrf.mxu0
    %v3003 = vadd.f32 %v2969, %v3002
    %3004 = vmatmul.f32.gmra.mxu0 %v2827
    %v3005 = vpop.f32.mrf.mxu0
    %v3006 = vadd.f32 %v2969, %v3005
    %3007 = vmatmul.f32.gmra.mxu0 %v2828
    %v3008 = vpop.f32.mrf.mxu0
    %v3009 = vadd.f32 %v2969, %v3008
    %3010 = vdwg.mxu0
    %v3011 = vld [vmem:[#allocation8 + $0x2d8] sm:$0xff]
    %v3012 = vld [vmem:[#allocation8 + $0x2e0] sm:$0xff]
    %v3013 = vld [vmem:[#allocation8 + $0x2e8] sm:$0xff]
    %v3014 = vld [vmem:[#allocation8 + $0x2f0] sm:$0xff]
    %v3015 = vld [vmem:[#allocation8 + $0x2f8] sm:$0xff]
    %v3016 = vld [vmem:[#allocation8 + $0x300] sm:$0xff]
    %v3017 = vld [vmem:[#allocation8 + $0x308] sm:$0xff]
    %v3018 = vld [vmem:[#allocation8 + $0x310] sm:$0xff]
    %v3019 = vld [vmem:[#allocation8 + $0x318] sm:$0xff]
    %v3020 = vld [vmem:[#allocation8 + $0x320] sm:$0xff]
    %v3021 = vld [vmem:[#allocation8 + $0x328] sm:$0xff]
    %v3022 = vld [vmem:[#allocation8 + $0x330] sm:$0xff]
    %v3023 = vld [vmem:[#allocation8 + $0x338] sm:$0xff]
    %v3024 = vld [vmem:[#allocation8 + $0x340] sm:$0xff]
    %v3025 = vld [vmem:[#allocation8 + $0x348] sm:$0xff]
    %v3026 = vld [vmem:[#allocation8 + $0x350] sm:$0xff]
    %v3027 = vld [vmem:[#allocation8 + $0x5fa] sm:$0x1]
    %v3028 = vperm.slane %v3027, 0
    %3029 = vmatpush.msra.mxu0 %v3026
    %3030 = vmatpush.msra.mxu0 %v3025
    %3031 = vmatpush.msra.mxu0 %v3024
    %3032 = vmatpush.msra.mxu0 %v3023
    %3033 = vmatpush.msra.mxu0 %v3022
    %3034 = vmatpush.msra.mxu0 %v3021
    %3035 = vmatpush.msra.mxu0 %v3020
    %3036 = vmatpush.msra.mxu0 %v3019
    %3037 = vmatpush.msra.mxu0 %v3018
    %3038 = vmatpush.msra.mxu0 %v3017
    %3039 = vmatpush.msra.mxu0 %v3016
    %3040 = vmatpush.msra.mxu0 %v3015
    %3041 = vmatpush.msra.mxu0 %v3014
    %3042 = vmatpush.msra.mxu0 %v3013
    %3043 = vmatpush.msra.mxu0 %v3012
    %3044 = vmatpush.msra.mxu0 %v3011
    %3045 = vmatmul.f32.gmra.mxu0 %v2885
    %v3046 = vpop.f32.mrf.mxu0
    %v3047 = vadd.f32 %v3028, %v3046
    %3048 = vmatmul.f32.gmra.mxu0 %v2886
    %v3049 = vpop.f32.mrf.mxu0
    %v3050 = vadd.f32 %v3028, %v3049
    %3051 = vmatmul.f32.gmra.mxu0 %v2887
    %v3052 = vpop.f32.mrf.mxu0
    %v3053 = vadd.f32 %v3028, %v3052
    %3054 = vmatmul.f32.gmra.mxu0 %v2888
    %v3055 = vpop.f32.mrf.mxu0
    %v3056 = vadd.f32 %v3028, %v3055
    %3057 = vmatmul.f32.gmra.mxu0 %v2889
    %v3058 = vpop.f32.mrf.mxu0
    %v3059 = vadd.f32 %v3028, %v3058
    %3060 = vmatmul.f32.gmra.mxu0 %v2890
    %v3061 = vpop.f32.mrf.mxu0
    %v3062 = vadd.f32 %v3028, %v3061
    %3063 = vmatmul.f32.gmra.mxu0 %v2891
    %v3064 = vpop.f32.mrf.mxu0
    %v3065 = vadd.f32 %v3028, %v3064
    %3066 = vmatmul.f32.gmra.mxu0 %v2892
    %v3067 = vpop.f32.mrf.mxu0
    %v3068 = vadd.f32 %v3028, %v3067
    %3069 = vdwg.mxu0
    %3070 = vmatpush.xpose.msra.mxu0 0.0
    %3071 = vmatpush.xpose.msra.mxu0 0.0
    %3072 = vmatpush.xpose.msra.mxu0 0.0
    %3073 = vmatpush.xpose.msra.mxu0 0.0
    %3074 = vmatpush.xpose.msra.mxu0 0.0
    %3075 = vmatpush.xpose.msra.mxu0 0.0
    %3076 = vmatpush.xpose.msra.mxu0 0.0
    %3077 = vmatpush.xpose.msra.mxu0 0.0
    %3078 = vmatpush.xpose.msra.mxu0 0.0
    %3079 = vmatpush.xpose.msra.mxu0 0.0
    %3080 = vmatpush.xpose.msra.mxu0 0.0
    %3081 = vmatpush.xpose.msra.mxu0 0.0
    %3082 = vmatpush.xpose.msra.mxu0 0.0
    %3083 = vmatpush.xpose.msra.mxu0 0.0
    %3084 = vmatpush.xpose.msra.mxu0 %v2991
    %3085 = vmatpush.xpose.msra.mxu0 %v2988
    %3086 = vmatmul.f32.gmra.mxu0 %v2929
    %v3087 = vpop.f32.mrf.mxu0
    %v3088 = vadd.f32 0.0, %v3087
    %3089 = vmatmul.f32.gmra.mxu0 %v2932
    %v3090 = vpop.f32.mrf.mxu0
    %v3091 = vadd.f32 0.0, %v3090
    %3092 = vdwg.mxu0
    %3093 = vmatpush.xpose.msra.mxu0 0.0
    %3094 = vmatpush.xpose.msra.mxu0 0.0
    %3095 = vmatpush.xpose.msra.mxu0 0.0
    %3096 = vmatpush.xpose.msra.mxu0 0.0
    %3097 = vmatpush.xpose.msra.mxu0 0.0
    %3098 = vmatpush.xpose.msra.mxu0 0.0
    %3099 = vmatpush.xpose.msra.mxu0 0.0
    %3100 = vmatpush.xpose.msra.mxu0 0.0
    %3101 = vmatpush.xpose.msra.mxu0 0.0
    %3102 = vmatpush.xpose.msra.mxu0 0.0
    %3103 = vmatpush.xpose.msra.mxu0 0.0
    %3104 = vmatpush.xpose.msra.mxu0 0.0
    %3105 = vmatpush.xpose.msra.mxu0 0.0
    %3106 = vmatpush.xpose.msra.mxu0 0.0
    %3107 = vmatpush.xpose.msra.mxu0 %v2997
    %3108 = vmatpush.xpose.msra.mxu0 %v2994
    %3109 = vmatmul.f32.gmra.mxu0 %v2935
    %v3110 = vpop.f32.mrf.mxu0
    %v3111 = vadd.f32 0.0, %v3110
    %3112 = vmatmul.f32.gmra.mxu0 %v2938
    %v3113 = vpop.f32.mrf.mxu0
    %v3114 = vadd.f32 0.0, %v3113
    %3115 = vdwg.mxu0
    %3116 = vmatpush.xpose.msra.mxu0 0.0
    %3117 = vmatpush.xpose.msra.mxu0 0.0
    %3118 = vmatpush.xpose.msra.mxu0 0.0
    %3119 = vmatpush.xpose.msra.mxu0 0.0
    %3120 = vmatpush.xpose.msra.mxu0 0.0
    %3121 = vmatpush.xpose.msra.mxu0 0.0
    %3122 = vmatpush.xpose.msra.mxu0 0.0
    %3123 = vmatpush.xpose.msra.mxu0 0.0
    %3124 = vmatpush.xpose.msra.mxu0 0.0
    %3125 = vmatpush.xpose.msra.mxu0 0.0
    %3126 = vmatpush.xpose.msra.mxu0 0.0
    %3127 = vmatpush.xpose.msra.mxu0 0.0
    %3128 = vmatpush.xpose.msra.mxu0 0.0
    %3129 = vmatpush.xpose.msra.mxu0 0.0
    %3130 = vmatpush.xpose.msra.mxu0 %v3003
    %3131 = vmatpush.xpose.msra.mxu0 %v3000
    %3132 = vmatmul.f32.gmra.mxu0 %v2941
    %v3133 = vpop.f32.mrf.mxu0
    %v3134 = vadd.f32 0.0, %v3133
    %3135 = vmatmul.f32.gmra.mxu0 %v2944
    %v3136 = vpop.f32.mrf.mxu0
    %v3137 = vadd.f32 0.0, %v3136
    %3138 = vdwg.mxu0
    %3139 = vmatpush.xpose.msra.mxu0 0.0
    %3140 = vmatpush.xpose.msra.mxu0 0.0
    %3141 = vmatpush.xpose.msra.mxu0 0.0
    %3142 = vmatpush.xpose.msra.mxu0 0.0
    %3143 = vmatpush.xpose.msra.mxu0 0.0
    %3144 = vmatpush.xpose.msra.mxu0 0.0
    %3145 = vmatpush.xpose.msra.mxu0 0.0
    %3146 = vmatpush.xpose.msra.mxu0 0.0
    %3147 = vmatpush.xpose.msra.mxu0 0.0
    %3148 = vmatpush.xpose.msra.mxu0 0.0
    %3149 = vmatpush.xpose.msra.mxu0 0.0
    %3150 = vmatpush.xpose.msra.mxu0 0.0
    %3151 = vmatpush.xpose.msra.mxu0 0.0
    %3152 = vmatpush.xpose.msra.mxu0 0.0
    %3153 = vmatpush.xpose.msra.mxu0 %v3009
    %3154 = vmatpush.xpose.msra.mxu0 %v3006
    %3155 = vmatmul.f32.gmra.mxu0 %v2947
    %v3156 = vpop.f32.mrf.mxu0
    %v3157 = vadd.f32 0.0, %v3156
    %3158 = vmatmul.f32.gmra.mxu0 %v2950
    %v3159 = vpop.f32.mrf.mxu0
    %v3160 = vadd.f32 0.0, %v3159
    %3161 = vdwg.mxu0
    %v3162 = vmul.f32 %v3088, 0.088388346
    %v3163 = vmul.f32 %v3091, 0.088388346
    %v3164 = vmul.f32 %v3111, 0.088388346
    %v3165 = vmul.f32 %v3114, 0.088388346
    %v3166 = vmul.f32 %v3134, 0.088388346
    %v3167 = vmul.f32 %v3137, 0.088388346
    %v3168 = vmul.f32 %v3157, 0.088388346
    %v3169 = vmul.f32 %v3160, 0.088388346
    %v3170 = vsel %vm1436, %v3162, -inf
    %3171 = vmax.xlane.f32.xlu0 %v3170
    %v3172 = vpop.xlane.xlu0 %3171
    %v3173 = vsel %vm1436, %v3163, -inf
    %3174 = vmax.xlane.f32.xlu0 %v3173
    %v3175 = vpop.xlane.xlu0 %3174
    %v3176 = vsel %vm1436, %v3164, -inf
    %3177 = vmax.xlane.f32.xlu0 %v3176
    %v3178 = vpop.xlane.xlu0 %3177
    %v3179 = vsel %vm1436, %v3165, -inf
    %3180 = vmax.xlane.f32.xlu0 %v3179
    %v3181 = vpop.xlane.xlu0 %3180
    %v3182 = vsel %vm1436, %v3166, -inf
    %3183 = vmax.xlane.f32.xlu0 %v3182
    %v3184 = vpop.xlane.xlu0 %3183
    %v3185 = vsel %vm1436, %v3167, -inf
    %3186 = vmax.xlane.f32.xlu0 %v3185
    %v3187 = vpop.xlane.xlu0 %3186
    %v3188 = vsel %vm1436, %v3168, -inf
    %3189 = vmax.xlane.f32.xlu0 %v3188
    %v3190 = vpop.xlane.xlu0 %3189
    %v3191 = vsel %vm1436, %v3169, -inf
    %3192 = vmax.xlane.f32.xlu0 %v3191
    %v3193 = vpop.xlane.xlu0 %3192
    %v3194 = vsub.f32 %v3162, %v3172
    %v3195 = vsub.f32 %v3163, %v3175
    %v3196 = vsub.f32 %v3164, %v3178
    %v3197 = vsub.f32 %v3165, %v3181
    %v3198 = vsub.f32 %v3166, %v3184
    %v3199 = vsub.f32 %v3167, %v3187
    %v3200 = vsub.f32 %v3168, %v3190
    %v3201 = vsub.f32 %v3169, %v3193
    %v3202 = vmul.f32 %v3194, 1.442695
    %v3203 = vpow.pop %v3202
    %v3204 = vmul.f32 %v3195, 1.442695
    %v3205 = vpow.pop %v3204
    %v3206 = vmul.f32 %v3196, 1.442695
    %v3207 = vpow.pop %v3206
    %v3208 = vmul.f32 %v3197, 1.442695
    %v3209 = vpow.pop %v3208
    %v3210 = vmul.f32 %v3198, 1.442695
    %v3211 = vpow.pop %v3210
    %v3212 = vmul.f32 %v3199, 1.442695
    %v3213 = vpow.pop %v3212
    %v3214 = vmul.f32 %v3200, 1.442695
    %v3215 = vpow.pop %v3214
    %v3216 = vmul.f32 %v3201, 1.442695
    %v3217 = vpow.pop %v3216
    %v3218 = vsel %vm1436, %v3203, 0.0
    %3219 = vadd.xlane.f32.xlu0 %v3218
    %v3220 = vpop.xlane.xlu0 %3219
    %v3221 = vsel %vm1436, %v3205, 0.0
    %3222 = vadd.xlane.f32.xlu0 %v3221
    %v3223 = vpop.xlane.xlu0 %3222
    %v3224 = vsel %vm1436, %v3207, 0.0
    %3225 = vadd.xlane.f32.xlu0 %v3224
    %v3226 = vpop.xlane.xlu0 %3225
    %v3227 = vsel %vm1436, %v3209, 0.0
    %3228 = vadd.xlane.f32.xlu0 %v3227
    %v3229 = vpop.xlane.xlu0 %3228
    %v3230 = vsel %vm1436, %v3211, 0.0
    %3231 = vadd.xlane.f32.xlu0 %v3230
    %v3232 = vpop.xlane.xlu0 %3231
    %v3233 = vsel %vm1436, %v3213, 0.0
    %3234 = vadd.xlane.f32.xlu0 %v3233
    %v3235 = vpop.xlane.xlu0 %3234
    %v3236 = vsel %vm1436, %v3215, 0.0
    %3237 = vadd.xlane.f32.xlu0 %v3236
    %v3238 = vpop.xlane.xlu0 %3237
    %v3239 = vsel %vm1436, %v3217, 0.0
    %3240 = vadd.xlane.f32.xlu0 %v3239
    %v3241 = vpop.xlane.xlu0 %3240
    %v3242 = vrcp.pop %v3220
    %v3243 = vmul.f32 %v3220, %v3242
    %v3244 = vsub.f32 1.0, %v3243
    %v3245 = vmul.f32 %v3242, %v3244
    %v3246 = vadd.f32 %v3242, %v3245
    %vm3247 = vweird.f32 %v3220
    %vm3248 = vweird.f32 %v3242
    %vm3249 = vmor %vm3247, %vm3248
    %v3250 = vsel %vm3249, %v3242, %v3246
    %v3251 = vand.u32 2147483647, %v3220
    %vm3252 = vcmp.eq.f32.partialorder %v3251, 8.507059e+37
    %v3253 = vand.u32 %v3220, 2147483648
    %v3254 = vor.u32 1.1754944e-38, %v3253
    %v3255 = vsel %vm3252, %v3254, %v3250
    %v3256 = vmul.f32 %v3203, %v3255
    %v3257 = vrcp.pop %v3223
    %v3258 = vmul.f32 %v3223, %v3257
    %v3259 = vsub.f32 1.0, %v3258
    %v3260 = vmul.f32 %v3257, %v3259
    %v3261 = vadd.f32 %v3257, %v3260
    %vm3262 = vweird.f32 %v3223
    %vm3263 = vweird.f32 %v3257
    %vm3264 = vmor %vm3262, %vm3263
    %v3265 = vsel %vm3264, %v3257, %v3261
    %v3266 = vand.u32 2147483647, %v3223
    %vm3267 = vcmp.eq.f32.partialorder %v3266, 8.507059e+37
    %v3268 = vand.u32 %v3223, 2147483648
    %v3269 = vor.u32 1.1754944e-38, %v3268
    %v3270 = vsel %vm3267, %v3269, %v3265
    %v3271 = vmul.f32 %v3205, %v3270
    %v3272 = vrcp.pop %v3226
    %v3273 = vmul.f32 %v3226, %v3272
    %v3274 = vsub.f32 1.0, %v3273
    %v3275 = vmul.f32 %v3272, %v3274
    %v3276 = vadd.f32 %v3272, %v3275
    %vm3277 = vweird.f32 %v3226
    %vm3278 = vweird.f32 %v3272
    %vm3279 = vmor %vm3277, %vm3278
    %v3280 = vsel %vm3279, %v3272, %v3276
    %v3281 = vand.u32 2147483647, %v3226
    %vm3282 = vcmp.eq.f32.partialorder %v3281, 8.507059e+37
    %v3283 = vand.u32 %v3226, 2147483648
    %v3284 = vor.u32 1.1754944e-38, %v3283
    %v3285 = vsel %vm3282, %v3284, %v3280
    %v3286 = vmul.f32 %v3207, %v3285
    %v3287 = vrcp.pop %v3229
    %v3288 = vmul.f32 %v3229, %v3287
    %v3289 = vsub.f32 1.0, %v3288
    %v3290 = vmul.f32 %v3287, %v3289
    %v3291 = vadd.f32 %v3287, %v3290
    %vm3292 = vweird.f32 %v3229
    %vm3293 = vweird.f32 %v3287
    %vm3294 = vmor %vm3292, %vm3293
    %v3295 = vsel %vm3294, %v3287, %v3291
    %v3296 = vand.u32 2147483647, %v3229
    %vm3297 = vcmp.eq.f32.partialorder %v3296, 8.507059e+37
    %v3298 = vand.u32 %v3229, 2147483648
    %v3299 = vor.u32 1.1754944e-38, %v3298
    %v3300 = vsel %vm3297, %v3299, %v3295
    %v3301 = vmul.f32 %v3209, %v3300
    %v3302 = vrcp.pop %v3232
    %v3303 = vmul.f32 %v3232, %v3302
    %v3304 = vsub.f32 1.0, %v3303
    %v3305 = vmul.f32 %v3302, %v3304
    %v3306 = vadd.f32 %v3302, %v3305
    %vm3307 = vweird.f32 %v3232
    %vm3308 = vweird.f32 %v3302
    %vm3309 = vmor %vm3307, %vm3308
    %v3310 = vsel %vm3309, %v3302, %v3306
    %v3311 = vand.u32 2147483647, %v3232
    %vm3312 = vcmp.eq.f32.partialorder %v3311, 8.507059e+37
    %v3313 = vand.u32 %v3232, 2147483648
    %v3314 = vor.u32 1.1754944e-38, %v3313
    %v3315 = vsel %vm3312, %v3314, %v3310
    %v3316 = vmul.f32 %v3211, %v3315
    %v3317 = vrcp.pop %v3235
    %v3318 = vmul.f32 %v3235, %v3317
    %v3319 = vsub.f32 1.0, %v3318
    %v3320 = vmul.f32 %v3317, %v3319
    %v3321 = vadd.f32 %v3317, %v3320
    %vm3322 = vweird.f32 %v3235
    %vm3323 = vweird.f32 %v3317
    %vm3324 = vmor %vm3322, %vm3323
    %v3325 = vsel %vm3324, %v3317, %v3321
    %v3326 = vand.u32 2147483647, %v3235
    %vm3327 = vcmp.eq.f32.partialorder %v3326, 8.507059e+37
    %v3328 = vand.u32 %v3235, 2147483648
    %v3329 = vor.u32 1.1754944e-38, %v3328
    %v3330 = vsel %vm3327, %v3329, %v3325
    %v3331 = vmul.f32 %v3213, %v3330
    %v3332 = vrcp.pop %v3238
    %v3333 = vmul.f32 %v3238, %v3332
    %v3334 = vsub.f32 1.0, %v3333
    %v3335 = vmul.f32 %v3332, %v3334
    %v3336 = vadd.f32 %v3332, %v3335
    %vm3337 = vweird.f32 %v3238
    %vm3338 = vweird.f32 %v3332
    %vm3339 = vmor %vm3337, %vm3338
    %v3340 = vsel %vm3339, %v3332, %v3336
    %v3341 = vand.u32 2147483647, %v3238
    %vm3342 = vcmp.eq.f32.partialorder %v3341, 8.507059e+37
    %v3343 = vand.u32 %v3238, 2147483648
    %v3344 = vor.u32 1.1754944e-38, %v3343
    %v3345 = vsel %vm3342, %v3344, %v3340
    %v3346 = vmul.f32 %v3215, %v3345
    %v3347 = vrcp.pop %v3241
    %v3348 = vmul.f32 %v3241, %v3347
    %v3349 = vsub.f32 1.0, %v3348
    %v3350 = vmul.f32 %v3347, %v3349
    %v3351 = vadd.f32 %v3347, %v3350
    %vm3352 = vweird.f32 %v3241
    %vm3353 = vweird.f32 %v3347
    %vm3354 = vmor %vm3352, %vm3353
    %v3355 = vsel %vm3354, %v3347, %v3351
    %v3356 = vand.u32 2147483647, %v3241
    %vm3357 = vcmp.eq.f32.partialorder %v3356, 8.507059e+37
    %v3358 = vand.u32 %v3241, 2147483648
    %v3359 = vor.u32 1.1754944e-38, %v3358
    %v3360 = vsel %vm3357, %v3359, %v3355
    %v3361 = vmul.f32 %v3217, %v3360
    %v3363 = vsel %vm1436, %v3256, 0
    %v3366 = vsel %vm1436, %v3271, 0
    %3368 = vmatpush.msra.mxu0 0.0
    %3369 = vmatpush.msra.mxu0 0.0
    %3370 = vmatpush.msra.mxu0 0.0
    %3371 = vmatpush.msra.mxu0 0.0
    %3372 = vmatpush.msra.mxu0 0.0
    %3373 = vmatpush.msra.mxu0 0.0
    %3374 = vmatpush.msra.mxu0 0.0
    %3375 = vmatpush.msra.mxu0 0.0
    %3376 = vmatpush.msra.mxu0 0.0
    %3377 = vmatpush.msra.mxu0 0.0
    %3378 = vmatpush.msra.mxu0 0.0
    %3379 = vmatpush.msra.mxu0 0.0
    %3380 = vmatpush.msra.mxu0 0.0
    %3381 = vmatpush.msra.mxu0 0.0
    %3382 = vmatpush.msra.mxu0 %v3050
    %3383 = vmatpush.msra.mxu0 %v3047
    %3384 = vmatmul.f32.gmra.mxu0 %v3363
    %v3385 = vpop.f32.mrf.mxu0
    %v3386 = vadd.f32 0.0, %v3385
    %3387 = vmatmul.f32.gmra.mxu0 %v3366
    %v3388 = vpop.f32.mrf.mxu0
    %v3389 = vadd.f32 0.0, %v3388
    %3390 = vdwg.mxu0
    %v3392 = vsel %vm1436, %v3286, 0
    %v3395 = vsel %vm1436, %v3301, 0
    %3397 = vmatpush.msra.mxu0 0.0
    %3398 = vmatpush.msra.mxu0 0.0
    %3399 = vmatpush.msra.mxu0 0.0
    %3400 = vmatpush.msra.mxu0 0.0
    %3401 = vmatpush.msra.mxu0 0.0
    %3402 = vmatpush.msra.mxu0 0.0
    %3403 = vmatpush.msra.mxu0 0.0
    %3404 = vmatpush.msra.mxu0 0.0
    %3405 = vmatpush.msra.mxu0 0.0
    %3406 = vmatpush.msra.mxu0 0.0
    %3407 = vmatpush.msra.mxu0 0.0
    %3408 = vmatpush.msra.mxu0 0.0
    %3409 = vmatpush.msra.mxu0 0.0
    %3410 = vmatpush.msra.mxu0 0.0
    %3411 = vmatpush.msra.mxu0 %v3056
    %3412 = vmatpush.msra.mxu0 %v3053
    %3413 = vmatmul.f32.gmra.mxu0 %v3392
    %v3414 = vpop.f32.mrf.mxu0
    %v3415 = vadd.f32 0.0, %v3414
    %3416 = vmatmul.f32.gmra.mxu0 %v3395
    %v3417 = vpop.f32.mrf.mxu0
    %v3418 = vadd.f32 0.0, %v3417
    %3419 = vdwg.mxu0
    %v3421 = vsel %vm1436, %v3316, 0
    %v3424 = vsel %vm1436, %v3331, 0
    %3426 = vmatpush.msra.mxu0 0.0
    %3427 = vmatpush.msra.mxu0 0.0
    %3428 = vmatpush.msra.mxu0 0.0
    %3429 = vmatpush.msra.mxu0 0.0
    %3430 = vmatpush.msra.mxu0 0.0
    %3431 = vmatpush.msra.mxu0 0.0
    %3432 = vmatpush.msra.mxu0 0.0
    %3433 = vmatpush.msra.mxu0 0.0
    %3434 = vmatpush.msra.mxu0 0.0
    %3435 = vmatpush.msra.mxu0 0.0
    %3436 = vmatpush.msra.mxu0 0.0
    %3437 = vmatpush.msra.mxu0 0.0
    %3438 = vmatpush.msra.mxu0 0.0
    %3439 = vmatpush.msra.mxu0 0.0
    %3440 = vmatpush.msra.mxu0 %v3062
    %3441 = vmatpush.msra.mxu0 %v3059
    %3442 = vmatmul.f32.gmra.mxu0 %v3421
    %v3443 = vpop.f32.mrf.mxu0
    %v3444 = vadd.f32 0.0, %v3443
    %3445 = vmatmul.f32.gmra.mxu0 %v3424
    %v3446 = vpop.f32.mrf.mxu0
    %v3447 = vadd.f32 0.0, %v3446
    %3448 = vdwg.mxu0
    %v3450 = vsel %vm1436, %v3346, 0
    %v3453 = vsel %vm1436, %v3361, 0
    %3455 = vmatpush.msra.mxu0 0.0
    %3456 = vmatpush.msra.mxu0 0.0
    %3457 = vmatpush.msra.mxu0 0.0
    %3458 = vmatpush.msra.mxu0 0.0
    %3459 = vmatpush.msra.mxu0 0.0
    %3460 = vmatpush.msra.mxu0 0.0
    %3461 = vmatpush.msra.mxu0 0.0
    %3462 = vmatpush.msra.mxu0 0.0
    %3463 = vmatpush.msra.mxu0 0.0
    %3464 = vmatpush.msra.mxu0 0.0
    %3465 = vmatpush.msra.mxu0 0.0
    %3466 = vmatpush.msra.mxu0 0.0
    %3467 = vmatpush.msra.mxu0 0.0
    %3468 = vmatpush.msra.mxu0 0.0
    %3469 = vmatpush.msra.mxu0 %v3068
    %3470 = vmatpush.msra.mxu0 %v3065
    %3471 = vmatmul.f32.gmra.mxu0 %v3450
    %v3472 = vpop.f32.mrf.mxu0
    %v3473 = vadd.f32 0.0, %v3472
    %3474 = vmatmul.f32.gmra.mxu0 %v3453
    %v3475 = vpop.f32.mrf.mxu0
    %v3476 = vadd.f32 0.0, %v3475
    %3477 = vdwg.mxu0
    %v3478 = vld [vmem:[#allocation8 + $0x358] sm:$0xff]
    %v3479 = vld [vmem:[#allocation8 + $0x360] sm:$0xff]
    %v3480 = vld [vmem:[#allocation8 + $0x368] sm:$0xff]
    %v3481 = vld [vmem:[#allocation8 + $0x370] sm:$0xff]
    %v3482 = vld [vmem:[#allocation8 + $0x378] sm:$0xff]
    %v3483 = vld [vmem:[#allocation8 + $0x380] sm:$0xff]
    %v3484 = vld [vmem:[#allocation8 + $0x388] sm:$0xff]
    %v3485 = vld [vmem:[#allocation8 + $0x390] sm:$0xff]
    %v3486 = vld [vmem:[#allocation8 + $0x398] sm:$0xff]
    %v3487 = vld [vmem:[#allocation8 + $0x3a0] sm:$0xff]
    %v3488 = vld [vmem:[#allocation8 + $0x3a8] sm:$0xff]
    %v3489 = vld [vmem:[#allocation8 + $0x3b0] sm:$0xff]
    %v3490 = vld [vmem:[#allocation8 + $0x3b8] sm:$0xff]
    %v3491 = vld [vmem:[#allocation8 + $0x3c0] sm:$0xff]
    %v3492 = vld [vmem:[#allocation8 + $0x3c8] sm:$0xff]
    %v3493 = vld [vmem:[#allocation8 + $0x3d0] sm:$0xff]
    %v3494 = vld [vmem:[#allocation8 + $0x5fb] sm:$0x1]
    %v3495 = vperm.slane %v3494, 0
    %3496 = vmatpush.msra.mxu0 %v3493
    %3497 = vmatpush.msra.mxu0 %v3492
    %3498 = vmatpush.msra.mxu0 %v3491
    %3499 = vmatpush.msra.mxu0 %v3490
    %3500 = vmatpush.msra.mxu0 %v3489
    %3501 = vmatpush.msra.mxu0 %v3488
    %3502 = vmatpush.msra.mxu0 %v3487
    %3503 = vmatpush.msra.mxu0 %v3486
    %3504 = vmatpush.msra.mxu0 %v3485
    %3505 = vmatpush.msra.mxu0 %v3484
    %3506 = vmatpush.msra.mxu0 %v3483
    %3507 = vmatpush.msra.mxu0 %v3482
    %3508 = vmatpush.msra.mxu0 %v3481
    %3509 = vmatpush.msra.mxu0 %v3480
    %3510 = vmatpush.msra.mxu0 %v3479
    %3511 = vmatpush.msra.mxu0 %v3478
    %3512 = vmatmul.f32.gmra.mxu0 %v3386
    %v3513 = vpop.f32.mrf.mxu0
    %v3514 = vadd.f32 %v3495, %v3513
    %3515 = vmatmul.f32.gmra.mxu0 %v3389
    %v3516 = vpop.f32.mrf.mxu0
    %v3517 = vadd.f32 %v3495, %v3516
    %3518 = vmatmul.f32.gmra.mxu0 %v3415
    %v3519 = vpop.f32.mrf.mxu0
    %v3520 = vadd.f32 %v3495, %v3519
    %3521 = vmatmul.f32.gmra.mxu0 %v3418
    %v3522 = vpop.f32.mrf.mxu0
    %v3523 = vadd.f32 %v3495, %v3522
    %3524 = vmatmul.f32.gmra.mxu0 %v3444
    %v3525 = vpop.f32.mrf.mxu0
    %v3526 = vadd.f32 %v3495, %v3525
    %3527 = vmatmul.f32.gmra.mxu0 %v3447
    %v3528 = vpop.f32.mrf.mxu0
    %v3529 = vadd.f32 %v3495, %v3528
    %3530 = vmatmul.f32.gmra.mxu0 %v3473
    %v3531 = vpop.f32.mrf.mxu0
    %v3532 = vadd.f32 %v3495, %v3531
    %3533 = vmatmul.f32.gmra.mxu0 %v3476
    %v3534 = vpop.f32.mrf.mxu0
    %v3535 = vadd.f32 %v3495, %v3534
    %3536 = vdwg.mxu0
    %v3537 = vld [vmem:[#allocation8 + $0x3f8] sm:$0xff]
    %v3538 = vld [vmem:[#allocation8 + $0x400] sm:$0xff]
    %v3539 = vld [vmem:[#allocation8 + $0x408] sm:$0xff]
    %v3540 = vld [vmem:[#allocation8 + $0x410] sm:$0xff]
    %v3541 = vld [vmem:[#allocation8 + $0x418] sm:$0xff]
    %v3542 = vld [vmem:[#allocation8 + $0x420] sm:$0xff]
    %v3543 = vld [vmem:[#allocation8 + $0x428] sm:$0xff]
    %v3544 = vld [vmem:[#allocation8 + $0x430] sm:$0xff]
    %v3545 = vld [vmem:[#allocation8 + $0x438] sm:$0xff]
    %v3546 = vld [vmem:[#allocation8 + $0x440] sm:$0xff]
    %v3547 = vld [vmem:[#allocation8 + $0x448] sm:$0xff]
    %v3548 = vld [vmem:[#allocation8 + $0x450] sm:$0xff]
    %v3549 = vld [vmem:[#allocation8 + $0x458] sm:$0xff]
    %v3550 = vld [vmem:[#allocation8 + $0x460] sm:$0xff]
    %v3551 = vld [vmem:[#allocation8 + $0x468] sm:$0xff]
    %v3552 = vld [vmem:[#allocation8 + $0x470] sm:$0xff]
    %v3553 = vld [vmem:[#allocation8 + $0x478] sm:$0xff]
    %v3554 = vld [vmem:[#allocation8 + $0x480] sm:$0xff]
    %v3555 = vld [vmem:[#allocation8 + $0x488] sm:$0xff]
    %v3556 = vld [vmem:[#allocation8 + $0x490] sm:$0xff]
    %v3557 = vld [vmem:[#allocation8 + $0x498] sm:$0xff]
    %v3558 = vld [vmem:[#allocation8 + $0x4a0] sm:$0xff]
    %v3559 = vld [vmem:[#allocation8 + $0x4a8] sm:$0xff]
    %v3560 = vld [vmem:[#allocation8 + $0x4b0] sm:$0xff]
    %v3561 = vld [vmem:[#allocation8 + $0x4b8] sm:$0xff]
    %v3562 = vld [vmem:[#allocation8 + $0x4c0] sm:$0xff]
    %v3563 = vld [vmem:[#allocation8 + $0x4c8] sm:$0xff]
    %v3564 = vld [vmem:[#allocation8 + $0x4d0] sm:$0xff]
    %v3565 = vld [vmem:[#allocation8 + $0x4d8] sm:$0xff]
    %v3566 = vld [vmem:[#allocation8 + $0x4e0] sm:$0xff]
    %v3567 = vld [vmem:[#allocation8 + $0x4e8] sm:$0xff]
    %v3568 = vld [vmem:[#allocation8 + $0x4f0] sm:$0xff]
    %3569 = vmatpush.msra.mxu0 %v3568
    %3570 = vmatpush.msra.mxu0 %v3567
    %3571 = vmatpush.msra.mxu0 %v3566
    %3572 = vmatpush.msra.mxu0 %v3565
    %3573 = vmatpush.msra.mxu0 %v3564
    %3574 = vmatpush.msra.mxu0 %v3563
    %3575 = vmatpush.msra.mxu0 %v3562
    %3576 = vmatpush.msra.mxu0 %v3561
    %3577 = vmatpush.msra.mxu0 %v3560
    %3578 = vmatpush.msra.mxu0 %v3559
    %3579 = vmatpush.msra.mxu0 %v3558
    %3580 = vmatpush.msra.mxu0 %v3557
    %3581 = vmatpush.msra.mxu0 %v3556
    %3582 = vmatpush.msra.mxu0 %v3555
    %3583 = vmatpush.msra.mxu0 %v3554
    %3584 = vmatpush.msra.mxu0 %v3553
    %3585 = vmatmul.f32.gmra.mxu0 %v81
    %v3586 = vpop.f32.mrf.mxu0
    %v3587 = vadd.f32 0.0, %v3586
    %3588 = vmatmul.f32.gmra.mxu0 %v82
    %v3589 = vpop.f32.mrf.mxu0
    %v3590 = vadd.f32 0.0, %v3589
    %3591 = vmatmul.f32.gmra.mxu0 %v83
    %v3592 = vpop.f32.mrf.mxu0
    %v3593 = vadd.f32 0.0, %v3592
    %3594 = vmatmul.f32.gmra.mxu0 %v84
    %v3595 = vpop.f32.mrf.mxu0
    %v3596 = vadd.f32 0.0, %v3595
    %3597 = vmatmul.f32.gmra.mxu0 %v85
    %v3598 = vpop.f32.mrf.mxu0
    %v3599 = vadd.f32 0.0, %v3598
    %3600 = vmatmul.f32.gmra.mxu0 %v86
    %v3601 = vpop.f32.mrf.mxu0
    %v3602 = vadd.f32 0.0, %v3601
    %3603 = vmatmul.f32.gmra.mxu0 %v87
    %v3604 = vpop.f32.mrf.mxu0
    %v3605 = vadd.f32 0.0, %v3604
    %3606 = vmatmul.f32.gmra.mxu0 %v88
    %v3607 = vpop.f32.mrf.mxu0
    %v3608 = vadd.f32 0.0, %v3607
    %3609 = vdwg.mxu0
    %3610 = vmatpush.msra.mxu0 %v3552
    %3611 = vmatpush.msra.mxu0 %v3551
    %3612 = vmatpush.msra.mxu0 %v3550
    %3613 = vmatpush.msra.mxu0 %v3549
    %3614 = vmatpush.msra.mxu0 %v3548
    %3615 = vmatpush.msra.mxu0 %v3547
    %3616 = vmatpush.msra.mxu0 %v3546
    %3617 = vmatpush.msra.mxu0 %v3545
    %3618 = vmatpush.msra.mxu0 %v3544
    %3619 = vmatpush.msra.mxu0 %v3543
    %3620 = vmatpush.msra.mxu0 %v3542
    %3621 = vmatpush.msra.mxu0 %v3541
    %3622 = vmatpush.msra.mxu0 %v3540
    %3623 = vmatpush.msra.mxu0 %v3539
    %3624 = vmatpush.msra.mxu0 %v3538
    %3625 = vmatpush.msra.mxu0 %v3537
    %3626 = vmatmul.f32.gmra.mxu0 %v1868
    %v3627 = vpop.f32.mrf.mxu0
    %v3628 = vadd.f32 %v3587, %v3627
    %3629 = vmatmul.f32.gmra.mxu0 %v1871
    %v3630 = vpop.f32.mrf.mxu0
    %v3631 = vadd.f32 %v3590, %v3630
    %3632 = vmatmul.f32.gmra.mxu0 %v1874
    %v3633 = vpop.f32.mrf.mxu0
    %v3634 = vadd.f32 %v3593, %v3633
    %3635 = vmatmul.f32.gmra.mxu0 %v1877
    %v3636 = vpop.f32.mrf.mxu0
    %v3637 = vadd.f32 %v3596, %v3636
    %3638 = vmatmul.f32.gmra.mxu0 %v1880
    %v3639 = vpop.f32.mrf.mxu0
    %v3640 = vadd.f32 %v3599, %v3639
    %3641 = vmatmul.f32.gmra.mxu0 %v1883
    %v3642 = vpop.f32.mrf.mxu0
    %v3643 = vadd.f32 %v3602, %v3642
    %3644 = vmatmul.f32.gmra.mxu0 %v1886
    %v3645 = vpop.f32.mrf.mxu0
    %v3646 = vadd.f32 %v3605, %v3645
    %3647 = vmatmul.f32.gmra.mxu0 %v1889
    %v3648 = vpop.f32.mrf.mxu0
    %v3649 = vadd.f32 %v3608, %v3648
    %3650 = vdwg.mxu0
    %v3651 = vld [vmem:[#allocation8 + $0x5fd] sm:$0x1]
    %v3652 = vperm.slane %v3651, 0
    %v3653 = vadd.f32 %v3628, %v3652
    %v3654 = vadd.f32 %v3631, %v3652
    %v3655 = vadd.f32 %v3634, %v3652
    %v3656 = vadd.f32 %v3637, %v3652
    %v3657 = vadd.f32 %v3640, %v3652
    %v3658 = vadd.f32 %v3643, %v3652
    %v3659 = vadd.f32 %v3646, %v3652
    %v3660 = vadd.f32 %v3649, %v3652
    %v3661 = vxor.u32 %v3653, 2147483648
    %v3662 = vxor.u32 %v3654, 2147483648
    %v3663 = vxor.u32 %v3655, 2147483648
    %v3664 = vxor.u32 %v3656, 2147483648
    %v3665 = vxor.u32 %v3657, 2147483648
    %v3666 = vxor.u32 %v3658, 2147483648
    %v3667 = vxor.u32 %v3659, 2147483648
    %v3668 = vxor.u32 %v3660, 2147483648
    %v3669 = vmul.f32 %v3661, 1.442695
    %v3670 = vpow.pop %v3669
    %v3671 = vmul.f32 %v3662, 1.442695
    %v3672 = vpow.pop %v3671
    %v3673 = vmul.f32 %v3663, 1.442695
    %v3674 = vpow.pop %v3673
    %v3675 = vmul.f32 %v3664, 1.442695
    %v3676 = vpow.pop %v3675
    %v3677 = vmul.f32 %v3665, 1.442695
    %v3678 = vpow.pop %v3677
    %v3679 = vmul.f32 %v3666, 1.442695
    %v3680 = vpow.pop %v3679
    %v3681 = vmul.f32 %v3667, 1.442695
    %v3682 = vpow.pop %v3681
    %v3683 = vmul.f32 %v3668, 1.442695
    %v3684 = vpow.pop %v3683
    %v3685 = vadd.f32 %v3670, 1.0
    %v3686 = vadd.f32 %v3672, 1.0
    %v3687 = vadd.f32 %v3674, 1.0
    %v3688 = vadd.f32 %v3676, 1.0
    %v3689 = vadd.f32 %v3678, 1.0
    %v3690 = vadd.f32 %v3680, 1.0
    %v3691 = vadd.f32 %v3682, 1.0
    %v3692 = vadd.f32 %v3684, 1.0
    %v3693 = vrcp.pop %v3685
    %v3694 = vmul.f32 %v3685, %v3693
    %v3695 = vsub.f32 1.0, %v3694
    %v3696 = vmul.f32 %v3693, %v3695
    %v3697 = vadd.f32 %v3693, %v3696
    %vm3698 = vweird.f32 %v3685
    %vm3699 = vweird.f32 %v3693
    %vm3700 = vmor %vm3698, %vm3699
    %v3701 = vsel %vm3700, %v3693, %v3697
    %v3702 = vand.u32 2147483647, %v3685
    %vm3703 = vcmp.eq.f32.partialorder %v3702, 8.507059e+37
    %v3704 = vand.u32 %v3685, 2147483648
    %v3705 = vor.u32 1.1754944e-38, %v3704
    %v3706 = vsel %vm3703, %v3705, %v3701
    %v3707 = vmul.f32 1.0, %v3706
    %v3708 = vrcp.pop %v3686
    %v3709 = vmul.f32 %v3686, %v3708
    %v3710 = vsub.f32 1.0, %v3709
    %v3711 = vmul.f32 %v3708, %v3710
    %v3712 = vadd.f32 %v3708, %v3711
    %vm3713 = vweird.f32 %v3686
    %vm3714 = vweird.f32 %v3708
    %vm3715 = vmor %vm3713, %vm3714
    %v3716 = vsel %vm3715, %v3708, %v3712
    %v3717 = vand.u32 2147483647, %v3686
    %vm3718 = vcmp.eq.f32.partialorder %v3717, 8.507059e+37
    %v3719 = vand.u32 %v3686, 2147483648
    %v3720 = vor.u32 1.1754944e-38, %v3719
    %v3721 = vsel %vm3718, %v3720, %v3716
    %v3722 = vmul.f32 1.0, %v3721
    %v3723 = vrcp.pop %v3687
    %v3724 = vmul.f32 %v3687, %v3723
    %v3725 = vsub.f32 1.0, %v3724
    %v3726 = vmul.f32 %v3723, %v3725
    %v3727 = vadd.f32 %v3723, %v3726
    %vm3728 = vweird.f32 %v3687
    %vm3729 = vweird.f32 %v3723
    %vm3730 = vmor %vm3728, %vm3729
    %v3731 = vsel %vm3730, %v3723, %v3727
    %v3732 = vand.u32 2147483647, %v3687
    %vm3733 = vcmp.eq.f32.partialorder %v3732, 8.507059e+37
    %v3734 = vand.u32 %v3687, 2147483648
    %v3735 = vor.u32 1.1754944e-38, %v3734
    %v3736 = vsel %vm3733, %v3735, %v3731
    %v3737 = vmul.f32 1.0, %v3736
    %v3738 = vrcp.pop %v3688
    %v3739 = vmul.f32 %v3688, %v3738
    %v3740 = vsub.f32 1.0, %v3739
    %v3741 = vmul.f32 %v3738, %v3740
    %v3742 = vadd.f32 %v3738, %v3741
    %vm3743 = vweird.f32 %v3688
    %vm3744 = vweird.f32 %v3738
    %vm3745 = vmor %vm3743, %vm3744
    %v3746 = vsel %vm3745, %v3738, %v3742
    %v3747 = vand.u32 2147483647, %v3688
    %vm3748 = vcmp.eq.f32.partialorder %v3747, 8.507059e+37
    %v3749 = vand.u32 %v3688, 2147483648
    %v3750 = vor.u32 1.1754944e-38, %v3749
    %v3751 = vsel %vm3748, %v3750, %v3746
    %v3752 = vmul.f32 1.0, %v3751
    %v3753 = vrcp.pop %v3689
    %v3754 = vmul.f32 %v3689, %v3753
    %v3755 = vsub.f32 1.0, %v3754
    %v3756 = vmul.f32 %v3753, %v3755
    %v3757 = vadd.f32 %v3753, %v3756
    %vm3758 = vweird.f32 %v3689
    %vm3759 = vweird.f32 %v3753
    %vm3760 = vmor %vm3758, %vm3759
    %v3761 = vsel %vm3760, %v3753, %v3757
    %v3762 = vand.u32 2147483647, %v3689
    %vm3763 = vcmp.eq.f32.partialorder %v3762, 8.507059e+37
    %v3764 = vand.u32 %v3689, 2147483648
    %v3765 = vor.u32 1.1754944e-38, %v3764
    %v3766 = vsel %vm3763, %v3765, %v3761
    %v3767 = vmul.f32 1.0, %v3766
    %v3768 = vrcp.pop %v3690
    %v3769 = vmul.f32 %v3690, %v3768
    %v3770 = vsub.f32 1.0, %v3769
    %v3771 = vmul.f32 %v3768, %v3770
    %v3772 = vadd.f32 %v3768, %v3771
    %vm3773 = vweird.f32 %v3690
    %vm3774 = vweird.f32 %v3768
    %vm3775 = vmor %vm3773, %vm3774
    %v3776 = vsel %vm3775, %v3768, %v3772
    %v3777 = vand.u32 2147483647, %v3690
    %vm3778 = vcmp.eq.f32.partialorder %v3777, 8.507059e+37
    %v3779 = vand.u32 %v3690, 2147483648
    %v3780 = vor.u32 1.1754944e-38, %v3779
    %v3781 = vsel %vm3778, %v3780, %v3776
    %v3782 = vmul.f32 1.0, %v3781
    %v3783 = vrcp.pop %v3691
    %v3784 = vmul.f32 %v3691, %v3783
    %v3785 = vsub.f32 1.0, %v3784
    %v3786 = vmul.f32 %v3783, %v3785
    %v3787 = vadd.f32 %v3783, %v3786
    %vm3788 = vweird.f32 %v3691
    %vm3789 = vweird.f32 %v3783
    %vm3790 = vmor %vm3788, %vm3789
    %v3791 = vsel %vm3790, %v3783, %v3787
    %v3792 = vand.u32 2147483647, %v3691
    %vm3793 = vcmp.eq.f32.partialorder %v3792, 8.507059e+37
    %v3794 = vand.u32 %v3691, 2147483648
    %v3795 = vor.u32 1.1754944e-38, %v3794
    %v3796 = vsel %vm3793, %v3795, %v3791
    %v3797 = vmul.f32 1.0, %v3796
    %v3798 = vrcp.pop %v3692
    %v3799 = vmul.f32 %v3692, %v3798
    %v3800 = vsub.f32 1.0, %v3799
    %v3801 = vmul.f32 %v3798, %v3800
    %v3802 = vadd.f32 %v3798, %v3801
    %vm3803 = vweird.f32 %v3692
    %vm3804 = vweird.f32 %v3798
    %vm3805 = vmor %vm3803, %vm3804
    %v3806 = vsel %vm3805, %v3798, %v3802
    %v3807 = vand.u32 2147483647, %v3692
    %vm3808 = vcmp.eq.f32.partialorder %v3807, 8.507059e+37
    %v3809 = vand.u32 %v3692, 2147483648
    %v3810 = vor.u32 1.1754944e-38, %v3809
    %v3811 = vsel %vm3808, %v3810, %v3806
    %v3812 = vmul.f32 1.0, %v3811
    %v3813 = vld [vmem:[#allocation8 + $0x4f8] sm:$0xff]
    %v3814 = vld [vmem:[#allocation8 + $0x500] sm:$0xff]
    %v3815 = vld [vmem:[#allocation8 + $0x508] sm:$0xff]
    %v3816 = vld [vmem:[#allocation8 + $0x510] sm:$0xff]
    %v3817 = vld [vmem:[#allocation8 + $0x518] sm:$0xff]
    %v3818 = vld [vmem:[#allocation8 + $0x520] sm:$0xff]
    %v3819 = vld [vmem:[#allocation8 + $0x528] sm:$0xff]
    %v3820 = vld [vmem:[#allocation8 + $0x530] sm:$0xff]
    %v3821 = vld [vmem:[#allocation8 + $0x538] sm:$0xff]
    %v3822 = vld [vmem:[#allocation8 + $0x540] sm:$0xff]
    %v3823 = vld [vmem:[#allocation8 + $0x548] sm:$0xff]
    %v3824 = vld [vmem:[#allocation8 + $0x550] sm:$0xff]
    %v3825 = vld [vmem:[#allocation8 + $0x558] sm:$0xff]
    %v3826 = vld [vmem:[#allocation8 + $0x560] sm:$0xff]
    %v3827 = vld [vmem:[#allocation8 + $0x568] sm:$0xff]
    %v3828 = vld [vmem:[#allocation8 + $0x570] sm:$0xff]
    %v3829 = vld [vmem:[#allocation8 + $0x578] sm:$0xff]
    %v3830 = vld [vmem:[#allocation8 + $0x580] sm:$0xff]
    %v3831 = vld [vmem:[#allocation8 + $0x588] sm:$0xff]
    %v3832 = vld [vmem:[#allocation8 + $0x590] sm:$0xff]
    %v3833 = vld [vmem:[#allocation8 + $0x598] sm:$0xff]
    %v3834 = vld [vmem:[#allocation8 + $0x5a0] sm:$0xff]
    %v3835 = vld [vmem:[#allocation8 + $0x5a8] sm:$0xff]
    %v3836 = vld [vmem:[#allocation8 + $0x5b0] sm:$0xff]
    %v3837 = vld [vmem:[#allocation8 + $0x5b8] sm:$0xff]
    %v3838 = vld [vmem:[#allocation8 + $0x5c0] sm:$0xff]
    %v3839 = vld [vmem:[#allocation8 + $0x5c8] sm:$0xff]
    %v3840 = vld [vmem:[#allocation8 + $0x5d0] sm:$0xff]
    %v3841 = vld [vmem:[#allocation8 + $0x5d8] sm:$0xff]
    %v3842 = vld [vmem:[#allocation8 + $0x5e0] sm:$0xff]
    %v3843 = vld [vmem:[#allocation8 + $0x5e8] sm:$0xff]
    %v3844 = vld [vmem:[#allocation8 + $0x5f0] sm:$0xff]
    %3845 = vmatpush.msra.mxu0 %v3844
    %3846 = vmatpush.msra.mxu0 %v3843
    %3847 = vmatpush.msra.mxu0 %v3842
    %3848 = vmatpush.msra.mxu0 %v3841
    %3849 = vmatpush.msra.mxu0 %v3840
    %3850 = vmatpush.msra.mxu0 %v3839
    %3851 = vmatpush.msra.mxu0 %v3838
    %3852 = vmatpush.msra.mxu0 %v3837
    %3853 = vmatpush.msra.mxu0 %v3836
    %3854 = vmatpush.msra.mxu0 %v3835
    %3855 = vmatpush.msra.mxu0 %v3834
    %3856 = vmatpush.msra.mxu0 %v3833
    %3857 = vmatpush.msra.mxu0 %v3832
    %3858 = vmatpush.msra.mxu0 %v3831
    %3859 = vmatpush.msra.mxu0 %v3830
    %3860 = vmatpush.msra.mxu0 %v3829
    %3861 = vmatmul.f32.gmra.mxu0 %v81
    %v3862 = vpop.f32.mrf.mxu0
    %v3863 = vadd.f32 0.0, %v3862
    %3864 = vmatmul.f32.gmra.mxu0 %v82
    %v3865 = vpop.f32.mrf.mxu0
    %v3866 = vadd.f32 0.0, %v3865
    %3867 = vmatmul.f32.gmra.mxu0 %v83
    %v3868 = vpop.f32.mrf.mxu0
    %v3869 = vadd.f32 0.0, %v3868
    %3870 = vmatmul.f32.gmra.mxu0 %v84
    %v3871 = vpop.f32.mrf.mxu0
    %v3872 = vadd.f32 0.0, %v3871
    %3873 = vmatmul.f32.gmra.mxu0 %v85
    %v3874 = vpop.f32.mrf.mxu0
    %v3875 = vadd.f32 0.0, %v3874
    %3876 = vmatmul.f32.gmra.mxu0 %v86
    %v3877 = vpop.f32.mrf.mxu0
    %v3878 = vadd.f32 0.0, %v3877
    %3879 = vmatmul.f32.gmra.mxu0 %v87
    %v3880 = vpop.f32.mrf.mxu0
    %v3881 = vadd.f32 0.0, %v3880
    %3882 = vmatmul.f32.gmra.mxu0 %v88
    %v3883 = vpop.f32.mrf.mxu0
    %v3884 = vadd.f32 0.0, %v3883
    %3885 = vdwg.mxu0
    %3886 = vmatpush.msra.mxu0 %v3828
    %3887 = vmatpush.msra.mxu0 %v3827
    %3888 = vmatpush.msra.mxu0 %v3826
    %3889 = vmatpush.msra.mxu0 %v3825
    %3890 = vmatpush.msra.mxu0 %v3824
    %3891 = vmatpush.msra.mxu0 %v3823
    %3892 = vmatpush.msra.mxu0 %v3822
    %3893 = vmatpush.msra.mxu0 %v3821
    %3894 = vmatpush.msra.mxu0 %v3820
    %3895 = vmatpush.msra.mxu0 %v3819
    %3896 = vmatpush.msra.mxu0 %v3818
    %3897 = vmatpush.msra.mxu0 %v3817
    %3898 = vmatpush.msra.mxu0 %v3816
    %3899 = vmatpush.msra.mxu0 %v3815
    %3900 = vmatpush.msra.mxu0 %v3814
    %3901 = vmatpush.msra.mxu0 %v3813
    %3902 = vmatmul.f32.gmra.mxu0 %v3514
    %v3903 = vpop.f32.mrf.mxu0
    %v3904 = vadd.f32 %v3863, %v3903
    %3905 = vmatmul.f32.gmra.mxu0 %v3517
    %v3906 = vpop.f32.mrf.mxu0
    %v3907 = vadd.f32 %v3866, %v3906
    %3908 = vmatmul.f32.gmra.mxu0 %v3520
    %v3909 = vpop.f32.mrf.mxu0
    %v3910 = vadd.f32 %v3869, %v3909
    %3911 = vmatmul.f32.gmra.mxu0 %v3523
    %v3912 = vpop.f32.mrf.mxu0
    %v3913 = vadd.f32 %v3872, %v3912
    %3914 = vmatmul.f32.gmra.mxu0 %v3526
    %v3915 = vpop.f32.mrf.mxu0
    %v3916 = vadd.f32 %v3875, %v3915
    %3917 = vmatmul.f32.gmra.mxu0 %v3529
    %v3918 = vpop.f32.mrf.mxu0
    %v3919 = vadd.f32 %v3878, %v3918
    %3920 = vmatmul.f32.gmra.mxu0 %v3532
    %v3921 = vpop.f32.mrf.mxu0
    %v3922 = vadd.f32 %v3881, %v3921
    %3923 = vmatmul.f32.gmra.mxu0 %v3535
    %v3924 = vpop.f32.mrf.mxu0
    %v3925 = vadd.f32 %v3884, %v3924
    %3926 = vdwg.mxu0
    %v3927 = vld [vmem:[#allocation8 + $0x5fe] sm:$0x1]
    %v3928 = vperm.slane %v3927, 0
    %v3929 = vadd.f32 %v3904, %v3928
    %v3930 = vadd.f32 %v3907, %v3928
    %v3931 = vadd.f32 %v3910, %v3928
    %v3932 = vadd.f32 %v3913, %v3928
    %v3933 = vadd.f32 %v3916, %v3928
    %v3934 = vadd.f32 %v3919, %v3928
    %v3935 = vadd.f32 %v3922, %v3928
    %v3936 = vadd.f32 %v3925, %v3928
    %v3937 = vxor.u32 %v3929, 2147483648
    %v3938 = vxor.u32 %v3930, 2147483648
    %v3939 = vxor.u32 %v3931, 2147483648
    %v3940 = vxor.u32 %v3932, 2147483648
    %v3941 = vxor.u32 %v3933, 2147483648
    %v3942 = vxor.u32 %v3934, 2147483648
    %v3943 = vxor.u32 %v3935, 2147483648
    %v3944 = vxor.u32 %v3936, 2147483648
    %v3945 = vmul.f32 %v3937, 1.442695
    %v3946 = vpow.pop %v3945
    %v3947 = vmul.f32 %v3938, 1.442695
    %v3948 = vpow.pop %v3947
    %v3949 = vmul.f32 %v3939, 1.442695
    %v3950 = vpow.pop %v3949
    %v3951 = vmul.f32 %v3940, 1.442695
    %v3952 = vpow.pop %v3951
    %v3953 = vmul.f32 %v3941, 1.442695
    %v3954 = vpow.pop %v3953
    %v3955 = vmul.f32 %v3942, 1.442695
    %v3956 = vpow.pop %v3955
    %v3957 = vmul.f32 %v3943, 1.442695
    %v3958 = vpow.pop %v3957
    %v3959 = vmul.f32 %v3944, 1.442695
    %v3960 = vpow.pop %v3959
    %v3961 = vadd.f32 %v3946, 1.0
    %v3962 = vadd.f32 %v3948, 1.0
    %v3963 = vadd.f32 %v3950, 1.0
    %v3964 = vadd.f32 %v3952, 1.0
    %v3965 = vadd.f32 %v3954, 1.0
    %v3966 = vadd.f32 %v3956, 1.0
    %v3967 = vadd.f32 %v3958, 1.0
    %v3968 = vadd.f32 %v3960, 1.0
    %v3969 = vrcp.pop %v3961
    %v3970 = vmul.f32 %v3961, %v3969
    %v3971 = vsub.f32 1.0, %v3970
    %v3972 = vmul.f32 %v3969, %v3971
    %v3973 = vadd.f32 %v3969, %v3972
    %vm3974 = vweird.f32 %v3961
    %vm3975 = vweird.f32 %v3969
    %vm3976 = vmor %vm3974, %vm3975
    %v3977 = vsel %vm3976, %v3969, %v3973
    %v3978 = vand.u32 2147483647, %v3961
    %vm3979 = vcmp.eq.f32.partialorder %v3978, 8.507059e+37
    %v3980 = vand.u32 %v3961, 2147483648
    %v3981 = vor.u32 1.1754944e-38, %v3980
    %v3982 = vsel %vm3979, %v3981, %v3977
    %v3983 = vmul.f32 1.0, %v3982
    %v3984 = vrcp.pop %v3962
    %v3985 = vmul.f32 %v3962, %v3984
    %v3986 = vsub.f32 1.0, %v3985
    %v3987 = vmul.f32 %v3984, %v3986
    %v3988 = vadd.f32 %v3984, %v3987
    %vm3989 = vweird.f32 %v3962
    %vm3990 = vweird.f32 %v3984
    %vm3991 = vmor %vm3989, %vm3990
    %v3992 = vsel %vm3991, %v3984, %v3988
    %v3993 = vand.u32 2147483647, %v3962
    %vm3994 = vcmp.eq.f32.partialorder %v3993, 8.507059e+37
    %v3995 = vand.u32 %v3962, 2147483648
    %v3996 = vor.u32 1.1754944e-38, %v3995
    %v3997 = vsel %vm3994, %v3996, %v3992
    %v3998 = vmul.f32 1.0, %v3997
    %v3999 = vrcp.pop %v3963
    %v4000 = vmul.f32 %v3963, %v3999
    %v4001 = vsub.f32 1.0, %v4000
    %v4002 = vmul.f32 %v3999, %v4001
    %v4003 = vadd.f32 %v3999, %v4002
    %vm4004 = vweird.f32 %v3963
    %vm4005 = vweird.f32 %v3999
    %vm4006 = vmor %vm4004, %vm4005
    %v4007 = vsel %vm4006, %v3999, %v4003
    %v4008 = vand.u32 2147483647, %v3963
    %vm4009 = vcmp.eq.f32.partialorder %v4008, 8.507059e+37
    %v4010 = vand.u32 %v3963, 2147483648
    %v4011 = vor.u32 1.1754944e-38, %v4010
    %v4012 = vsel %vm4009, %v4011, %v4007
    %v4013 = vmul.f32 1.0, %v4012
    %v4014 = vrcp.pop %v3964
    %v4015 = vmul.f32 %v3964, %v4014
    %v4016 = vsub.f32 1.0, %v4015
    %v4017 = vmul.f32 %v4014, %v4016
    %v4018 = vadd.f32 %v4014, %v4017
    %vm4019 = vweird.f32 %v3964
    %vm4020 = vweird.f32 %v4014
    %vm4021 = vmor %vm4019, %vm4020
    %v4022 = vsel %vm4021, %v4014, %v4018
    %v4023 = vand.u32 2147483647, %v3964
    %vm4024 = vcmp.eq.f32.partialorder %v4023, 8.507059e+37
    %v4025 = vand.u32 %v3964, 2147483648
    %v4026 = vor.u32 1.1754944e-38, %v4025
    %v4027 = vsel %vm4024, %v4026, %v4022
    %v4028 = vmul.f32 1.0, %v4027
    %v4029 = vrcp.pop %v3965
    %v4030 = vmul.f32 %v3965, %v4029
    %v4031 = vsub.f32 1.0, %v4030
    %v4032 = vmul.f32 %v4029, %v4031
    %v4033 = vadd.f32 %v4029, %v4032
    %vm4034 = vweird.f32 %v3965
    %vm4035 = vweird.f32 %v4029
    %vm4036 = vmor %vm4034, %vm4035
    %v4037 = vsel %vm4036, %v4029, %v4033
    %v4038 = vand.u32 2147483647, %v3965
    %vm4039 = vcmp.eq.f32.partialorder %v4038, 8.507059e+37
    %v4040 = vand.u32 %v3965, 2147483648
    %v4041 = vor.u32 1.1754944e-38, %v4040
    %v4042 = vsel %vm4039, %v4041, %v4037
    %v4043 = vmul.f32 1.0, %v4042
    %v4044 = vrcp.pop %v3966
    %v4045 = vmul.f32 %v3966, %v4044
    %v4046 = vsub.f32 1.0, %v4045
    %v4047 = vmul.f32 %v4044, %v4046
    %v4048 = vadd.f32 %v4044, %v4047
    %vm4049 = vweird.f32 %v3966
    %vm4050 = vweird.f32 %v4044
    %vm4051 = vmor %vm4049, %vm4050
    %v4052 = vsel %vm4051, %v4044, %v4048
    %v4053 = vand.u32 2147483647, %v3966
    %vm4054 = vcmp.eq.f32.partialorder %v4053, 8.507059e+37
    %v4055 = vand.u32 %v3966, 2147483648
    %v4056 = vor.u32 1.1754944e-38, %v4055
    %v4057 = vsel %vm4054, %v4056, %v4052
    %v4058 = vmul.f32 1.0, %v4057
    %v4059 = vrcp.pop %v3967
    %v4060 = vmul.f32 %v3967, %v4059
    %v4061 = vsub.f32 1.0, %v4060
    %v4062 = vmul.f32 %v4059, %v4061
    %v4063 = vadd.f32 %v4059, %v4062
    %vm4064 = vweird.f32 %v3967
    %vm4065 = vweird.f32 %v4059
    %vm4066 = vmor %vm4064, %vm4065
    %v4067 = vsel %vm4066, %v4059, %v4063
    %v4068 = vand.u32 2147483647, %v3967
    %vm4069 = vcmp.eq.f32.partialorder %v4068, 8.507059e+37
    %v4070 = vand.u32 %v3967, 2147483648
    %v4071 = vor.u32 1.1754944e-38, %v4070
    %v4072 = vsel %vm4069, %v4071, %v4067
    %v4073 = vmul.f32 1.0, %v4072
    %v4074 = vrcp.pop %v3968
    %v4075 = vmul.f32 %v3968, %v4074
    %v4076 = vsub.f32 1.0, %v4075
    %v4077 = vmul.f32 %v4074, %v4076
    %v4078 = vadd.f32 %v4074, %v4077
    %vm4079 = vweird.f32 %v3968
    %vm4080 = vweird.f32 %v4074
    %vm4081 = vmor %vm4079, %vm4080
    %v4082 = vsel %vm4081, %v4074, %v4078
    %v4083 = vand.u32 2147483647, %v3968
    %vm4084 = vcmp.eq.f32.partialorder %v4083, 8.507059e+37
    %v4085 = vand.u32 %v3968, 2147483648
    %v4086 = vor.u32 1.1754944e-38, %v4085
    %v4087 = vsel %vm4084, %v4086, %v4082
    %v4088 = vmul.f32 1.0, %v4087
    %v4089 = vmul.f32 %v3707, %v1868
    %v4090 = vmul.f32 %v3722, %v1871
    %v4091 = vmul.f32 %v3737, %v1874
    %v4092 = vmul.f32 %v3752, %v1877
    %v4093 = vmul.f32 %v3767, %v1880
    %v4094 = vmul.f32 %v3782, %v1883
    %v4095 = vmul.f32 %v3797, %v1886
    %v4096 = vmul.f32 %v3812, %v1889
    %v4097 = vadd.f32 %v81, %v4089
    %v4098 = vadd.f32 %v82, %v4090
    %v4099 = vadd.f32 %v83, %v4091
    %v4100 = vadd.f32 %v84, %v4092
    %v4101 = vadd.f32 %v85, %v4093
    %v4102 = vadd.f32 %v86, %v4094
    %v4103 = vadd.f32 %v87, %v4095
    %v4104 = vadd.f32 %v88, %v4096
    %v4105 = vmul.f32 %v3983, %v3514
    %v4106 = vmul.f32 %v3998, %v3517
    %v4107 = vmul.f32 %v4013, %v3520
    %v4108 = vmul.f32 %v4028, %v3523
    %v4109 = vmul.f32 %v4043, %v3526
    %v4110 = vmul.f32 %v4058, %v3529
    %v4111 = vmul.f32 %v4073, %v3532
    %v4112 = vmul.f32 %v4088, %v3535
    %v4113 = vadd.f32 %v4097, %v4105
    %v4114 = vadd.f32 %v4098, %v4106
    %v4115 = vadd.f32 %v4099, %v4107
    %v4116 = vadd.f32 %v4100, %v4108
    %v4117 = vadd.f32 %v4101, %v4109
    %v4118 = vadd.f32 %v4102, %v4110
    %v4119 = vadd.f32 %v4103, %v4111
    %v4120 = vadd.f32 %v4104, %v4112
    %4121 = vadd.xlane.f32.xlu0 %v4113
    %v4122 = vpop.xlane.xlu0 %4121
    %4123 = vadd.xlane.f32.xlu0 %v4114
    %v4124 = vpop.xlane.xlu0 %4123
    %4125 = vadd.xlane.f32.xlu0 %v4115
    %v4126 = vpop.xlane.xlu0 %4125
    %4127 = vadd.xlane.f32.xlu0 %v4116
    %v4128 = vpop.xlane.xlu0 %4127
    %4129 = vadd.xlane.f32.xlu0 %v4117
    %v4130 = vpop.xlane.xlu0 %4129
    %4131 = vadd.xlane.f32.xlu0 %v4118
    %v4132 = vpop.xlane.xlu0 %4131
    %4133 = vadd.xlane.f32.xlu0 %v4119
    %v4134 = vpop.xlane.xlu0 %4133
    %4135 = vadd.xlane.f32.xlu0 %v4120
    %v4136 = vpop.xlane.xlu0 %4135
    %v4137 = vrcp.pop 128.0
    %v4138 = vmul.f32 128.0, %v4137
    %v4139 = vsub.f32 1.0, %v4138
    %v4140 = vmul.f32 %v4137, %v4139
    %v4141 = vadd.f32 %v4137, %v4140
    %vm4142 = vweird.f32 %v4137
    %v4143 = vsel %vm4142, %v4137, %v4141
    %v4144 = vmul.f32 %v4122, %v4143
    %v4145 = vmul.f32 %v4124, %v4143
    %v4146 = vmul.f32 %v4126, %v4143
    %v4147 = vmul.f32 %v4128, %v4143
    %v4148 = vmul.f32 %v4130, %v4143
    %v4149 = vmul.f32 %v4132, %v4143
    %v4150 = vmul.f32 %v4134, %v4143
    %v4151 = vmul.f32 %v4136, %v4143
    %v4152 = vsub.f32 %v4113, %v4144
    %v4153 = vsub.f32 %v4114, %v4145
    %v4154 = vsub.f32 %v4115, %v4146
    %v4155 = vsub.f32 %v4116, %v4147
    %v4156 = vsub.f32 %v4117, %v4148
    %v4157 = vsub.f32 %v4118, %v4149
    %v4158 = vsub.f32 %v4119, %v4150
    %v4159 = vsub.f32 %v4120, %v4151
    %v4160 = vmul.f32 %v4152, %v4152
    %v4161 = vmul.f32 %v4153, %v4153
    %v4162 = vmul.f32 %v4154, %v4154
    %v4163 = vmul.f32 %v4155, %v4155
    %v4164 = vmul.f32 %v4156, %v4156
    %v4165 = vmul.f32 %v4157, %v4157
    %v4166 = vmul.f32 %v4158, %v4158
    %v4167 = vmul.f32 %v4159, %v4159
    %4168 = vadd.xlane.f32.xlu0 %v4160
    %v4169 = vpop.xlane.xlu0 %4168
    %4170 = vadd.xlane.f32.xlu0 %v4161
    %v4171 = vpop.xlane.xlu0 %4170
    %4172 = vadd.xlane.f32.xlu0 %v4162
    %v4173 = vpop.xlane.xlu0 %4172
    %4174 = vadd.xlane.f32.xlu0 %v4163
    %v4175 = vpop.xlane.xlu0 %4174
    %4176 = vadd.xlane.f32.xlu0 %v4164
    %v4177 = vpop.xlane.xlu0 %4176
    %4178 = vadd.xlane.f32.xlu0 %v4165
    %v4179 = vpop.xlane.xlu0 %4178
    %4180 = vadd.xlane.f32.xlu0 %v4166
    %v4181 = vpop.xlane.xlu0 %4180
    %4182 = vadd.xlane.f32.xlu0 %v4167
    %v4183 = vpop.xlane.xlu0 %4182
    %v4184 = vmul.f32 %v4169, %v4143
    %v4185 = vmul.f32 %v4171, %v4143
    %v4186 = vmul.f32 %v4173, %v4143
    %v4187 = vmul.f32 %v4175, %v4143
    %v4188 = vmul.f32 %v4177, %v4143
    %v4189 = vmul.f32 %v4179, %v4143
    %v4190 = vmul.f32 %v4181, %v4143
    %v4191 = vmul.f32 %v4183, %v4143
    %v4192 = vadd.f32 %v4184, 1e-05
    %v4193 = vadd.f32 %v4185, 1e-05
    %v4194 = vadd.f32 %v4186, 1e-05
    %v4195 = vadd.f32 %v4187, 1e-05
    %v4196 = vadd.f32 %v4188, 1e-05
    %v4197 = vadd.f32 %v4189, 1e-05
    %v4198 = vadd.f32 %v4190, 1e-05
    %v4199 = vadd.f32 %v4191, 1e-05
    %v4200 = vrsqrt.pop %v4192
    %v4201 = vmul.f32 %v4200, %v4192
    %v4202 = vmul.f32 %v4201, %v4200
    %v4203 = vmul.f32 0.5, %v4202
    %v4204 = vsub.f32 1.5, %v4203
    %v4205 = vmul.f32 %v4200, %v4204
    %vm4206 = vweird.f32 %v4192
    %vm4207 = vweird.f32 %v4200
    %vm4208 = vmor %vm4206, %vm4207
    %v4209 = vsel %vm4208, %v4200, %v4205
    %v4210 = vrsqrt.pop %v4193
    %v4211 = vmul.f32 %v4210, %v4193
    %v4212 = vmul.f32 %v4211, %v4210
    %v4213 = vmul.f32 0.5, %v4212
    %v4214 = vsub.f32 1.5, %v4213
    %v4215 = vmul.f32 %v4210, %v4214
    %vm4216 = vweird.f32 %v4193
    %vm4217 = vweird.f32 %v4210
    %vm4218 = vmor %vm4216, %vm4217
    %v4219 = vsel %vm4218, %v4210, %v4215
    %v4220 = vrsqrt.pop %v4194
    %v4221 = vmul.f32 %v4220, %v4194
    %v4222 = vmul.f32 %v4221, %v4220
    %v4223 = vmul.f32 0.5, %v4222
    %v4224 = vsub.f32 1.5, %v4223
    %v4225 = vmul.f32 %v4220, %v4224
    %vm4226 = vweird.f32 %v4194
    %vm4227 = vweird.f32 %v4220
    %vm4228 = vmor %vm4226, %vm4227
    %v4229 = vsel %vm4228, %v4220, %v4225
    %v4230 = vrsqrt.pop %v4195
    %v4231 = vmul.f32 %v4230, %v4195
    %v4232 = vmul.f32 %v4231, %v4230
    %v4233 = vmul.f32 0.5, %v4232
    %v4234 = vsub.f32 1.5, %v4233
    %v4235 = vmul.f32 %v4230, %v4234
    %vm4236 = vweird.f32 %v4195
    %vm4237 = vweird.f32 %v4230
    %vm4238 = vmor %vm4236, %vm4237
    %v4239 = vsel %vm4238, %v4230, %v4235
    %v4240 = vrsqrt.pop %v4196
    %v4241 = vmul.f32 %v4240, %v4196
    %v4242 = vmul.f32 %v4241, %v4240
    %v4243 = vmul.f32 0.5, %v4242
    %v4244 = vsub.f32 1.5, %v4243
    %v4245 = vmul.f32 %v4240, %v4244
    %vm4246 = vweird.f32 %v4196
    %vm4247 = vweird.f32 %v4240
    %vm4248 = vmor %vm4246, %vm4247
    %v4249 = vsel %vm4248, %v4240, %v4245
    %v4250 = vrsqrt.pop %v4197
    %v4251 = vmul.f32 %v4250, %v4197
    %v4252 = vmul.f32 %v4251, %v4250
    %v4253 = vmul.f32 0.5, %v4252
    %v4254 = vsub.f32 1.5, %v4253
    %v4255 = vmul.f32 %v4250, %v4254
    %vm4256 = vweird.f32 %v4197
    %vm4257 = vweird.f32 %v4250
    %vm4258 = vmor %vm4256, %vm4257
    %v4259 = vsel %vm4258, %v4250, %v4255
    %v4260 = vrsqrt.pop %v4198
    %v4261 = vmul.f32 %v4260, %v4198
    %v4262 = vmul.f32 %v4261, %v4260
    %v4263 = vmul.f32 0.5, %v4262
    %v4264 = vsub.f32 1.5, %v4263
    %v4265 = vmul.f32 %v4260, %v4264
    %vm4266 = vweird.f32 %v4198
    %vm4267 = vweird.f32 %v4260
    %vm4268 = vmor %vm4266, %vm4267
    %v4269 = vsel %vm4268, %v4260, %v4265
    %v4270 = vrsqrt.pop %v4199
    %v4271 = vmul.f32 %v4270, %v4199
    %v4272 = vmul.f32 %v4271, %v4270
    %v4273 = vmul.f32 0.5, %v4272
    %v4274 = vsub.f32 1.5, %v4273
    %v4275 = vmul.f32 %v4270, %v4274
    %vm4276 = vweird.f32 %v4199
    %vm4277 = vweird.f32 %v4270
    %vm4278 = vmor %vm4276, %vm4277
    %v4279 = vsel %vm4278, %v4270, %v4275
    %v4280 = vmul.f32 %v4152, %v4209
    %v4281 = vmul.f32 %v4153, %v4219
    %v4282 = vmul.f32 %v4154, %v4229
    %v4283 = vmul.f32 %v4155, %v4239
    %v4284 = vmul.f32 %v4156, %v4249
    %v4285 = vmul.f32 %v4157, %v4259
    %v4286 = vmul.f32 %v4158, %v4269
    %v4287 = vmul.f32 %v4159, %v4279
    %v4288 = vld [vmem:[#allocation8 + $0x5ff] sm:$0x1]
    %v4289 = vperm.slane %v4288, 0
    %v4290 = vmul.f32 %v4280, %v4289
    %v4291 = vmul.f32 %v4281, %v4289
    %v4292 = vmul.f32 %v4282, %v4289
    %v4293 = vmul.f32 %v4283, %v4289
    %v4294 = vmul.f32 %v4284, %v4289
    %v4295 = vmul.f32 %v4285, %v4289
    %v4296 = vmul.f32 %v4286, %v4289
    %v4297 = vmul.f32 %v4287, %v4289
    %v4298 = vld [vmem:[#allocation8 + $0x600] sm:$0x1]
    %v4299 = vperm.slane %v4298, 0
    %v4300 = vadd.f32 %v4290, %v4299
    %v4301 = vadd.f32 %v4291, %v4299
    %v4302 = vadd.f32 %v4292, %v4299
    %v4303 = vadd.f32 %v4293, %v4299
    %v4304 = vadd.f32 %v4294, %v4299
    %v4305 = vadd.f32 %v4295, %v4299
    %v4306 = vadd.f32 %v4296, %v4299
    %v4307 = vadd.f32 %v4297, %v4299
    %4308 = vst [vmem:[#allocation10] sm:$0xff] %v4300
    %4309 = vst [vmem:[#allocation10 + $0x8] sm:$0xff] %v4301
    %4310 = vst [vmem:[#allocation10 + $0x10] sm:$0xff] %v4302
    %4311 = vst [vmem:[#allocation10 + $0x18] sm:$0xff] %v4303
    %4312 = vst [vmem:[#allocation10 + $0x20] sm:$0xff] %v4304
    %4313 = vst [vmem:[#allocation10 + $0x28] sm:$0xff] %v4305
    %4314 = vst [vmem:[#allocation10 + $0x30] sm:$0xff] %v4306
    %4315 = vst [vmem:[#allocation10 + $0x38] sm:$0xff] %v4307
    // Predicated region
    $region34: #{maf_tav_pallas.1} parent=1 // pred_check
      _
    $region35: #{maf_tav_pallas.1} parent=1 // pred_check_branch
      %4317 = sbr.rel (0) target = $region37
    $region36: #{maf_tav_pallas.1} parent=1 // pred_region
      %4319 = vsyncadd [#allocation4], 0
      %s4320 = sshll.u32 [#allocation10], 4
      %s4321 = int_to_ptr.vmem [resolvable:$true] %s4320
      %s4322 = sshll.u32 %s4, 4
      %s4323 = int_to_ptr.hbm [resolvable:$true] %s4322
      %4328 = dma.vmem_to_hbm [thread:$0]  %s4321, 1024, %s4323, [#allocation4], 128, 128, 8
    $region37: #{maf_tav_pallas.1} parent=1 // pred_fallthru
      _
    // Predicated region
    $region38: #{maf_tav_pallas.1} parent=1 // pred_check
      _
    $region39: #{maf_tav_pallas.1} parent=1 // pred_check_branch
      %4330 = sbr.rel (0) target = $region41
    $region40: #{maf_tav_pallas.1} parent=1 // pred_region
      %4332 = dma.done [#allocation4], 1024
    $region41: #{maf_tav_pallas.1} parent=1 // pred_fallthru
      _
    %4333 = vsyncpa [#allocation3], 1
    %4334 = vsyncpa [#allocation6], 1
    %4335 = vsyncpa [#allocation9], 1
    %4336 = vsyncpa [#allocation4], 1

</llo_original>
